<compile_context>
chip_gen: v7x
topology: tpu7x:2x2x1
jax: 0.10.0
libtpu: 0.0.40
codegen_flags: <defaults>
</compile_context>

<pallas_src>
import math

import jax
import jax.numpy as jnp
from jax.experimental import pallas as pl
from jax.experimental.pallas import tpu as pltpu

# ---------------- model hyper-params (bert-tiny scaled down) ----------------
VOCAB = 100
VOCAB_PAD = 128          # pad vocab to one clean MXU K tile
MAX_POS = 128
N_LAYERS = 2
HIDDEN = 32
N_HEADS = 2
HEAD_DIM = HIDDEN // N_HEADS
INTERMEDIATE = 64
N_CLASSES = 2            # module asserts n_classes > 1
LN_EPS = 1e-12           # BERT LayerNorm eps
BATCH = 2
SEQ = 8
BS = BATCH * SEQ

# ------------------------- packed weight-slab layout -------------------------
# One f32 slab of shape (TOTAL_ROWS, SLAB_W).  Every component starts at a row
# offset that is a multiple of 8 (sublane aligned); 32-wide tensors live in
# lanes [0:32), INTERMEDIATE-wide tensors use the full 64 lanes.
SLAB_W = INTERMEDIATE    # 64

R_WORD = 0                                   # (VOCAB_PAD, H)
R_POSTYPE = R_WORD + VOCAB_PAD               # (BS, H) pos + token-type(0) emb
R_EMB_LN = R_POSTYPE + BS                    # row 0: gamma, row 1: beta (8 rows)
R_LAYER0 = R_EMB_LN + 8

# per-layer block (240 rows)
LW_Q, LW_K, LW_V, LW_O = 0, 32, 64, 96       # (H, H) each
LW_I = 128                                   # (H, INTER)
LW_O2 = 160                                  # (INTER, H)
LW_BIAS = 224                                # 16 rows of per-layer vectors:
#   0 bq, 1 bk, 2 bv, 3 bo, 4 ln1_g, 5 ln1_b, 6 bi, 7 bo2, 8 ln2_g, 9 ln2_b
LAYER_ROWS = 240

R_HEAD = R_LAYER0 + N_LAYERS * LAYER_ROWS    # 632
HW_POOL = 0                                  # (H, H)
HW_CLS = 32                                  # (H, N_CLASSES) padded
HW_BIAS = 64                                 # row 0: pool_b, row 1: cls_b
TOTAL_ROWS = R_HEAD + 72                     # 704

_VMEM = pl.BlockSpec(memory_space=pltpu.MemorySpace.VMEM)


# ------------------------------ fused kernel ---------------------------------
def _fused_forward_kernel(ids_ref, bias_ref, slab_ref, logits_ref):
    """Entire TransformerClassifier forward for one (B=2, S=8) batch.

    ids_ref : (BS, 1)  int32 token ids
    bias_ref: (BS, BS) f32 additive attention bias
              (batch block-diagonal -1e9 merged with the padding mask)
    slab_ref: (TOTAL_ROWS, SLAB_W) f32 packed weights (see layout above)
    out     : logits (B, N_CLASSES)
    """
    f32 = jnp.float32

    def w32(off, rows=HIDDEN):
        return slab_ref[off:off + rows, :HIDDEN]

    def w64(off, rows=HIDDEN):
        return slab_ref[off:off + rows, :]

    def brow(off, width=HIDDEN):
        return slab_ref[off:off + 1, :width]

    def layernorm(x, g, b):
        # single fused pass: mean and mean-of-squares are independent reduces
        mu = jnp.mean(x, axis=-1, keepdims=True)
        ms = jnp.mean(x * x, axis=-1, keepdims=True)
        var = ms - mu * mu
        return (x - mu) * jax.lax.rsqrt(var + LN_EPS) * g + b

    def gelu(y):
        # TODO(synk): HF BERT "gelu" is erf-based; tanh approximation used
        # here (difference ~1e-3, activations only).
        return 0.5 * y * (1.0 + jnp.tanh(0.7978845608028654
                                         * (y + 0.044715 * y * y * y)))

    # --- embeddings: one-hot gather on the MXU (K padded to 128) -------------
    ids = ids_ref[...]                                            # (BS, 1)
    onehot = (ids == jax.lax.broadcasted_iota(
        jnp.int32, (BS, VOCAB_PAD), 1)).astype(f32)               # (BS, 128)
    x = jnp.dot(onehot, w32(R_WORD, VOCAB_PAD), preferred_element_type=f32)
    x = x + w32(R_POSTYPE, BS)                                    # pos + type0
    x = layernorm(x, brow(R_EMB_LN), brow(R_EMB_LN + 1))          # (BS, H)

    # constant per-head 0/1 lane masks (built on the VPU, no lane slicing)
    lane = jax.lax.broadcasted_iota(jnp.int32, (1, HIDDEN), 1)
    head_masks = [
        jnp.logical_and(lane >= h * HEAD_DIM,
                        lane < (h + 1) * HEAD_DIM).astype(f32)
        for h in range(N_HEADS)
    ]

    bias = bias_ref[...]                                          # (BS, BS)
    scale = 1.0 / math.sqrt(HEAD_DIM)

    for l in range(N_LAYERS):
        base = R_LAYER0 + l * LAYER_ROWS
        bbase = base + LW_BIAS

        # --- Q/K/V projections (full width; heads separated by lane masks) --
        q = jnp.dot(x, w32(base + LW_Q), preferred_element_type=f32) + brow(bbase + 0)
        k = jnp.dot(x, w32(base + LW_K), preferred_element_type=f32) + brow(bbase + 1)
        v = jnp.dot(x, w32(base + LW_V), preferred_element_type=f32) + brow(bbase + 2)

        # --- all-batch attention per head: 1 score matmul + 1 softmax + 1 PV
        ctx = None
        for h in range(N_HEADS):
            mh = head_masks[h]
            s = jax.lax.dot_general(q * mh, k, (((1,), (1,)), ((), ())),
                                    preferred_element_type=f32) * scale
            s = s + bias                                          # (BS, BS)
            m = jnp.max(s, axis=-1, keepdims=True)
            e = jnp.exp(s - m)
            p = e * pl.reciprocal(jnp.sum(e, axis=-1, keepdims=True),
                                  approx=True)
            contrib = jnp.dot(p, v * mh, preferred_element_type=f32)
            ctx = contrib if ctx is None else ctx + contrib       # (BS, H)

        # --- attention output projection + residual + LayerNorm -------------
        attn_out = jnp.dot(ctx, w32(base + LW_O),
                           preferred_element_type=f32) + brow(bbase + 3)
        x = layernorm(attn_out + x, brow(bbase + 4), brow(bbase + 5))

        # --- feed-forward + residual + LayerNorm -----------------------------
        inter = gelu(jnp.dot(x, w64(base + LW_I), preferred_element_type=f32)
                     + brow(bbase + 6, SLAB_W))
        ffn_out = jnp.dot(inter, w32(base + LW_O2, INTERMEDIATE),
                          preferred_element_type=f32) + brow(bbase + 7)
        x = layernorm(ffn_out + x, brow(bbase + 8), brow(bbase + 9))

    # --- pooler (tanh over [CLS]) + classifier (dropout = identity in eval) --
    # CLS rows extracted with a 0/1 selection matmul: no slices, no concat.
    col = jax.lax.broadcasted_iota(jnp.int32, (BATCH, BS), 1)
    tgt = jax.lax.broadcasted_iota(jnp.int32, (BATCH, BS), 0) * SEQ
    sel = (col == tgt).astype(f32)                                # (B, BS)
    cls_tok = jnp.dot(sel, x, preferred_element_type=f32)         # (B, H)

    pooled = jnp.tanh(jnp.dot(cls_tok, w32(R_HEAD + HW_POOL),
                              preferred_element_type=f32)
                      + brow(R_HEAD + HW_BIAS + 0))
    logits = jnp.dot(pooled, w32(R_HEAD + HW_CLS),
                     preferred_element_type=f32)                  # (B, H) padded
    logits_ref[...] = (logits[:, :N_CLASSES]
                       + brow(R_HEAD + HW_BIAS + 1, N_CLASSES))


# ------------------------- parameter initialization --------------------------
def init_params(key):
    def nrm(k, shape, scale=0.02):
        return scale * jax.random.normal(k, shape, dtype=jnp.float32)

    keys = iter(jax.random.split(key, 64))
    p = {
        "word_emb": nrm(next(keys), (VOCAB, HIDDEN)),
        "pos_emb": nrm(next(keys), (MAX_POS, HIDDEN)),
        "type_emb": nrm(next(keys), (2, HIDDEN)),
        "emb_ln_g": jnp.ones((HIDDEN,), jnp.float32),
        "emb_ln_b": jnp.zeros((HIDDEN,), jnp.float32),
        "layers": [],
        "pool_w": nrm(next(keys), (HIDDEN, HIDDEN)),
        "pool_b": jnp.zeros((HIDDEN,), jnp.float32),
        "cls_w": nrm(next(keys), (HIDDEN, N_CLASSES)),
        "cls_b": jnp.zeros((N_CLASSES,), jnp.float32),
    }
    for _ in range(N_LAYERS):
        p["layers"].append({
            "wq": nrm(next(keys), (HIDDEN, HIDDEN)),
            "bq": jnp.zeros((HIDDEN,), jnp.float32),
            "wk": nrm(next(keys), (HIDDEN, HIDDEN)),
            "bk": jnp.zeros((HIDDEN,), jnp.float32),
            "wv": nrm(next(keys), (HIDDEN, HIDDEN)),
            "bv": jnp.zeros((HIDDEN,), jnp.float32),
            "wo": nrm(next(keys), (HIDDEN, HIDDEN)),
            "bo": jnp.zeros((HIDDEN,), jnp.float32),
            "ln1_g": jnp.ones((HIDDEN,), jnp.float32),
            "ln1_b": jnp.zeros((HIDDEN,), jnp.float32),
            "wi": nrm(next(keys), (HIDDEN, INTERMEDIATE)),
            "bi": jnp.zeros((INTERMEDIATE,), jnp.float32),
            "wo2": nrm(next(keys), (INTERMEDIATE, HIDDEN)),
            "bo2": jnp.zeros((HIDDEN,), jnp.float32),
            "ln2_g": jnp.ones((HIDDEN,), jnp.float32),
            "ln2_b": jnp.zeros((HIDDEN,), jnp.float32),
        })
    return p


def pack_params(params):
    """One-time repack of all weights into a single (TOTAL_ROWS, SLAB_W) slab.

    NOTE: pos/type rows bake in token_type_ids == 0 and positions 0..SEQ-1.
    NOTE: for v6e/v7x a bf16 slab would halve DMA bytes; kept f32 for v5e.
    """
    def padded(mat, rows=None):
        m = jnp.asarray(mat, jnp.float32)
        if m.ndim == 1:
            m = m[None, :]
        m = jnp.pad(m, ((0, 0), (0, SLAB_W - m.shape[1])))
        if rows is not None:
            m = jnp.pad(m, ((0, rows - m.shape[0]), (0, 0)))
        return m

    pieces = []
    we = jnp.pad(params["word_emb"], ((0, VOCAB_PAD - VOCAB), (0, 0)))
    pieces.append(padded(we))                                        # R_WORD
    pos_type = jnp.tile(params["pos_emb"][:SEQ]
                        + params["type_emb"][0][None, :], (BATCH, 1))
    pieces.append(padded(pos_type))                                  # R_POSTYPE
    pieces.append(padded(jnp.stack([params["emb_ln_g"],
                                    params["emb_ln_b"]]), rows=8))   # R_EMB_LN

    for lp in params["layers"]:
        pieces.extend([padded(lp["wq"]), padded(lp["wk"]), padded(lp["wv"]),
                       padded(lp["wo"]), padded(lp["wi"]), padded(lp["wo2"])])
        brows = [lp["bq"], lp["bk"], lp["bv"], lp["bo"],
                 lp["ln1_g"], lp["ln1_b"], lp["bi"], lp["bo2"],
                 lp["ln2_g"], lp["ln2_b"]]
        bblock = jnp.stack([jnp.pad(jnp.asarray(r, jnp.float32),
                                    (0, SLAB_W - r.shape[0])) for r in brows])
        pieces.append(padded(bblock, rows=16))

    pieces.append(padded(params["pool_w"]))                          # HW_POOL
    pieces.append(padded(params["cls_w"]))                           # HW_CLS
    head_b = jnp.stack([
        jnp.pad(params["pool_b"], (0, SLAB_W - HIDDEN)),
        jnp.pad(params["cls_b"], (0, SLAB_W - N_CLASSES)),
    ])
    pieces.append(padded(head_b, rows=8))                            # HW_BIAS

    slab = jnp.concatenate(pieces, axis=0)
    assert slab.shape == (TOTAL_ROWS, SLAB_W), slab.shape
    return slab


# ------------------------------ forward pass ---------------------------------
def transformer_classifier_forward(slab, input_ids, attention_mask):
    """Returns classification logits [B, N_CLASSES] (== outputs.logits)."""
    B, S = input_ids.shape
    assert B == BATCH and S == SEQ

    ids2 = input_ids.astype(jnp.int32).reshape(B * S, 1)

    # merged attention bias: batch block-diagonal -1e9 + key-side padding bias
    maskf = attention_mask.astype(jnp.float32)                       # (B, S)
    key_bias = ((1.0 - maskf) * -1e9).reshape(1, B * S)              # (1, BS)
    b_of = jnp.repeat(jnp.arange(B), S)                              # (BS,)
    block = jnp.where(b_of[:, None] == b_of[None, :], 0.0, -1e9)
    attn_bias = (block + key_bias).astype(jnp.float32)               # (BS, BS)

    cost = pl.CostEstimate(
        flops=1_060_000,
        transcendentals=3_300,
        bytes_accessed=int(slab.size * 4 + ids2.size * 4
                           + attn_bias.size * 4 + B * N_CLASSES * 4))

    # TODO(synk): for larger batch on v7x, add a grid over batch tiles with
    # dimension_semantics=("parallel",) to use the second TensorCore.
    return pl.pallas_call(
        _fused_forward_kernel,
        out_shape=jax.ShapeDtypeStruct((B, N_CLASSES), jnp.float32),
        in_specs=[_VMEM, _VMEM, _VMEM],
        out_specs=_VMEM,
        cost_estimate=cost,
    )(ids2, attn_bias, slab)


# ---------------------------------- main --------------------------------------
if __name__ == "__main__":
    root = jax.random.PRNGKey(0)
    k_param, k_ids = jax.random.split(root)

    params = init_params(k_param)
    slab = pack_params(params)

    input_ids = jax.random.randint(k_ids, (BATCH, SEQ), 0, VOCAB,
                                   dtype=jnp.int32)
    attention_mask = jnp.array([[1] * SEQ,
                                [1] * (SEQ - 2) + [0] * 2], dtype=jnp.int32)

    forward = jax.jit(transformer_classifier_forward)
    logits = forward(slab, input_ids, attention_mask)
    logits = jax.block_until_ready(logits)

    assert logits.shape == (BATCH, N_CLASSES)
    assert bool(jnp.all(jnp.isfinite(logits)))
    print("KERNEL_OK")
</pallas_src>

<mosaic_0001>
module attributes {stable_mosaic.version = 11 : i64} {
  func.func @_fused_forward_kernel(%arg0: memref<16x1xi32, #tpu.memory_space<vmem>>, %arg1: memref<16x16xf32, #tpu.memory_space<vmem>>, %arg2: memref<704x64xf32, #tpu.memory_space<vmem>>, %arg3: memref<2x2xf32, #tpu.memory_space<vmem>>) attributes {dimension_semantics = [], scalar_prefetch = 0 : i64, scratch_operands = 0 : i64, tpu.core_type = #tpu.core_type<tc>} {
    %c0 = arith.constant 0 : index
    %c0_0 = arith.constant 0 : index
    %0 = vector.load %arg0[%c0, %c0_0] : memref<16x1xi32, #tpu.memory_space<vmem>>, vector<16x1xi32>
    %1 = tpu.iota {dimensions = array<i32: 1>} : vector<16x128xi32>
    %2 = vector.broadcast %0 : vector<16x1xi32> to vector<16x128xi32>
    %3 = arith.cmpi eq, %2, %1 : vector<16x128xi32>
    %4 = arith.extui %3 : vector<16x128xi1> to vector<16x128xi32>
    %5 = arith.sitofp %4 : vector<16x128xi32> to vector<16x128xf32>
    %c0_1 = arith.constant 0 : index
    %c0_2 = arith.constant 0 : index
    %6 = vector.load %arg2[%c0_1, %c0_2] : memref<704x64xf32, #tpu.memory_space<vmem>>, vector<128x32xf32>
    %cst = arith.constant dense<0.000000e+00> : vector<16x32xf32>
    %7 = tpu.matmul %5, %6, %cst {dimension_numbers = #tpu.dot_dimension_numbers<[1], [0], [0], [1], [0, 0, 1, 1], [], []>} : vector<16x128xf32>, vector<128x32xf32>, vector<16x32xf32> -> vector<16x32xf32>
    %c128 = arith.constant 128 : index
    %c0_3 = arith.constant 0 : index
    %8 = vector.load %arg2[%c128, %c0_3] : memref<704x64xf32, #tpu.memory_space<vmem>>, vector<16x32xf32>
    %9 = arith.addf %7, %8 : vector<16x32xf32>
    %c144 = arith.constant 144 : index
    %c0_4 = arith.constant 0 : index
    %10 = vector.load %arg2[%c144, %c0_4] : memref<704x64xf32, #tpu.memory_space<vmem>>, vector<1x32xf32>
    %c145 = arith.constant 145 : index
    %c0_5 = arith.constant 0 : index
    %11 = vector.load %arg2[%c145, %c0_5] : memref<704x64xf32, #tpu.memory_space<vmem>>, vector<1x32xf32>
    %cst_6 = arith.constant dense<0.000000e+00> : vector<16xf32>
    %12 = vector.multi_reduction <add>, %9, %cst_6 [1] : vector<16x32xf32> to vector<16xf32>
    %13 = vector.shape_cast %12 : vector<16xf32> to vector<16x1xf32>
    %cst_7 = arith.constant 3.200000e+01 : f32
    %14 = vector.broadcast %cst_7 : f32 to vector<16x1xf32>
    %15 = arith.divf %13, %14 : vector<16x1xf32>
    %16 = arith.mulf %9, %9 : vector<16x32xf32>
    %cst_8 = arith.constant dense<0.000000e+00> : vector<16xf32>
    %17 = vector.multi_reduction <add>, %16, %cst_8 [1] : vector<16x32xf32> to vector<16xf32>
    %18 = vector.shape_cast %17 : vector<16xf32> to vector<16x1xf32>
    %cst_9 = arith.constant 3.200000e+01 : f32
    %19 = vector.broadcast %cst_9 : f32 to vector<16x1xf32>
    %20 = arith.divf %18, %19 : vector<16x1xf32>
    %21 = arith.mulf %15, %15 : vector<16x1xf32>
    %22 = arith.subf %20, %21 : vector<16x1xf32>
    %23 = vector.broadcast %15 : vector<16x1xf32> to vector<16x32xf32>
    %24 = arith.subf %9, %23 : vector<16x32xf32>
    %cst_10 = arith.constant 9.99999996E-13 : f32
    %25 = vector.broadcast %cst_10 : f32 to vector<16x1xf32>
    %26 = arith.addf %22, %25 : vector<16x1xf32>
    %27 = math.rsqrt %26 : vector<16x1xf32>
    %28 = vector.broadcast %27 : vector<16x1xf32> to vector<16x32xf32>
    %29 = arith.mulf %24, %28 : vector<16x32xf32>
    %30 = vector.broadcast %10 : vector<1x32xf32> to vector<16x32xf32>
    %31 = arith.mulf %29, %30 : vector<16x32xf32>
    %32 = vector.broadcast %11 : vector<1x32xf32> to vector<16x32xf32>
    %33 = arith.addf %31, %32 : vector<16x32xf32>
    %34 = tpu.iota {dimensions = array<i32: 1>} : vector<1x32xi32>
    %c0_i32 = arith.constant 0 : i32
    %35 = vector.broadcast %c0_i32 : i32 to vector<1x32xi32>
    %36 = arith.cmpi sge, %34, %35 : vector<1x32xi32>
    %c16_i32 = arith.constant 16 : i32
    %37 = vector.broadcast %c16_i32 : i32 to vector<1x32xi32>
    %38 = arith.cmpi slt, %34, %37 : vector<1x32xi32>
    %39 = arith.andi %36, %38 : vector<1x32xi1>
    %40 = arith.extui %39 : vector<1x32xi1> to vector<1x32xi32>
    %41 = arith.sitofp %40 : vector<1x32xi32> to vector<1x32xf32>
    %c16_i32_11 = arith.constant 16 : i32
    %42 = vector.broadcast %c16_i32_11 : i32 to vector<1x32xi32>
    %43 = arith.cmpi sge, %34, %42 : vector<1x32xi32>
    %c32_i32 = arith.constant 32 : i32
    %44 = vector.broadcast %c32_i32 : i32 to vector<1x32xi32>
    %45 = arith.cmpi slt, %34, %44 : vector<1x32xi32>
    %46 = arith.andi %43, %45 : vector<1x32xi1>
    %47 = arith.extui %46 : vector<1x32xi1> to vector<1x32xi32>
    %48 = arith.sitofp %47 : vector<1x32xi32> to vector<1x32xf32>
    %c0_12 = arith.constant 0 : index
    %c0_13 = arith.constant 0 : index
    %49 = vector.load %arg1[%c0_12, %c0_13] : memref<16x16xf32, #tpu.memory_space<vmem>>, vector<16x16xf32>
    %c152 = arith.constant 152 : index
    %c0_14 = arith.constant 0 : index
    %50 = vector.load %arg2[%c152, %c0_14] : memref<704x64xf32, #tpu.memory_space<vmem>>, vector<32x32xf32>
    %cst_15 = arith.constant dense<0.000000e+00> : vector<16x32xf32>
    %51 = tpu.matmul %33, %50, %cst_15 {dimension_numbers = #tpu.dot_dimension_numbers<[1], [0], [0], [1], [0, 0, 1, 1], [], []>} : vector<16x32xf32>, vector<32x32xf32>, vector<16x32xf32> -> vector<16x32xf32>
    %c376 = arith.constant 376 : index
    %c0_16 = arith.constant 0 : index
    %52 = vector.load %arg2[%c376, %c0_16] : memref<704x64xf32, #tpu.memory_space<vmem>>, vector<1x32xf32>
    %53 = vector.broadcast %52 : vector<1x32xf32> to vector<16x32xf32>
    %54 = arith.addf %51, %53 : vector<16x32xf32>
    %c184 = arith.constant 184 : index
    %c0_17 = arith.constant 0 : index
    %55 = vector.load %arg2[%c184, %c0_17] : memref<704x64xf32, #tpu.memory_space<vmem>>, vector<32x32xf32>
    %cst_18 = arith.constant dense<0.000000e+00> : vector<16x32xf32>
    %56 = tpu.matmul %33, %55, %cst_18 {dimension_numbers = #tpu.dot_dimension_numbers<[1], [0], [0], [1], [0, 0, 1, 1], [], []>} : vector<16x32xf32>, vector<32x32xf32>, vector<16x32xf32> -> vector<16x32xf32>
    %c377 = arith.constant 377 : index
    %c0_19 = arith.constant 0 : index
    %57 = vector.load %arg2[%c377, %c0_19] : memref<704x64xf32, #tpu.memory_space<vmem>>, vector<1x32xf32>
    %58 = vector.broadcast %57 : vector<1x32xf32> to vector<16x32xf32>
    %59 = arith.addf %56, %58 : vector<16x32xf32>
    %c216 = arith.constant 216 : index
    %c0_20 = arith.constant 0 : index
    %60 = vector.load %arg2[%c216, %c0_20] : memref<704x64xf32, #tpu.memory_space<vmem>>, vector<32x32xf32>
    %cst_21 = arith.constant dense<0.000000e+00> : vector<16x32xf32>
    %61 = tpu.matmul %33, %60, %cst_21 {dimension_numbers = #tpu.dot_dimension_numbers<[1], [0], [0], [1], [0, 0, 1, 1], [], []>} : vector<16x32xf32>, vector<32x32xf32>, vector<16x32xf32> -> vector<16x32xf32>
    %c378 = arith.constant 378 : index
    %c0_22 = arith.constant 0 : index
    %62 = vector.load %arg2[%c378, %c0_22] : memref<704x64xf32, #tpu.memory_space<vmem>>, vector<1x32xf32>
    %63 = vector.broadcast %62 : vector<1x32xf32> to vector<16x32xf32>
    %64 = arith.addf %61, %63 : vector<16x32xf32>
    %65 = vector.broadcast %41 : vector<1x32xf32> to vector<16x32xf32>
    %66 = arith.mulf %54, %65 : vector<16x32xf32>
    %cst_23 = arith.constant dense<0.000000e+00> : vector<16x16xf32>
    %67 = tpu.matmul %66, %59, %cst_23 {dimension_numbers = #tpu.dot_dimension_numbers<[1], [1], [0], [0], [0, 0, 1, 0], [], []>} : vector<16x32xf32>, vector<16x32xf32>, vector<16x16xf32> -> vector<16x16xf32>
    %cst_24 = arith.constant 2.500000e-01 : f32
    %68 = vector.broadcast %cst_24 : f32 to vector<16x16xf32>
    %69 = arith.mulf %67, %68 : vector<16x16xf32>
    %70 = arith.addf %69, %49 : vector<16x16xf32>
    %cst_25 = arith.constant dense<0xFF800000> : vector<16xf32>
    %71 = vector.multi_reduction <maximumf>, %70, %cst_25 [1] : vector<16x16xf32> to vector<16xf32>
    %72 = vector.shape_cast %71 : vector<16xf32> to vector<16x1xf32>
    %73 = vector.broadcast %72 : vector<16x1xf32> to vector<16x16xf32>
    %74 = arith.subf %70, %73 : vector<16x16xf32>
    %75 = math.exp %74 : vector<16x16xf32>
    %cst_26 = arith.constant dense<0.000000e+00> : vector<16xf32>
    %76 = vector.multi_reduction <add>, %75, %cst_26 [1] : vector<16x16xf32> to vector<16xf32>
    %77 = vector.shape_cast %76 : vector<16xf32> to vector<16x1xf32>
    %78 = tpu.reciprocal %77 {approx = true} : vector<16x1xf32> -> vector<16x1xf32>
    %79 = vector.broadcast %78 : vector<16x1xf32> to vector<16x16xf32>
    %80 = arith.mulf %75, %79 : vector<16x16xf32>
    %81 = vector.broadcast %41 : vector<1x32xf32> to vector<16x32xf32>
    %82 = arith.mulf %64, %81 : vector<16x32xf32>
    %cst_27 = arith.constant dense<0.000000e+00> : vector<16x32xf32>
    %83 = tpu.matmul %80, %82, %cst_27 {dimension_numbers = #tpu.dot_dimension_numbers<[1], [0], [0], [1], [0, 0, 1, 1], [], []>} : vector<16x16xf32>, vector<16x32xf32>, vector<16x32xf32> -> vector<16x32xf32>
    %84 = vector.broadcast %48 : vector<1x32xf32> to vector<16x32xf32>
    %85 = arith.mulf %54, %84 : vector<16x32xf32>
    %cst_28 = arith.constant dense<0.000000e+00> : vector<16x16xf32>
    %86 = tpu.matmul %85, %59, %cst_28 {dimension_numbers = #tpu.dot_dimension_numbers<[1], [1], [0], [0], [0, 0, 1, 0], [], []>} : vector<16x32xf32>, vector<16x32xf32>, vector<16x16xf32> -> vector<16x16xf32>
    %cst_29 = arith.constant 2.500000e-01 : f32
    %87 = vector.broadcast %cst_29 : f32 to vector<16x16xf32>
    %88 = arith.mulf %86, %87 : vector<16x16xf32>
    %89 = arith.addf %88, %49 : vector<16x16xf32>
    %cst_30 = arith.constant dense<0xFF800000> : vector<16xf32>
    %90 = vector.multi_reduction <maximumf>, %89, %cst_30 [1] : vector<16x16xf32> to vector<16xf32>
    %91 = vector.shape_cast %90 : vector<16xf32> to vector<16x1xf32>
    %92 = vector.broadcast %91 : vector<16x1xf32> to vector<16x16xf32>
    %93 = arith.subf %89, %92 : vector<16x16xf32>
    %94 = math.exp %93 : vector<16x16xf32>
    %cst_31 = arith.constant dense<0.000000e+00> : vector<16xf32>
    %95 = vector.multi_reduction <add>, %94, %cst_31 [1] : vector<16x16xf32> to vector<16xf32>
    %96 = vector.shape_cast %95 : vector<16xf32> to vector<16x1xf32>
    %97 = tpu.reciprocal %96 {approx = true} : vector<16x1xf32> -> vector<16x1xf32>
    %98 = vector.broadcast %97 : vector<16x1xf32> to vector<16x16xf32>
    %99 = arith.mulf %94, %98 : vector<16x16xf32>
    %100 = vector.broadcast %48 : vector<1x32xf32> to vector<16x32xf32>
    %101 = arith.mulf %64, %100 : vector<16x32xf32>
    %cst_32 = arith.constant dense<0.000000e+00> : vector<16x32xf32>
    %102 = tpu.matmul %99, %101, %cst_32 {dimension_numbers = #tpu.dot_dimension_numbers<[1], [0], [0], [1], [0, 0, 1, 1], [], []>} : vector<16x16xf32>, vector<16x32xf32>, vector<16x32xf32> -> vector<16x32xf32>
    %103 = arith.addf %83, %102 : vector<16x32xf32>
    %c248 = arith.constant 248 : index
    %c0_33 = arith.constant 0 : index
    %104 = vector.load %arg2[%c248, %c0_33] : memref<704x64xf32, #tpu.memory_space<vmem>>, vector<32x32xf32>
    %cst_34 = arith.constant dense<0.000000e+00> : vector<16x32xf32>
    %105 = tpu.matmul %103, %104, %cst_34 {dimension_numbers = #tpu.dot_dimension_numbers<[1], [0], [0], [1], [0, 0, 1, 1], [], []>} : vector<16x32xf32>, vector<32x32xf32>, vector<16x32xf32> -> vector<16x32xf32>
    %c379 = arith.constant 379 : index
    %c0_35 = arith.constant 0 : index
    %106 = vector.load %arg2[%c379, %c0_35] : memref<704x64xf32, #tpu.memory_space<vmem>>, vector<1x32xf32>
    %107 = vector.broadcast %106 : vector<1x32xf32> to vector<16x32xf32>
    %108 = arith.addf %105, %107 : vector<16x32xf32>
    %109 = arith.addf %108, %33 : vector<16x32xf32>
    %c380 = arith.constant 380 : index
    %c0_36 = arith.constant 0 : index
    %110 = vector.load %arg2[%c380, %c0_36] : memref<704x64xf32, #tpu.memory_space<vmem>>, vector<1x32xf32>
    %c381 = arith.constant 381 : index
    %c0_37 = arith.constant 0 : index
    %111 = vector.load %arg2[%c381, %c0_37] : memref<704x64xf32, #tpu.memory_space<vmem>>, vector<1x32xf32>
    %cst_38 = arith.constant dense<0.000000e+00> : vector<16xf32>
    %112 = vector.multi_reduction <add>, %109, %cst_38 [1] : vector<16x32xf32> to vector<16xf32>
    %113 = vector.shape_cast %112 : vector<16xf32> to vector<16x1xf32>
    %cst_39 = arith.constant 3.200000e+01 : f32
    %114 = vector.broadcast %cst_39 : f32 to vector<16x1xf32>
    %115 = arith.divf %113, %114 : vector<16x1xf32>
    %116 = arith.mulf %109, %109 : vector<16x32xf32>
    %cst_40 = arith.constant dense<0.000000e+00> : vector<16xf32>
    %117 = vector.multi_reduction <add>, %116, %cst_40 [1] : vector<16x32xf32> to vector<16xf32>
    %118 = vector.shape_cast %117 : vector<16xf32> to vector<16x1xf32>
    %cst_41 = arith.constant 3.200000e+01 : f32
    %119 = vector.broadcast %cst_41 : f32 to vector<16x1xf32>
    %120 = arith.divf %118, %119 : vector<16x1xf32>
    %121 = arith.mulf %115, %115 : vector<16x1xf32>
    %122 = arith.subf %120, %121 : vector<16x1xf32>
    %123 = vector.broadcast %115 : vector<16x1xf32> to vector<16x32xf32>
    %124 = arith.subf %109, %123 : vector<16x32xf32>
    %cst_42 = arith.constant 9.99999996E-13 : f32
    %125 = vector.broadcast %cst_42 : f32 to vector<16x1xf32>
    %126 = arith.addf %122, %125 : vector<16x1xf32>
    %127 = math.rsqrt %126 : vector<16x1xf32>
    %128 = vector.broadcast %127 : vector<16x1xf32> to vector<16x32xf32>
    %129 = arith.mulf %124, %128 : vector<16x32xf32>
    %130 = vector.broadcast %110 : vector<1x32xf32> to vector<16x32xf32>
    %131 = arith.mulf %129, %130 : vector<16x32xf32>
    %132 = vector.broadcast %111 : vector<1x32xf32> to vector<16x32xf32>
    %133 = arith.addf %131, %132 : vector<16x32xf32>
    %c280 = arith.constant 280 : index
    %c0_43 = arith.constant 0 : index
    %134 = vector.load %arg2[%c280, %c0_43] : memref<704x64xf32, #tpu.memory_space<vmem>>, vector<32x64xf32>
    %cst_44 = arith.constant dense<0.000000e+00> : vector<16x64xf32>
    %135 = tpu.matmul %133, %134, %cst_44 {dimension_numbers = #tpu.dot_dimension_numbers<[1], [0], [0], [1], [0, 0, 1, 1], [], []>} : vector<16x32xf32>, vector<32x64xf32>, vector<16x64xf32> -> vector<16x64xf32>
    %c382 = arith.constant 382 : index
    %c0_45 = arith.constant 0 : index
    %136 = vector.load %arg2[%c382, %c0_45] : memref<704x64xf32, #tpu.memory_space<vmem>>, vector<1x64xf32>
    %137 = vector.broadcast %136 : vector<1x64xf32> to vector<16x64xf32>
    %138 = arith.addf %135, %137 : vector<16x64xf32>
    %cst_46 = arith.constant 5.000000e-01 : f32
    %139 = vector.broadcast %cst_46 : f32 to vector<16x64xf32>
    %140 = arith.mulf %139, %138 : vector<16x64xf32>
    %cst_47 = arith.constant 4.471500e-02 : f32
    %141 = vector.broadcast %cst_47 : f32 to vector<16x64xf32>
    %142 = arith.mulf %141, %138 : vector<16x64xf32>
    %143 = arith.mulf %142, %138 : vector<16x64xf32>
    %144 = arith.mulf %143, %138 : vector<16x64xf32>
    %145 = arith.addf %138, %144 : vector<16x64xf32>
    %cst_48 = arith.constant 0.797884583 : f32
    %146 = vector.broadcast %cst_48 : f32 to vector<16x64xf32>
    %147 = arith.mulf %146, %145 : vector<16x64xf32>
    %148 = math.tanh %147 : vector<16x64xf32>
    %cst_49 = arith.constant 1.000000e+00 : f32
    %149 = vector.broadcast %cst_49 : f32 to vector<16x64xf32>
    %150 = arith.addf %149, %148 : vector<16x64xf32>
    %151 = arith.mulf %140, %150 : vector<16x64xf32>
    %c312 = arith.constant 312 : index
    %c0_50 = arith.constant 0 : index
    %152 = vector.load %arg2[%c312, %c0_50] : memref<704x64xf32, #tpu.memory_space<vmem>>, vector<64x32xf32>
    %cst_51 = arith.constant dense<0.000000e+00> : vector<16x32xf32>
    %153 = tpu.matmul %151, %152, %cst_51 {dimension_numbers = #tpu.dot_dimension_numbers<[1], [0], [0], [1], [0, 0, 1, 1], [], []>} : vector<16x64xf32>, vector<64x32xf32>, vector<16x32xf32> -> vector<16x32xf32>
    %c383 = arith.constant 383 : index
    %c0_52 = arith.constant 0 : index
    %154 = vector.load %arg2[%c383, %c0_52] : memref<704x64xf32, #tpu.memory_space<vmem>>, vector<1x32xf32>
    %155 = vector.broadcast %154 : vector<1x32xf32> to vector<16x32xf32>
    %156 = arith.addf %153, %155 : vector<16x32xf32>
    %157 = arith.addf %156, %133 : vector<16x32xf32>
    %c384 = arith.constant 384 : index
    %c0_53 = arith.constant 0 : index
    %158 = vector.load %arg2[%c384, %c0_53] : memref<704x64xf32, #tpu.memory_space<vmem>>, vector<1x32xf32>
    %c385 = arith.constant 385 : index
    %c0_54 = arith.constant 0 : index
    %159 = vector.load %arg2[%c385, %c0_54] : memref<704x64xf32, #tpu.memory_space<vmem>>, vector<1x32xf32>
    %cst_55 = arith.constant dense<0.000000e+00> : vector<16xf32>
    %160 = vector.multi_reduction <add>, %157, %cst_55 [1] : vector<16x32xf32> to vector<16xf32>
    %161 = vector.shape_cast %160 : vector<16xf32> to vector<16x1xf32>
    %cst_56 = arith.constant 3.200000e+01 : f32
    %162 = vector.broadcast %cst_56 : f32 to vector<16x1xf32>
    %163 = arith.divf %161, %162 : vector<16x1xf32>
    %164 = arith.mulf %157, %157 : vector<16x32xf32>
    %cst_57 = arith.constant dense<0.000000e+00> : vector<16xf32>
    %165 = vector.multi_reduction <add>, %164, %cst_57 [1] : vector<16x32xf32> to vector<16xf32>
    %166 = vector.shape_cast %165 : vector<16xf32> to vector<16x1xf32>
    %cst_58 = arith.constant 3.200000e+01 : f32
    %167 = vector.broadcast %cst_58 : f32 to vector<16x1xf32>
    %168 = arith.divf %166, %167 : vector<16x1xf32>
    %169 = arith.mulf %163, %163 : vector<16x1xf32>
    %170 = arith.subf %168, %169 : vector<16x1xf32>
    %171 = vector.broadcast %163 : vector<16x1xf32> to vector<16x32xf32>
    %172 = arith.subf %157, %171 : vector<16x32xf32>
    %cst_59 = arith.constant 9.99999996E-13 : f32
    %173 = vector.broadcast %cst_59 : f32 to vector<16x1xf32>
    %174 = arith.addf %170, %173 : vector<16x1xf32>
    %175 = math.rsqrt %174 : vector<16x1xf32>
    %176 = vector.broadcast %175 : vector<16x1xf32> to vector<16x32xf32>
    %177 = arith.mulf %172, %176 : vector<16x32xf32>
    %178 = vector.broadcast %158 : vector<1x32xf32> to vector<16x32xf32>
    %179 = arith.mulf %177, %178 : vector<16x32xf32>
    %180 = vector.broadcast %159 : vector<1x32xf32> to vector<16x32xf32>
    %181 = arith.addf %179, %180 : vector<16x32xf32>
    %c392 = arith.constant 392 : index
    %c0_60 = arith.constant 0 : index
    %182 = vector.load %arg2[%c392, %c0_60] : memref<704x64xf32, #tpu.memory_space<vmem>>, vector<32x32xf32>
    %cst_61 = arith.constant dense<0.000000e+00> : vector<16x32xf32>
    %183 = tpu.matmul %181, %182, %cst_61 {dimension_numbers = #tpu.dot_dimension_numbers<[1], [0], [0], [1], [0, 0, 1, 1], [], []>} : vector<16x32xf32>, vector<32x32xf32>, vector<16x32xf32> -> vector<16x32xf32>
    %c616 = arith.constant 616 : index
    %c0_62 = arith.constant 0 : index
    %184 = vector.load %arg2[%c616, %c0_62] : memref<704x64xf32, #tpu.memory_space<vmem>>, vector<1x32xf32>
    %185 = vector.broadcast %184 : vector<1x32xf32> to vector<16x32xf32>
    %186 = arith.addf %183, %185 : vector<16x32xf32>
    %c424 = arith.constant 424 : index
    %c0_63 = arith.constant 0 : index
    %187 = vector.load %arg2[%c424, %c0_63] : memref<704x64xf32, #tpu.memory_space<vmem>>, vector<32x32xf32>
    %cst_64 = arith.constant dense<0.000000e+00> : vector<16x32xf32>
    %188 = tpu.matmul %181, %187, %cst_64 {dimension_numbers = #tpu.dot_dimension_numbers<[1], [0], [0], [1], [0, 0, 1, 1], [], []>} : vector<16x32xf32>, vector<32x32xf32>, vector<16x32xf32> -> vector<16x32xf32>
    %c617 = arith.constant 617 : index
    %c0_65 = arith.constant 0 : index
    %189 = vector.load %arg2[%c617, %c0_65] : memref<704x64xf32, #tpu.memory_space<vmem>>, vector<1x32xf32>
    %190 = vector.broadcast %189 : vector<1x32xf32> to vector<16x32xf32>
    %191 = arith.addf %188, %190 : vector<16x32xf32>
    %c456 = arith.constant 456 : index
    %c0_66 = arith.constant 0 : index
    %192 = vector.load %arg2[%c456, %c0_66] : memref<704x64xf32, #tpu.memory_space<vmem>>, vector<32x32xf32>
    %cst_67 = arith.constant dense<0.000000e+00> : vector<16x32xf32>
    %193 = tpu.matmul %181, %192, %cst_67 {dimension_numbers = #tpu.dot_dimension_numbers<[1], [0], [0], [1], [0, 0, 1, 1], [], []>} : vector<16x32xf32>, vector<32x32xf32>, vector<16x32xf32> -> vector<16x32xf32>
    %c618 = arith.constant 618 : index
    %c0_68 = arith.constant 0 : index
    %194 = vector.load %arg2[%c618, %c0_68] : memref<704x64xf32, #tpu.memory_space<vmem>>, vector<1x32xf32>
    %195 = vector.broadcast %194 : vector<1x32xf32> to vector<16x32xf32>
    %196 = arith.addf %193, %195 : vector<16x32xf32>
    %197 = vector.broadcast %41 : vector<1x32xf32> to vector<16x32xf32>
    %198 = arith.mulf %186, %197 : vector<16x32xf32>
    %cst_69 = arith.constant dense<0.000000e+00> : vector<16x16xf32>
    %199 = tpu.matmul %198, %191, %cst_69 {dimension_numbers = #tpu.dot_dimension_numbers<[1], [1], [0], [0], [0, 0, 1, 0], [], []>} : vector<16x32xf32>, vector<16x32xf32>, vector<16x16xf32> -> vector<16x16xf32>
    %cst_70 = arith.constant 2.500000e-01 : f32
    %200 = vector.broadcast %cst_70 : f32 to vector<16x16xf32>
    %201 = arith.mulf %199, %200 : vector<16x16xf32>
    %202 = arith.addf %201, %49 : vector<16x16xf32>
    %cst_71 = arith.constant dense<0xFF800000> : vector<16xf32>
    %203 = vector.multi_reduction <maximumf>, %202, %cst_71 [1] : vector<16x16xf32> to vector<16xf32>
    %204 = vector.shape_cast %203 : vector<16xf32> to vector<16x1xf32>
    %205 = vector.broadcast %204 : vector<16x1xf32> to vector<16x16xf32>
    %206 = arith.subf %202, %205 : vector<16x16xf32>
    %207 = math.exp %206 : vector<16x16xf32>
    %cst_72 = arith.constant dense<0.000000e+00> : vector<16xf32>
    %208 = vector.multi_reduction <add>, %207, %cst_72 [1] : vector<16x16xf32> to vector<16xf32>
    %209 = vector.shape_cast %208 : vector<16xf32> to vector<16x1xf32>
    %210 = tpu.reciprocal %209 {approx = true} : vector<16x1xf32> -> vector<16x1xf32>
    %211 = vector.broadcast %210 : vector<16x1xf32> to vector<16x16xf32>
    %212 = arith.mulf %207, %211 : vector<16x16xf32>
    %213 = vector.broadcast %41 : vector<1x32xf32> to vector<16x32xf32>
    %214 = arith.mulf %196, %213 : vector<16x32xf32>
    %cst_73 = arith.constant dense<0.000000e+00> : vector<16x32xf32>
    %215 = tpu.matmul %212, %214, %cst_73 {dimension_numbers = #tpu.dot_dimension_numbers<[1], [0], [0], [1], [0, 0, 1, 1], [], []>} : vector<16x16xf32>, vector<16x32xf32>, vector<16x32xf32> -> vector<16x32xf32>
    %216 = vector.broadcast %48 : vector<1x32xf32> to vector<16x32xf32>
    %217 = arith.mulf %186, %216 : vector<16x32xf32>
    %cst_74 = arith.constant dense<0.000000e+00> : vector<16x16xf32>
    %218 = tpu.matmul %217, %191, %cst_74 {dimension_numbers = #tpu.dot_dimension_numbers<[1], [1], [0], [0], [0, 0, 1, 0], [], []>} : vector<16x32xf32>, vector<16x32xf32>, vector<16x16xf32> -> vector<16x16xf32>
    %cst_75 = arith.constant 2.500000e-01 : f32
    %219 = vector.broadcast %cst_75 : f32 to vector<16x16xf32>
    %220 = arith.mulf %218, %219 : vector<16x16xf32>
    %221 = arith.addf %220, %49 : vector<16x16xf32>
    %cst_76 = arith.constant dense<0xFF800000> : vector<16xf32>
    %222 = vector.multi_reduction <maximumf>, %221, %cst_76 [1] : vector<16x16xf32> to vector<16xf32>
    %223 = vector.shape_cast %222 : vector<16xf32> to vector<16x1xf32>
    %224 = vector.broadcast %223 : vector<16x1xf32> to vector<16x16xf32>
    %225 = arith.subf %221, %224 : vector<16x16xf32>
    %226 = math.exp %225 : vector<16x16xf32>
    %cst_77 = arith.constant dense<0.000000e+00> : vector<16xf32>
    %227 = vector.multi_reduction <add>, %226, %cst_77 [1] : vector<16x16xf32> to vector<16xf32>
    %228 = vector.shape_cast %227 : vector<16xf32> to vector<16x1xf32>
    %229 = tpu.reciprocal %228 {approx = true} : vector<16x1xf32> -> vector<16x1xf32>
    %230 = vector.broadcast %229 : vector<16x1xf32> to vector<16x16xf32>
    %231 = arith.mulf %226, %230 : vector<16x16xf32>
    %232 = vector.broadcast %48 : vector<1x32xf32> to vector<16x32xf32>
    %233 = arith.mulf %196, %232 : vector<16x32xf32>
    %cst_78 = arith.constant dense<0.000000e+00> : vector<16x32xf32>
    %234 = tpu.matmul %231, %233, %cst_78 {dimension_numbers = #tpu.dot_dimension_numbers<[1], [0], [0], [1], [0, 0, 1, 1], [], []>} : vector<16x16xf32>, vector<16x32xf32>, vector<16x32xf32> -> vector<16x32xf32>
    %235 = arith.addf %215, %234 : vector<16x32xf32>
    %c488 = arith.constant 488 : index
    %c0_79 = arith.constant 0 : index
    %236 = vector.load %arg2[%c488, %c0_79] : memref<704x64xf32, #tpu.memory_space<vmem>>, vector<32x32xf32>
    %cst_80 = arith.constant dense<0.000000e+00> : vector<16x32xf32>
    %237 = tpu.matmul %235, %236, %cst_80 {dimension_numbers = #tpu.dot_dimension_numbers<[1], [0], [0], [1], [0, 0, 1, 1], [], []>} : vector<16x32xf32>, vector<32x32xf32>, vector<16x32xf32> -> vector<16x32xf32>
    %c619 = arith.constant 619 : index
    %c0_81 = arith.constant 0 : index
    %238 = vector.load %arg2[%c619, %c0_81] : memref<704x64xf32, #tpu.memory_space<vmem>>, vector<1x32xf32>
    %239 = vector.broadcast %238 : vector<1x32xf32> to vector<16x32xf32>
    %240 = arith.addf %237, %239 : vector<16x32xf32>
    %241 = arith.addf %240, %181 : vector<16x32xf32>
    %c620 = arith.constant 620 : index
    %c0_82 = arith.constant 0 : index
    %242 = vector.load %arg2[%c620, %c0_82] : memref<704x64xf32, #tpu.memory_space<vmem>>, vector<1x32xf32>
    %c621 = arith.constant 621 : index
    %c0_83 = arith.constant 0 : index
    %243 = vector.load %arg2[%c621, %c0_83] : memref<704x64xf32, #tpu.memory_space<vmem>>, vector<1x32xf32>
    %cst_84 = arith.constant dense<0.000000e+00> : vector<16xf32>
    %244 = vector.multi_reduction <add>, %241, %cst_84 [1] : vector<16x32xf32> to vector<16xf32>
    %245 = vector.shape_cast %244 : vector<16xf32> to vector<16x1xf32>
    %cst_85 = arith.constant 3.200000e+01 : f32
    %246 = vector.broadcast %cst_85 : f32 to vector<16x1xf32>
    %247 = arith.divf %245, %246 : vector<16x1xf32>
    %248 = arith.mulf %241, %241 : vector<16x32xf32>
    %cst_86 = arith.constant dense<0.000000e+00> : vector<16xf32>
    %249 = vector.multi_reduction <add>, %248, %cst_86 [1] : vector<16x32xf32> to vector<16xf32>
    %250 = vector.shape_cast %249 : vector<16xf32> to vector<16x1xf32>
    %cst_87 = arith.constant 3.200000e+01 : f32
    %251 = vector.broadcast %cst_87 : f32 to vector<16x1xf32>
    %252 = arith.divf %250, %251 : vector<16x1xf32>
    %253 = arith.mulf %247, %247 : vector<16x1xf32>
    %254 = arith.subf %252, %253 : vector<16x1xf32>
    %255 = vector.broadcast %247 : vector<16x1xf32> to vector<16x32xf32>
    %256 = arith.subf %241, %255 : vector<16x32xf32>
    %cst_88 = arith.constant 9.99999996E-13 : f32
    %257 = vector.broadcast %cst_88 : f32 to vector<16x1xf32>
    %258 = arith.addf %254, %257 : vector<16x1xf32>
    %259 = math.rsqrt %258 : vector<16x1xf32>
    %260 = vector.broadcast %259 : vector<16x1xf32> to vector<16x32xf32>
    %261 = arith.mulf %256, %260 : vector<16x32xf32>
    %262 = vector.broadcast %242 : vector<1x32xf32> to vector<16x32xf32>
    %263 = arith.mulf %261, %262 : vector<16x32xf32>
    %264 = vector.broadcast %243 : vector<1x32xf32> to vector<16x32xf32>
    %265 = arith.addf %263, %264 : vector<16x32xf32>
    %c520 = arith.constant 520 : index
    %c0_89 = arith.constant 0 : index
    %266 = vector.load %arg2[%c520, %c0_89] : memref<704x64xf32, #tpu.memory_space<vmem>>, vector<32x64xf32>
    %cst_90 = arith.constant dense<0.000000e+00> : vector<16x64xf32>
    %267 = tpu.matmul %265, %266, %cst_90 {dimension_numbers = #tpu.dot_dimension_numbers<[1], [0], [0], [1], [0, 0, 1, 1], [], []>} : vector<16x32xf32>, vector<32x64xf32>, vector<16x64xf32> -> vector<16x64xf32>
    %c622 = arith.constant 622 : index
    %c0_91 = arith.constant 0 : index
    %268 = vector.load %arg2[%c622, %c0_91] : memref<704x64xf32, #tpu.memory_space<vmem>>, vector<1x64xf32>
    %269 = vector.broadcast %268 : vector<1x64xf32> to vector<16x64xf32>
    %270 = arith.addf %267, %269 : vector<16x64xf32>
    %cst_92 = arith.constant 5.000000e-01 : f32
    %271 = vector.broadcast %cst_92 : f32 to vector<16x64xf32>
    %272 = arith.mulf %271, %270 : vector<16x64xf32>
    %cst_93 = arith.constant 4.471500e-02 : f32
    %273 = vector.broadcast %cst_93 : f32 to vector<16x64xf32>
    %274 = arith.mulf %273, %270 : vector<16x64xf32>
    %275 = arith.mulf %274, %270 : vector<16x64xf32>
    %276 = arith.mulf %275, %270 : vector<16x64xf32>
    %277 = arith.addf %270, %276 : vector<16x64xf32>
    %cst_94 = arith.constant 0.797884583 : f32
    %278 = vector.broadcast %cst_94 : f32 to vector<16x64xf32>
    %279 = arith.mulf %278, %277 : vector<16x64xf32>
    %280 = math.tanh %279 : vector<16x64xf32>
    %cst_95 = arith.constant 1.000000e+00 : f32
    %281 = vector.broadcast %cst_95 : f32 to vector<16x64xf32>
    %282 = arith.addf %281, %280 : vector<16x64xf32>
    %283 = arith.mulf %272, %282 : vector<16x64xf32>
    %c552 = arith.constant 552 : index
    %c0_96 = arith.constant 0 : index
    %284 = vector.load %arg2[%c552, %c0_96] : memref<704x64xf32, #tpu.memory_space<vmem>>, vector<64x32xf32>
    %cst_97 = arith.constant dense<0.000000e+00> : vector<16x32xf32>
    %285 = tpu.matmul %283, %284, %cst_97 {dimension_numbers = #tpu.dot_dimension_numbers<[1], [0], [0], [1], [0, 0, 1, 1], [], []>} : vector<16x64xf32>, vector<64x32xf32>, vector<16x32xf32> -> vector<16x32xf32>
    %c623 = arith.constant 623 : index
    %c0_98 = arith.constant 0 : index
    %286 = vector.load %arg2[%c623, %c0_98] : memref<704x64xf32, #tpu.memory_space<vmem>>, vector<1x32xf32>
    %287 = vector.broadcast %286 : vector<1x32xf32> to vector<16x32xf32>
    %288 = arith.addf %285, %287 : vector<16x32xf32>
    %289 = arith.addf %288, %265 : vector<16x32xf32>
    %c624 = arith.constant 624 : index
    %c0_99 = arith.constant 0 : index
    %290 = vector.load %arg2[%c624, %c0_99] : memref<704x64xf32, #tpu.memory_space<vmem>>, vector<1x32xf32>
    %c625 = arith.constant 625 : index
    %c0_100 = arith.constant 0 : index
    %291 = vector.load %arg2[%c625, %c0_100] : memref<704x64xf32, #tpu.memory_space<vmem>>, vector<1x32xf32>
    %cst_101 = arith.constant dense<0.000000e+00> : vector<16xf32>
    %292 = vector.multi_reduction <add>, %289, %cst_101 [1] : vector<16x32xf32> to vector<16xf32>
    %293 = vector.shape_cast %292 : vector<16xf32> to vector<16x1xf32>
    %cst_102 = arith.constant 3.200000e+01 : f32
    %294 = vector.broadcast %cst_102 : f32 to vector<16x1xf32>
    %295 = arith.divf %293, %294 : vector<16x1xf32>
    %296 = arith.mulf %289, %289 : vector<16x32xf32>
    %cst_103 = arith.constant dense<0.000000e+00> : vector<16xf32>
    %297 = vector.multi_reduction <add>, %296, %cst_103 [1] : vector<16x32xf32> to vector<16xf32>
    %298 = vector.shape_cast %297 : vector<16xf32> to vector<16x1xf32>
    %cst_104 = arith.constant 3.200000e+01 : f32
    %299 = vector.broadcast %cst_104 : f32 to vector<16x1xf32>
    %300 = arith.divf %298, %299 : vector<16x1xf32>
    %301 = arith.mulf %295, %295 : vector<16x1xf32>
    %302 = arith.subf %300, %301 : vector<16x1xf32>
    %303 = vector.broadcast %295 : vector<16x1xf32> to vector<16x32xf32>
    %304 = arith.subf %289, %303 : vector<16x32xf32>
    %cst_105 = arith.constant 9.99999996E-13 : f32
    %305 = vector.broadcast %cst_105 : f32 to vector<16x1xf32>
    %306 = arith.addf %302, %305 : vector<16x1xf32>
    %307 = math.rsqrt %306 : vector<16x1xf32>
    %308 = vector.broadcast %307 : vector<16x1xf32> to vector<16x32xf32>
    %309 = arith.mulf %304, %308 : vector<16x32xf32>
    %310 = vector.broadcast %290 : vector<1x32xf32> to vector<16x32xf32>
    %311 = arith.mulf %309, %310 : vector<16x32xf32>
    %312 = vector.broadcast %291 : vector<1x32xf32> to vector<16x32xf32>
    %313 = arith.addf %311, %312 : vector<16x32xf32>
    %314 = tpu.iota {dimensions = array<i32: 1>} : vector<2x16xi32>
    %315 = tpu.iota {dimensions = array<i32: 0>} : vector<2x16xi32>
    %c8_i32 = arith.constant 8 : i32
    %316 = vector.broadcast %c8_i32 : i32 to vector<2x16xi32>
    %317 = arith.muli %315, %316 : vector<2x16xi32>
    %318 = arith.cmpi eq, %314, %317 : vector<2x16xi32>
    %319 = arith.extui %318 : vector<2x16xi1> to vector<2x16xi32>
    %320 = arith.sitofp %319 : vector<2x16xi32> to vector<2x16xf32>
    %cst_106 = arith.constant dense<0.000000e+00> : vector<2x32xf32>
    %321 = tpu.matmul %320, %313, %cst_106 {dimension_numbers = #tpu.dot_dimension_numbers<[1], [0], [0], [1], [0, 0, 1, 1], [], []>} : vector<2x16xf32>, vector<16x32xf32>, vector<2x32xf32> -> vector<2x32xf32>
    %c632 = arith.constant 632 : index
    %c0_107 = arith.constant 0 : index
    %322 = vector.load %arg2[%c632, %c0_107] : memref<704x64xf32, #tpu.memory_space<vmem>>, vector<32x32xf32>
    %cst_108 = arith.constant dense<0.000000e+00> : vector<2x32xf32>
    %323 = tpu.matmul %321, %322, %cst_108 {dimension_numbers = #tpu.dot_dimension_numbers<[1], [0], [0], [1], [0, 0, 1, 1], [], []>} : vector<2x32xf32>, vector<32x32xf32>, vector<2x32xf32> -> vector<2x32xf32>
    %c696 = arith.constant 696 : index
    %c0_109 = arith.constant 0 : index
    %324 = vector.load %arg2[%c696, %c0_109] : memref<704x64xf32, #tpu.memory_space<vmem>>, vector<1x32xf32>
    %325 = vector.broadcast %324 : vector<1x32xf32> to vector<2x32xf32>
    %326 = arith.addf %323, %325 : vector<2x32xf32>
    %327 = math.tanh %326 : vector<2x32xf32>
    %c664 = arith.constant 664 : index
    %c0_110 = arith.constant 0 : index
    %328 = vector.load %arg2[%c664, %c0_110] : memref<704x64xf32, #tpu.memory_space<vmem>>, vector<32x32xf32>
    %cst_111 = arith.constant dense<0.000000e+00> : vector<2x32xf32>
    %329 = tpu.matmul %327, %328, %cst_111 {dimension_numbers = #tpu.dot_dimension_numbers<[1], [0], [0], [1], [0, 0, 1, 1], [], []>} : vector<2x32xf32>, vector<32x32xf32>, vector<2x32xf32> -> vector<2x32xf32>
    %330 = vector.extract_strided_slice %329 {offsets = [0, 0], sizes = [2, 2], strides = [1, 1]} : vector<2x32xf32> to vector<2x2xf32>
    %c697 = arith.constant 697 : index
    %c0_112 = arith.constant 0 : index
    %331 = vector.load %arg2[%c697, %c0_112] : memref<704x64xf32, #tpu.memory_space<vmem>>, vector<1x2xf32>
    %332 = vector.broadcast %331 : vector<1x2xf32> to vector<2x2xf32>
    %333 = arith.addf %330, %332 : vector<2x2xf32>
    %c0_113 = arith.constant 0 : index
    %c0_114 = arith.constant 0 : index
    %334 = vector.load %arg3[%c0_113, %c0_114] : memref<2x2xf32, #tpu.memory_space<vmem>>, vector<2x2xf32>
    tpu.vector_store %arg3[%c0_113, %c0_114], %333 {strides = array<i32>} : memref<2x2xf32, #tpu.memory_space<vmem>>, vector<2x2xf32>,
    return
  }
}

</mosaic_0001>

<llo_original>
// kernel: eq.8
$region0: #{eq.8}
  %s0 = inlined_call_operand.vmem [shape: s32[2,8], index: 0, kind: input, shape index: {}]
  %s1 = inlined_call_operand.vmem [shape: s32[16], index: 1, kind: output, shape index: {}]
  $region1: #{eq.8} parent=0
    #allocation0 [shape = 'u8[4096]{0}', space=vmem, size = 0x1000, scoped, tag = 'scoped mem for output reshape']
    #allocation1 [shape = 'u8[4096]{0}', space=vmem, size = 0x1000, scoped, tag = 'scoped mem for input reshape']
    %s3 = sshllo.u32 0, 2
    %v4 = vld [vmem:[%s0] sm:%s3]
    %5 = vst [vmem:[#allocation1] sm:%s3] %v4
    %v6 = vld [vmem:[#allocation1] sm:$0x1]
    %vm7 = vcmask 64512
    %8 = vst.msk [vmem:[#allocation0] sm:$0x1] %vm7, %v6
    %s9 = scalar_lea.vmem [#allocation1], 1
    %v10 = vld [vmem:[%s9] sm:$0x1]
    %11 = vrot.lane.b32.xlu0 %v10, 8
    %v12 = vpop.permute.xlu0 %11
    %vm13 = vcmask 130112
    %14 = vst.msk [vmem:[#allocation0] sm:$0x1] %vm13, %v12
    %s16 = sshllo.u32 0, 1
    %v18 = vld [vmem:[#allocation0] sm:%s16]
    %s19 = sshllo.u32 0, 1
    %20 = vst [vmem:[%s1] sm:%s19] %v18

// kernel: transformer_classifier_forward.1
$region0: #{transformer_classifier_forward.1}
  #allocation0 [shape = 'u32[]', space=smem, size = 0x4, offset = 0x4, fixed_abs, tag = 'smem constant byte address 0x4 - core index']
  #allocation1 [shape = 'u32[144,128]{1,0:T(1,128)}', space=vmem, size = 0x12000, scoped, tag = 'internal scratch']
  %s0 = inlined_call_operand.vmem [shape: s32[16,1], index: 0, kind: input, shape index: {}]
  %s1 = inlined_call_operand.vmem [shape: f32[16,16], index: 1, kind: input, shape index: {}]
  %s2 = inlined_call_operand.vmem [shape: f32[704,64], index: 2, kind: input, shape index: {}]
  %s3 = inlined_call_operand.hbm [shape: f32[2,2], index: 3, kind: output, shape index: {}]
  %s4 = sld [smem:[#allocation0]]
  $region22: #{transformer_classifier_forward.1} parent=0
    _
  %s6 = ssub.s32 1, %s4
  %s7 = scalar_select 0, %s6, %s4
  $region1: #{transformer_classifier_forward.1} parent=0
    #allocation2 [shape = 'u8[1024]{0}', space=vmem, size = 0x400, scoped, tag = 'output window, operand 0, single buffered']
    #allocation3 [shape = 's32[1]{0}', space=sflag, size = 0x4, scoped, tag = 'scoped memory for transformer_classifier_forward.1']
    %8 = vsyncpa [#allocation3], 0
    // Predicated region
    $region2: #{transformer_classifier_forward.1} parent=1 // pred_check
      _
    $region3: #{transformer_classifier_forward.1} parent=1 // pred_check_branch
      %10 = sbr.rel (0) target = $region5
    $region4: #{transformer_classifier_forward.1} parent=1 // pred_region
      _
    $region5: #{transformer_classifier_forward.1} parent=1 // pred_fallthru
      _
    // Predicated region
    $region6: #{transformer_classifier_forward.1} parent=1 // pred_check
      _
    $region7: #{transformer_classifier_forward.1} parent=1 // pred_check_branch
      %12 = sbr.rel (0) target = $region9
    $region8: #{transformer_classifier_forward.1} parent=1 // pred_region
      _
    $region9: #{transformer_classifier_forward.1} parent=1 // pred_fallthru
      _
    // Predicated region
    $region10: #{transformer_classifier_forward.1} parent=1 // pred_check
      _
    $region11: #{transformer_classifier_forward.1} parent=1 // pred_check_branch
      %14 = sbr.rel (0) target = $region13
    $region12: #{transformer_classifier_forward.1} parent=1 // pred_region
      _
    $region13: #{transformer_classifier_forward.1} parent=1 // pred_fallthru
      _
    %v15 = vld [vmem:[%s0] sm:$0xff]
    %v16 = vld [vmem:[%s0 + $0x8] sm:$0xff]
    %v17 = vlaneseq
    %v18 = vand.u32 %v17, 127
    %19 = vset.pattern.permute.xlu0 0
    %20 = vperm.xlu0 %19, %v15
    %v21 = vpop.permute.xlu0 %20
    %22 = vset.pattern.permute.xlu0 0
    %23 = vperm.xlu0 %22, %v16
    %v24 = vpop.permute.xlu0 %23
    %vm25 = vcmp.eq.s32.totalorder %v21, %v18
    %vm26 = vcmp.eq.s32.totalorder %v24, %v18
    %v27 = vsel %vm25, 1, 0
    %v28 = vsel %vm26, 1, 0
    %v29 = vcvt.s32.f32 %v27
    %v30 = vcvt.s32.f32 %v28
    %v31 = vld [vmem:[%s2] sm:$0xff]
    %v32 = vld [vmem:[%s2 + $0x8] sm:$0xff]
    %v33 = vld [vmem:[%s2 + $0x10] sm:$0xff]
    %v34 = vld [vmem:[%s2 + $0x18] sm:$0xff]
    %v35 = vld [vmem:[%s2 + $0x20] sm:$0xff]
    %v36 = vld [vmem:[%s2 + $0x28] sm:$0xff]
    %v37 = vld [vmem:[%s2 + $0x30] sm:$0xff]
    %v38 = vld [vmem:[%s2 + $0x38] sm:$0xff]
    %v39 = vld [vmem:[%s2 + $0x40] sm:$0xff]
    %v40 = vld [vmem:[%s2 + $0x48] sm:$0xff]
    %v41 = vld [vmem:[%s2 + $0x50] sm:$0xff]
    %v42 = vld [vmem:[%s2 + $0x58] sm:$0xff]
    %v43 = vld [vmem:[%s2 + $0x60] sm:$0xff]
    %v44 = vld [vmem:[%s2 + $0x68] sm:$0xff]
    %v45 = vld [vmem:[%s2 + $0x70] sm:$0xff]
    %v46 = vld [vmem:[%s2 + $0x78] sm:$0xff]
    %v47 = vld [vmem:[%s2 + $0x80] sm:$0xff]
    %v48 = vld [vmem:[%s2 + $0x88] sm:$0xff]
    %49 = vmatprep.subr.mxu0 0.0
    %50 = vmatpush1.msra.mxu0 %v31
    %51 = vmatprep.subr.mxu0 0.0
    %52 = vmatpush1.msra.mxu0 %v32
    %53 = vmatprep.subr.mxu0 0.0
    %54 = vmatpush1.msra.mxu0 %v33
    %55 = vmatprep.subr.mxu0 0.0
    %56 = vmatpush1.msra.mxu0 %v34
    %57 = vmatprep.subr.mxu0 0.0
    %58 = vmatpush1.msra.mxu0 %v35
    %59 = vmatprep.subr.mxu0 0.0
    %60 = vmatpush1.msra.mxu0 %v36
    %61 = vmatprep.subr.mxu0 0.0
    %62 = vmatpush1.msra.mxu0 %v37
    %63 = vmatprep.subr.mxu0 0.0
    %64 = vmatpush1.msra.mxu0 %v38
    %65 = vmatprep.subr.mxu0 0.0
    %66 = vmatpush1.msra.mxu0 %v39
    %67 = vmatprep.subr.mxu0 0.0
    %68 = vmatpush1.msra.mxu0 %v40
    %69 = vmatprep.subr.mxu0 0.0
    %70 = vmatpush1.msra.mxu0 %v41
    %71 = vmatprep.subr.mxu0 0.0
    %72 = vmatpush1.msra.mxu0 %v42
    %73 = vmatprep.subr.mxu0 0.0
    %74 = vmatpush1.msra.mxu0 %v43
    %75 = vmatprep.subr.mxu0 0.0
    %76 = vmatpush1.msra.mxu0 %v44
    %77 = vmatprep.subr.mxu0 0.0
    %78 = vmatpush1.msra.mxu0 %v45
    %79 = vmatprep.subr.mxu0 0.0
    %80 = vmatpush1.msra.mxu0 %v46
    %81 = vmatprep.subr.mxu0 0.0
    %82 = vmatpush1.msra.mxu0 0.0
    %83 = vmatprep.subr.mxu0 0.0
    %84 = vmatpush1.msra.mxu0 0.0
    %85 = vmatprep.subr.mxu0 0.0
    %86 = vmatpush1.msra.mxu0 0.0
    %87 = vmatprep.subr.mxu0 0.0
    %88 = vmatpush1.msra.mxu0 0.0
    %89 = vmatprep.subr.mxu0 0.0
    %90 = vmatpush1.msra.mxu0 0.0
    %91 = vmatprep.subr.mxu0 0.0
    %92 = vmatpush1.msra.mxu0 0.0
    %93 = vmatprep.subr.mxu0 0.0
    %94 = vmatpush1.msra.mxu0 0.0
    %95 = vmatprep.subr.mxu0 0.0
    %96 = vmatpush1.msra.mxu0 0.0
    %97 = vmatprep.subr.mxu0 0.0
    %98 = vmatpush1.msra.mxu0 0.0
    %99 = vmatprep.subr.mxu0 0.0
    %100 = vmatpush1.msra.mxu0 0.0
    %101 = vmatprep.subr.mxu0 0.0
    %102 = vmatpush1.msra.mxu0 0.0
    %103 = vmatprep.subr.mxu0 0.0
    %104 = vmatpush1.msra.mxu0 0.0
    %105 = vmatprep.subr.mxu0 0.0
    %106 = vmatpush1.msra.mxu0 0.0
    %107 = vmatprep.subr.mxu0 0.0
    %108 = vmatpush1.msra.mxu0 0.0
    %109 = vmatprep.subr.mxu0 0.0
    %110 = vmatpush1.msra.mxu0 0.0
    %111 = vmatprep.subr.mxu0 0.0
    %112 = vmatpush1.msra.mxu0 0.0
    %113 = vmatprep.mubr.f32.mxu0 0.0
    %114 = vmatmul.mubr.f32.gmra.mrb[0].mxu0 %v29
    %v115 = vpop.f32.mrb[0].mxu0
    %v116 = vadd.f32 %v47, %v115
    %v117 = vpop.f32.mrb[0].mxu0
    %118 = vmatprep.mubr.f32.mxu0 0.0
    %119 = vmatmul.mubr.f32.gmra.mrb[0].mxu0 %v30
    %v120 = vpop.f32.mrb[0].mxu0
    %v121 = vadd.f32 %v48, %v120
    %v122 = vpop.f32.mrb[0].mxu0
    %123 = vdwg.mxu0
    %v124 = vld [vmem:[%s2 + $0x90] sm:$0x1]
    %v125 = vld [vmem:[%s2 + $0x91] sm:$0x1]
    %vm126 = vcmask 261120
    %v127 = vsel %vm126, %v116, 0.0
    %128 = vadd.xlane.f32.xlu0 %v127
    %v129 = vpop.xlane.xlu0 %128
    %v130 = vsel %vm126, %v121, 0.0
    %131 = vadd.xlane.f32.xlu0 %v130
    %v132 = vpop.xlane.xlu0 %131
    %v133 = vrcp.pop 32.0
    %v134 = vmul.f32 %v129, %v133
    %v135 = vmul.f32 %v132, %v133
    %v136 = vmul.f32 %v116, %v116
    %v137 = vmul.f32 %v121, %v121
    %v138 = vsel %vm126, %v136, 0.0
    %139 = vadd.xlane.f32.xlu0 %v138
    %v140 = vpop.xlane.xlu0 %139
    %v141 = vsel %vm126, %v137, 0.0
    %142 = vadd.xlane.f32.xlu0 %v141
    %v143 = vpop.xlane.xlu0 %142
    %v144 = vmul.f32 %v140, %v133
    %v145 = vmul.f32 %v143, %v133
    %v146 = vmul.f32 %v134, %v134
    %v147 = vmul.f32 %v135, %v135
    %v148 = vsub.f32 %v144, %v146
    %v149 = vsub.f32 %v145, %v147
    %v150 = vsub.f32 %v116, %v134
    %v151 = vsub.f32 %v121, %v135
    %v152 = vadd.f32 %v148, 1e-12
    %v153 = vadd.f32 %v149, 1e-12
    %v154 = vrsqrt.pop %v152
    %v155 = vrsqrt.pop %v153
    %v156 = vmul.f32 %v150, %v154
    %v157 = vmul.f32 %v151, %v155
    %v158 = vlaneseq
    %v159 = vshrl.u32 %v158, 7
    %v160 = vsub.s32 0, %v159
    %v161 = vrot.slane %v124, %v160
    %v162 = vmul.f32 %v156, %v161
    %v163 = vmul.f32 %v157, %v161
    %v164 = vlaneseq
    %v165 = vshrl.u32 %v164, 7
    %v166 = vsub.s32 0, %v165
    %v167 = vrot.slane %v125, %v166
    %v168 = vadd.f32 %v162, %v167
    %v169 = vadd.f32 %v163, %v167
    %vm170 = vcmp.ge.s32.totalorder %v18, 0
    %vm171 = vcmp.lt.s32.totalorder %v18, 16
    %vm172 = vmand %vm170, %vm171
    %v173 = vsel %vm172, 1, 0
    %v174 = vcvt.s32.f32 %v173
    %vm175 = vcmp.ge.s32.totalorder %v18, 16
    %vm176 = vcmp.lt.s32.totalorder %v18, 32
    %vm177 = vmand %vm175, %vm176
    %v178 = vsel %vm177, 1, 0
    %v179 = vcvt.s32.f32 %v178
    %v180 = vld [vmem:[%s1] sm:$0xff]
    %v181 = vld [vmem:[%s1 + $0x8] sm:$0xff]
    %v182 = vld [vmem:[%s2 + $0x98] sm:$0xff]
    %v183 = vld [vmem:[%s2 + $0xa0] sm:$0xff]
    %v184 = vld [vmem:[%s2 + $0xa8] sm:$0xff]
    %v185 = vld [vmem:[%s2 + $0xb0] sm:$0xff]
    %v186 = vld [vmem:[%s2 + $0x178] sm:$0x1]
    %v187 = vlaneseq
    %v188 = vshrl.u32 %v187, 7
    %v189 = vsub.s32 0, %v188
    %v190 = vrot.slane %v186, %v189
    %v192 = vsel %vm126, %v168, 0
    %v195 = vsel %vm126, %v169, 0
    %197 = vmatprep.subr.mxu0 0.0
    %198 = vmatpush1.msra.mxu0 %v182
    %199 = vmatprep.subr.mxu0 0.0
    %200 = vmatpush1.msra.mxu0 %v183
    %201 = vmatprep.subr.mxu0 0.0
    %202 = vmatpush1.msra.mxu0 %v184
    %203 = vmatprep.subr.mxu0 0.0
    %204 = vmatpush1.msra.mxu0 %v185
    %205 = vmatprep.subr.mxu0 0.0
    %206 = vmatpush1.msra.mxu0 0.0
    %207 = vmatprep.subr.mxu0 0.0
    %208 = vmatpush1.msra.mxu0 0.0
    %209 = vmatprep.subr.mxu0 0.0
    %210 = vmatpush1.msra.mxu0 0.0
    %211 = vmatprep.subr.mxu0 0.0
    %212 = vmatpush1.msra.mxu0 0.0
    %213 = vmatprep.subr.mxu0 0.0
    %214 = vmatpush1.msra.mxu0 0.0
    %215 = vmatprep.subr.mxu0 0.0
    %216 = vmatpush1.msra.mxu0 0.0
    %217 = vmatprep.subr.mxu0 0.0
    %218 = vmatpush1.msra.mxu0 0.0
    %219 = vmatprep.subr.mxu0 0.0
    %220 = vmatpush1.msra.mxu0 0.0
    %221 = vmatprep.subr.mxu0 0.0
    %222 = vmatpush1.msra.mxu0 0.0
    %223 = vmatprep.subr.mxu0 0.0
    %224 = vmatpush1.msra.mxu0 0.0
    %225 = vmatprep.subr.mxu0 0.0
    %226 = vmatpush1.msra.mxu0 0.0
    %227 = vmatprep.subr.mxu0 0.0
    %228 = vmatpush1.msra.mxu0 0.0
    %229 = vmatprep.subr.mxu0 0.0
    %230 = vmatpush1.msra.mxu0 0.0
    %231 = vmatprep.subr.mxu0 0.0
    %232 = vmatpush1.msra.mxu0 0.0
    %233 = vmatprep.subr.mxu0 0.0
    %234 = vmatpush1.msra.mxu0 0.0
    %235 = vmatprep.subr.mxu0 0.0
    %236 = vmatpush1.msra.mxu0 0.0
    %237 = vmatprep.subr.mxu0 0.0
    %238 = vmatpush1.msra.mxu0 0.0
    %239 = vmatprep.subr.mxu0 0.0
    %240 = vmatpush1.msra.mxu0 0.0
    %241 = vmatprep.subr.mxu0 0.0
    %242 = vmatpush1.msra.mxu0 0.0
    %243 = vmatprep.subr.mxu0 0.0
    %244 = vmatpush1.msra.mxu0 0.0
    %245 = vmatprep.subr.mxu0 0.0
    %246 = vmatpush1.msra.mxu0 0.0
    %247 = vmatprep.subr.mxu0 0.0
    %248 = vmatpush1.msra.mxu0 0.0
    %249 = vmatprep.subr.mxu0 0.0
    %250 = vmatpush1.msra.mxu0 0.0
    %251 = vmatprep.subr.mxu0 0.0
    %252 = vmatpush1.msra.mxu0 0.0
    %253 = vmatprep.subr.mxu0 0.0
    %254 = vmatpush1.msra.mxu0 0.0
    %255 = vmatprep.subr.mxu0 0.0
    %256 = vmatpush1.msra.mxu0 0.0
    %257 = vmatprep.subr.mxu0 0.0
    %258 = vmatpush1.msra.mxu0 0.0
    %259 = vmatprep.subr.mxu0 0.0
    %260 = vmatpush1.msra.mxu0 0.0
    %261 = vmatprep.mubr.f32.mxu0 0.0
    %262 = vmatmul.mubr.f32.gmra.mrb[0].mxu0 %v192
    %v263 = vpop.f32.mrb[0].mxu0
    %v264 = vadd.f32 %v190, %v263
    %v265 = vpop.f32.mrb[0].mxu0
    %266 = vmatprep.mubr.f32.mxu0 0.0
    %267 = vmatmul.mubr.f32.gmra.mrb[0].mxu0 %v195
    %v268 = vpop.f32.mrb[0].mxu0
    %v269 = vadd.f32 %v190, %v268
    %v270 = vpop.f32.mrb[0].mxu0
    %271 = vdwg.mxu0
    %v272 = vld [vmem:[%s2 + $0xb8] sm:$0xff]
    %v273 = vld [vmem:[%s2 + $0xc0] sm:$0xff]
    %v274 = vld [vmem:[%s2 + $0xc8] sm:$0xff]
    %v275 = vld [vmem:[%s2 + $0xd0] sm:$0xff]
    %v276 = vld [vmem:[%s2 + $0x179] sm:$0x1]
    %v277 = vlaneseq
    %v278 = vshrl.u32 %v277, 7
    %v279 = vsub.s32 0, %v278
    %v280 = vrot.slane %v276, %v279
    %281 = vmatprep.subr.mxu0 0.0
    %282 = vmatpush1.msra.mxu0 %v272
    %283 = vmatprep.subr.mxu0 0.0
    %284 = vmatpush1.msra.mxu0 %v273
    %285 = vmatprep.subr.mxu0 0.0
    %286 = vmatpush1.msra.mxu0 %v274
    %287 = vmatprep.subr.mxu0 0.0
    %288 = vmatpush1.msra.mxu0 %v275
    %289 = vmatprep.subr.mxu0 0.0
    %290 = vmatpush1.msra.mxu0 0.0
    %291 = vmatprep.subr.mxu0 0.0
    %292 = vmatpush1.msra.mxu0 0.0
    %293 = vmatprep.subr.mxu0 0.0
    %294 = vmatpush1.msra.mxu0 0.0
    %295 = vmatprep.subr.mxu0 0.0
    %296 = vmatpush1.msra.mxu0 0.0
    %297 = vmatprep.subr.mxu0 0.0
    %298 = vmatpush1.msra.mxu0 0.0
    %299 = vmatprep.subr.mxu0 0.0
    %300 = vmatpush1.msra.mxu0 0.0
    %301 = vmatprep.subr.mxu0 0.0
    %302 = vmatpush1.msra.mxu0 0.0
    %303 = vmatprep.subr.mxu0 0.0
    %304 = vmatpush1.msra.mxu0 0.0
    %305 = vmatprep.subr.mxu0 0.0
    %306 = vmatpush1.msra.mxu0 0.0
    %307 = vmatprep.subr.mxu0 0.0
    %308 = vmatpush1.msra.mxu0 0.0
    %309 = vmatprep.subr.mxu0 0.0
    %310 = vmatpush1.msra.mxu0 0.0
    %311 = vmatprep.subr.mxu0 0.0
    %312 = vmatpush1.msra.mxu0 0.0
    %313 = vmatprep.subr.mxu0 0.0
    %314 = vmatpush1.msra.mxu0 0.0
    %315 = vmatprep.subr.mxu0 0.0
    %316 = vmatpush1.msra.mxu0 0.0
    %317 = vmatprep.subr.mxu0 0.0
    %318 = vmatpush1.msra.mxu0 0.0
    %319 = vmatprep.subr.mxu0 0.0
    %320 = vmatpush1.msra.mxu0 0.0
    %321 = vmatprep.subr.mxu0 0.0
    %322 = vmatpush1.msra.mxu0 0.0
    %323 = vmatprep.subr.mxu0 0.0
    %324 = vmatpush1.msra.mxu0 0.0
    %325 = vmatprep.subr.mxu0 0.0
    %326 = vmatpush1.msra.mxu0 0.0
    %327 = vmatprep.subr.mxu0 0.0
    %328 = vmatpush1.msra.mxu0 0.0
    %329 = vmatprep.subr.mxu0 0.0
    %330 = vmatpush1.msra.mxu0 0.0
    %331 = vmatprep.subr.mxu0 0.0
    %332 = vmatpush1.msra.mxu0 0.0
    %333 = vmatprep.subr.mxu0 0.0
    %334 = vmatpush1.msra.mxu0 0.0
    %335 = vmatprep.subr.mxu0 0.0
    %336 = vmatpush1.msra.mxu0 0.0
    %337 = vmatprep.subr.mxu0 0.0
    %338 = vmatpush1.msra.mxu0 0.0
    %339 = vmatprep.subr.mxu0 0.0
    %340 = vmatpush1.msra.mxu0 0.0
    %341 = vmatprep.subr.mxu0 0.0
    %342 = vmatpush1.msra.mxu0 0.0
    %343 = vmatprep.subr.mxu0 0.0
    %344 = vmatpush1.msra.mxu0 0.0
    %345 = vmatprep.mubr.f32.mxu0 0.0
    %346 = vmatmul.mubr.f32.gmra.mrb[0].mxu0 %v192
    %v347 = vpop.f32.mrb[0].mxu0
    %v348 = vadd.f32 %v280, %v347
    %v349 = vpop.f32.mrb[0].mxu0
    %350 = vmatprep.mubr.f32.mxu0 0.0
    %351 = vmatmul.mubr.f32.gmra.mrb[0].mxu0 %v195
    %v352 = vpop.f32.mrb[0].mxu0
    %v353 = vadd.f32 %v280, %v352
    %v354 = vpop.f32.mrb[0].mxu0
    %355 = vdwg.mxu0
    %v356 = vld [vmem:[%s2 + $0xd8] sm:$0xff]
    %v357 = vld [vmem:[%s2 + $0xe0] sm:$0xff]
    %v358 = vld [vmem:[%s2 + $0xe8] sm:$0xff]
    %v359 = vld [vmem:[%s2 + $0xf0] sm:$0xff]
    %v360 = vld [vmem:[%s2 + $0x17a] sm:$0x1]
    %v361 = vlaneseq
    %v362 = vshrl.u32 %v361, 7
    %v363 = vsub.s32 0, %v362
    %v364 = vrot.slane %v360, %v363
    %365 = vmatprep.subr.mxu0 0.0
    %366 = vmatpush1.msra.mxu0 %v356
    %367 = vmatprep.subr.mxu0 0.0
    %368 = vmatpush1.msra.mxu0 %v357
    %369 = vmatprep.subr.mxu0 0.0
    %370 = vmatpush1.msra.mxu0 %v358
    %371 = vmatprep.subr.mxu0 0.0
    %372 = vmatpush1.msra.mxu0 %v359
    %373 = vmatprep.subr.mxu0 0.0
    %374 = vmatpush1.msra.mxu0 0.0
    %375 = vmatprep.subr.mxu0 0.0
    %376 = vmatpush1.msra.mxu0 0.0
    %377 = vmatprep.subr.mxu0 0.0
    %378 = vmatpush1.msra.mxu0 0.0
    %379 = vmatprep.subr.mxu0 0.0
    %380 = vmatpush1.msra.mxu0 0.0
    %381 = vmatprep.subr.mxu0 0.0
    %382 = vmatpush1.msra.mxu0 0.0
    %383 = vmatprep.subr.mxu0 0.0
    %384 = vmatpush1.msra.mxu0 0.0
    %385 = vmatprep.subr.mxu0 0.0
    %386 = vmatpush1.msra.mxu0 0.0
    %387 = vmatprep.subr.mxu0 0.0
    %388 = vmatpush1.msra.mxu0 0.0
    %389 = vmatprep.subr.mxu0 0.0
    %390 = vmatpush1.msra.mxu0 0.0
    %391 = vmatprep.subr.mxu0 0.0
    %392 = vmatpush1.msra.mxu0 0.0
    %393 = vmatprep.subr.mxu0 0.0
    %394 = vmatpush1.msra.mxu0 0.0
    %395 = vmatprep.subr.mxu0 0.0
    %396 = vmatpush1.msra.mxu0 0.0
    %397 = vmatprep.subr.mxu0 0.0
    %398 = vmatpush1.msra.mxu0 0.0
    %399 = vmatprep.subr.mxu0 0.0
    %400 = vmatpush1.msra.mxu0 0.0
    %401 = vmatprep.subr.mxu0 0.0
    %402 = vmatpush1.msra.mxu0 0.0
    %403 = vmatprep.subr.mxu0 0.0
    %404 = vmatpush1.msra.mxu0 0.0
    %405 = vmatprep.subr.mxu0 0.0
    %406 = vmatpush1.msra.mxu0 0.0
    %407 = vmatprep.subr.mxu0 0.0
    %408 = vmatpush1.msra.mxu0 0.0
    %409 = vmatprep.subr.mxu0 0.0
    %410 = vmatpush1.msra.mxu0 0.0
    %411 = vmatprep.subr.mxu0 0.0
    %412 = vmatpush1.msra.mxu0 0.0
    %413 = vmatprep.subr.mxu0 0.0
    %414 = vmatpush1.msra.mxu0 0.0
    %415 = vmatprep.subr.mxu0 0.0
    %416 = vmatpush1.msra.mxu0 0.0
    %417 = vmatprep.subr.mxu0 0.0
    %418 = vmatpush1.msra.mxu0 0.0
    %419 = vmatprep.subr.mxu0 0.0
    %420 = vmatpush1.msra.mxu0 0.0
    %421 = vmatprep.subr.mxu0 0.0
    %422 = vmatpush1.msra.mxu0 0.0
    %423 = vmatprep.subr.mxu0 0.0
    %424 = vmatpush1.msra.mxu0 0.0
    %425 = vmatprep.subr.mxu0 0.0
    %426 = vmatpush1.msra.mxu0 0.0
    %427 = vmatprep.subr.mxu0 0.0
    %428 = vmatpush1.msra.mxu0 0.0
    %429 = vmatprep.mubr.f32.mxu0 0.0
    %430 = vmatmul.mubr.f32.gmra.mrb[0].mxu0 %v192
    %v431 = vpop.f32.mrb[0].mxu0
    %v432 = vadd.f32 %v364, %v431
    %v433 = vpop.f32.mrb[0].mxu0
    %434 = vmatprep.mubr.f32.mxu0 0.0
    %435 = vmatmul.mubr.f32.gmra.mrb[0].mxu0 %v195
    %v436 = vpop.f32.mrb[0].mxu0
    %v437 = vadd.f32 %v364, %v436
    %v438 = vpop.f32.mrb[0].mxu0
    %439 = vdwg.mxu0
    %v440 = vmul.f32 %v264, %v174
    %v441 = vmul.f32 %v269, %v174
    %v443 = vsel %vm126, %v440, 0
    %v446 = vsel %vm126, %v441, 0
    %v449 = vsel %vm126, %v348, 0
    %v452 = vsel %vm126, %v353, 0
    %454 = vmatprep.subr.mxu0 0.0
    %455 = vmatpush1.xpose.msra.mxu0 %v449
    %456 = vmatprep.subr.mxu0 0.0
    %457 = vmatpush1.xpose.msra.mxu0 %v452
    %458 = vmatprep.subr.mxu0 0.0
    %459 = vmatpush1.xpose.msra.mxu0 0.0
    %460 = vmatprep.subr.mxu0 0.0
    %461 = vmatpush1.xpose.msra.mxu0 0.0
    %462 = vmatprep.subr.mxu0 0.0
    %463 = vmatpush1.xpose.msra.mxu0 0.0
    %464 = vmatprep.subr.mxu0 0.0
    %465 = vmatpush1.xpose.msra.mxu0 0.0
    %466 = vmatprep.subr.mxu0 0.0
    %467 = vmatpush1.xpose.msra.mxu0 0.0
    %468 = vmatprep.subr.mxu0 0.0
    %469 = vmatpush1.xpose.msra.mxu0 0.0
    %470 = vmatprep.subr.mxu0 0.0
    %471 = vmatpush1.xpose.msra.mxu0 0.0
    %472 = vmatprep.subr.mxu0 0.0
    %473 = vmatpush1.xpose.msra.mxu0 0.0
    %474 = vmatprep.subr.mxu0 0.0
    %475 = vmatpush1.xpose.msra.mxu0 0.0
    %476 = vmatprep.subr.mxu0 0.0
    %477 = vmatpush1.xpose.msra.mxu0 0.0
    %478 = vmatprep.subr.mxu0 0.0
    %479 = vmatpush1.xpose.msra.mxu0 0.0
    %480 = vmatprep.subr.mxu0 0.0
    %481 = vmatpush1.xpose.msra.mxu0 0.0
    %482 = vmatprep.subr.mxu0 0.0
    %483 = vmatpush1.xpose.msra.mxu0 0.0
    %484 = vmatprep.subr.mxu0 0.0
    %485 = vmatpush1.xpose.msra.mxu0 0.0
    %486 = vmatprep.subr.mxu0 0.0
    %487 = vmatpush1.xpose.msra.mxu0 0.0
    %488 = vmatprep.subr.mxu0 0.0
    %489 = vmatpush1.xpose.msra.mxu0 0.0
    %490 = vmatprep.subr.mxu0 0.0
    %491 = vmatpush1.xpose.msra.mxu0 0.0
    %492 = vmatprep.subr.mxu0 0.0
    %493 = vmatpush1.xpose.msra.mxu0 0.0
    %494 = vmatprep.subr.mxu0 0.0
    %495 = vmatpush1.xpose.msra.mxu0 0.0
    %496 = vmatprep.subr.mxu0 0.0
    %497 = vmatpush1.xpose.msra.mxu0 0.0
    %498 = vmatprep.subr.mxu0 0.0
    %499 = vmatpush1.xpose.msra.mxu0 0.0
    %500 = vmatprep.subr.mxu0 0.0
    %501 = vmatpush1.xpose.msra.mxu0 0.0
    %502 = vmatprep.subr.mxu0 0.0
    %503 = vmatpush1.xpose.msra.mxu0 0.0
    %504 = vmatprep.subr.mxu0 0.0
    %505 = vmatpush1.xpose.msra.mxu0 0.0
    %506 = vmatprep.subr.mxu0 0.0
    %507 = vmatpush1.xpose.msra.mxu0 0.0
    %508 = vmatprep.subr.mxu0 0.0
    %509 = vmatpush1.xpose.msra.mxu0 0.0
    %510 = vmatprep.subr.mxu0 0.0
    %511 = vmatpush1.xpose.msra.mxu0 0.0
    %512 = vmatprep.subr.mxu0 0.0
    %513 = vmatpush1.xpose.msra.mxu0 0.0
    %514 = vmatprep.subr.mxu0 0.0
    %515 = vmatpush1.xpose.msra.mxu0 0.0
    %516 = vmatprep.subr.mxu0 0.0
    %517 = vmatpush1.xpose.msra.mxu0 0.0
    %518 = vmatprep.mubr.f32.mxu0 0.0
    %519 = vmatmul.mubr.f32.gmra.mrb[0].mxu0 %v443
    %v520 = vpop.f32.mrb[0].mxu0
    %v521 = vadd.f32 0.0, %v520
    %v522 = vpop.f32.mrb[0].mxu0
    %523 = vmatprep.mubr.f32.mxu0 0.0
    %524 = vmatmul.mubr.f32.gmra.mrb[0].mxu0 %v446
    %v525 = vpop.f32.mrb[0].mxu0
    %v526 = vadd.f32 0.0, %v525
    %v527 = vpop.f32.mrb[0].mxu0
    %528 = vdwg.mxu0
    %v529 = vmul.f32 %v521, 0.25
    %v530 = vmul.f32 %v526, 0.25
    %v531 = vadd.f32 %v529, %v180
    %v532 = vadd.f32 %v530, %v181
    %vm533 = vcmask 130048
    %v534 = vsel %vm533, %v531, -inf
    %535 = vmax.xlane.f32.xlu0 %v534
    %v536 = vpop.xlane.xlu0 %535
    %v537 = vsel %vm533, %v532, -inf
    %538 = vmax.xlane.f32.xlu0 %v537
    %v539 = vpop.xlane.xlu0 %538
    %v540 = vsub.f32 %v531, %v536
    %v541 = vsub.f32 %v532, %v539
    %v542 = vmul.f32 %v540, 1.442695
    %v543 = vpow.pop %v542
    %v544 = vmul.f32 %v541, 1.442695
    %v545 = vpow.pop %v544
    %v546 = vsel %vm533, %v543, 0.0
    %547 = vadd.xlane.f32.xlu0 %v546
    %v548 = vpop.xlane.xlu0 %547
    %v549 = vsel %vm533, %v545, 0.0
    %550 = vadd.xlane.f32.xlu0 %v549
    %v551 = vpop.xlane.xlu0 %550
    %v552 = vrcp.pop %v548
    %v553 = vrcp.pop %v551
    %v554 = vmul.f32 %v543, %v552
    %v555 = vmul.f32 %v545, %v553
    %v556 = vmul.f32 %v432, %v174
    %v557 = vmul.f32 %v437, %v174
    %v558 = vmul.f32 %v264, %v179
    %v559 = vmul.f32 %v269, %v179
    %v561 = vsel %vm126, %v558, 0
    %v564 = vsel %vm126, %v559, 0
    %566 = vmatprep.subr.mxu0 0.0
    %567 = vmatpush1.xpose.msra.mxu0 %v449
    %568 = vmatprep.subr.mxu0 0.0
    %569 = vmatpush1.xpose.msra.mxu0 %v452
    %570 = vmatprep.subr.mxu0 0.0
    %571 = vmatpush1.xpose.msra.mxu0 0.0
    %572 = vmatprep.subr.mxu0 0.0
    %573 = vmatpush1.xpose.msra.mxu0 0.0
    %574 = vmatprep.subr.mxu0 0.0
    %575 = vmatpush1.xpose.msra.mxu0 0.0
    %576 = vmatprep.subr.mxu0 0.0
    %577 = vmatpush1.xpose.msra.mxu0 0.0
    %578 = vmatprep.subr.mxu0 0.0
    %579 = vmatpush1.xpose.msra.mxu0 0.0
    %580 = vmatprep.subr.mxu0 0.0
    %581 = vmatpush1.xpose.msra.mxu0 0.0
    %582 = vmatprep.subr.mxu0 0.0
    %583 = vmatpush1.xpose.msra.mxu0 0.0
    %584 = vmatprep.subr.mxu0 0.0
    %585 = vmatpush1.xpose.msra.mxu0 0.0
    %586 = vmatprep.subr.mxu0 0.0
    %587 = vmatpush1.xpose.msra.mxu0 0.0
    %588 = vmatprep.subr.mxu0 0.0
    %589 = vmatpush1.xpose.msra.mxu0 0.0
    %590 = vmatprep.subr.mxu0 0.0
    %591 = vmatpush1.xpose.msra.mxu0 0.0
    %592 = vmatprep.subr.mxu0 0.0
    %593 = vmatpush1.xpose.msra.mxu0 0.0
    %594 = vmatprep.subr.mxu0 0.0
    %595 = vmatpush1.xpose.msra.mxu0 0.0
    %596 = vmatprep.subr.mxu0 0.0
    %597 = vmatpush1.xpose.msra.mxu0 0.0
    %598 = vmatprep.subr.mxu0 0.0
    %599 = vmatpush1.xpose.msra.mxu0 0.0
    %600 = vmatprep.subr.mxu0 0.0
    %601 = vmatpush1.xpose.msra.mxu0 0.0
    %602 = vmatprep.subr.mxu0 0.0
    %603 = vmatpush1.xpose.msra.mxu0 0.0
    %604 = vmatprep.subr.mxu0 0.0
    %605 = vmatpush1.xpose.msra.mxu0 0.0
    %606 = vmatprep.subr.mxu0 0.0
    %607 = vmatpush1.xpose.msra.mxu0 0.0
    %608 = vmatprep.subr.mxu0 0.0
    %609 = vmatpush1.xpose.msra.mxu0 0.0
    %610 = vmatprep.subr.mxu0 0.0
    %611 = vmatpush1.xpose.msra.mxu0 0.0
    %612 = vmatprep.subr.mxu0 0.0
    %613 = vmatpush1.xpose.msra.mxu0 0.0
    %614 = vmatprep.subr.mxu0 0.0
    %615 = vmatpush1.xpose.msra.mxu0 0.0
    %616 = vmatprep.subr.mxu0 0.0
    %617 = vmatpush1.xpose.msra.mxu0 0.0
    %618 = vmatprep.subr.mxu0 0.0
    %619 = vmatpush1.xpose.msra.mxu0 0.0
    %620 = vmatprep.subr.mxu0 0.0
    %621 = vmatpush1.xpose.msra.mxu0 0.0
    %622 = vmatprep.subr.mxu0 0.0
    %623 = vmatpush1.xpose.msra.mxu0 0.0
    %624 = vmatprep.subr.mxu0 0.0
    %625 = vmatpush1.xpose.msra.mxu0 0.0
    %626 = vmatprep.subr.mxu0 0.0
    %627 = vmatpush1.xpose.msra.mxu0 0.0
    %628 = vmatprep.subr.mxu0 0.0
    %629 = vmatpush1.xpose.msra.mxu0 0.0
    %630 = vmatprep.mubr.f32.mxu0 0.0
    %631 = vmatmul.mubr.f32.gmra.mrb[0].mxu0 %v561
    %v632 = vpop.f32.mrb[0].mxu0
    %v633 = vadd.f32 0.0, %v632
    %v634 = vpop.f32.mrb[0].mxu0
    %635 = vmatprep.mubr.f32.mxu0 0.0
    %636 = vmatmul.mubr.f32.gmra.mrb[0].mxu0 %v564
    %v637 = vpop.f32.mrb[0].mxu0
    %v638 = vadd.f32 0.0, %v637
    %v639 = vpop.f32.mrb[0].mxu0
    %640 = vdwg.mxu0
    %v641 = vmul.f32 %v633, 0.25
    %v642 = vmul.f32 %v638, 0.25
    %v643 = vadd.f32 %v641, %v180
    %v644 = vadd.f32 %v642, %v181
    %v645 = vsel %vm533, %v643, -inf
    %646 = vmax.xlane.f32.xlu0 %v645
    %v647 = vpop.xlane.xlu0 %646
    %v648 = vsel %vm533, %v644, -inf
    %649 = vmax.xlane.f32.xlu0 %v648
    %v650 = vpop.xlane.xlu0 %649
    %v651 = vsub.f32 %v643, %v647
    %v652 = vsub.f32 %v644, %v650
    %v653 = vmul.f32 %v651, 1.442695
    %v654 = vpow.pop %v653
    %v655 = vmul.f32 %v652, 1.442695
    %v656 = vpow.pop %v655
    %v657 = vsel %vm533, %v654, 0.0
    %658 = vadd.xlane.f32.xlu0 %v657
    %v659 = vpop.xlane.xlu0 %658
    %v660 = vsel %vm533, %v656, 0.0
    %661 = vadd.xlane.f32.xlu0 %v660
    %v662 = vpop.xlane.xlu0 %661
    %v663 = vrcp.pop %v659
    %v664 = vrcp.pop %v662
    %v665 = vmul.f32 %v654, %v663
    %v666 = vmul.f32 %v656, %v664
    %v667 = vmul.f32 %v432, %v179
    %v668 = vmul.f32 %v437, %v179
    %v670 = vsel %vm533, %v665, 0
    %v673 = vsel %vm533, %v666, 0
    %675 = vmatprep.subr.mxu0 0.0
    %676 = vmatpush1.msra.mxu0 %v667
    %677 = vmatprep.subr.mxu0 0.0
    %678 = vmatpush1.msra.mxu0 %v668
    %679 = vmatprep.subr.mxu0 0.0
    %680 = vmatpush1.msra.mxu0 0.0
    %681 = vmatprep.subr.mxu0 0.0
    %682 = vmatpush1.msra.mxu0 0.0
    %683 = vmatprep.subr.mxu0 0.0
    %684 = vmatpush1.msra.mxu0 0.0
    %685 = vmatprep.subr.mxu0 0.0
    %686 = vmatpush1.msra.mxu0 0.0
    %687 = vmatprep.subr.mxu0 0.0
    %688 = vmatpush1.msra.mxu0 0.0
    %689 = vmatprep.subr.mxu0 0.0
    %690 = vmatpush1.msra.mxu0 0.0
    %691 = vmatprep.subr.mxu0 0.0
    %692 = vmatpush1.msra.mxu0 0.0
    %693 = vmatprep.subr.mxu0 0.0
    %694 = vmatpush1.msra.mxu0 0.0
    %695 = vmatprep.subr.mxu0 0.0
    %696 = vmatpush1.msra.mxu0 0.0
    %697 = vmatprep.subr.mxu0 0.0
    %698 = vmatpush1.msra.mxu0 0.0
    %699 = vmatprep.subr.mxu0 0.0
    %700 = vmatpush1.msra.mxu0 0.0
    %701 = vmatprep.subr.mxu0 0.0
    %702 = vmatpush1.msra.mxu0 0.0
    %703 = vmatprep.subr.mxu0 0.0
    %704 = vmatpush1.msra.mxu0 0.0
    %705 = vmatprep.subr.mxu0 0.0
    %706 = vmatpush1.msra.mxu0 0.0
    %707 = vmatprep.subr.mxu0 0.0
    %708 = vmatpush1.msra.mxu0 0.0
    %709 = vmatprep.subr.mxu0 0.0
    %710 = vmatpush1.msra.mxu0 0.0
    %711 = vmatprep.subr.mxu0 0.0
    %712 = vmatpush1.msra.mxu0 0.0
    %713 = vmatprep.subr.mxu0 0.0
    %714 = vmatpush1.msra.mxu0 0.0
    %715 = vmatprep.subr.mxu0 0.0
    %716 = vmatpush1.msra.mxu0 0.0
    %717 = vmatprep.subr.mxu0 0.0
    %718 = vmatpush1.msra.mxu0 0.0
    %719 = vmatprep.subr.mxu0 0.0
    %720 = vmatpush1.msra.mxu0 0.0
    %721 = vmatprep.subr.mxu0 0.0
    %722 = vmatpush1.msra.mxu0 0.0
    %723 = vmatprep.subr.mxu0 0.0
    %724 = vmatpush1.msra.mxu0 0.0
    %725 = vmatprep.subr.mxu0 0.0
    %726 = vmatpush1.msra.mxu0 0.0
    %727 = vmatprep.subr.mxu0 0.0
    %728 = vmatpush1.msra.mxu0 0.0
    %729 = vmatprep.subr.mxu0 0.0
    %730 = vmatpush1.msra.mxu0 0.0
    %731 = vmatprep.subr.mxu0 0.0
    %732 = vmatpush1.msra.mxu0 0.0
    %733 = vmatprep.subr.mxu0 0.0
    %734 = vmatpush1.msra.mxu0 0.0
    %735 = vmatprep.subr.mxu0 0.0
    %736 = vmatpush1.msra.mxu0 0.0
    %737 = vmatprep.subr.mxu0 0.0
    %738 = vmatpush1.msra.mxu0 0.0
    %739 = vmatprep.mubr.f32.mxu0 0.0
    %740 = vmatmul.mubr.f32.gmra.mrb[0].mxu0 %v670
    %v741 = vpop.f32.mrb[0].mxu0
    %v742 = vadd.f32 0.0, %v741
    %v743 = vpop.f32.mrb[0].mxu0
    %744 = vmatprep.mubr.f32.mxu0 0.0
    %745 = vmatmul.mubr.f32.gmra.mrb[0].mxu0 %v673
    %v746 = vpop.f32.mrb[0].mxu0
    %v747 = vadd.f32 0.0, %v746
    %v748 = vpop.f32.mrb[0].mxu0
    %749 = vdwg.mxu0
    %v751 = vsel %vm533, %v554, 0
    %v754 = vsel %vm533, %v555, 0
    %756 = vmatprep.subr.mxu0 0.0
    %757 = vmatpush1.msra.mxu0 %v556
    %758 = vmatprep.subr.mxu0 0.0
    %759 = vmatpush1.msra.mxu0 %v557
    %760 = vmatprep.subr.mxu0 0.0
    %761 = vmatpush1.msra.mxu0 0.0
    %762 = vmatprep.subr.mxu0 0.0
    %763 = vmatpush1.msra.mxu0 0.0
    %764 = vmatprep.subr.mxu0 0.0
    %765 = vmatpush1.msra.mxu0 0.0
    %766 = vmatprep.subr.mxu0 0.0
    %767 = vmatpush1.msra.mxu0 0.0
    %768 = vmatprep.subr.mxu0 0.0
    %769 = vmatpush1.msra.mxu0 0.0
    %770 = vmatprep.subr.mxu0 0.0
    %771 = vmatpush1.msra.mxu0 0.0
    %772 = vmatprep.subr.mxu0 0.0
    %773 = vmatpush1.msra.mxu0 0.0
    %774 = vmatprep.subr.mxu0 0.0
    %775 = vmatpush1.msra.mxu0 0.0
    %776 = vmatprep.subr.mxu0 0.0
    %777 = vmatpush1.msra.mxu0 0.0
    %778 = vmatprep.subr.mxu0 0.0
    %779 = vmatpush1.msra.mxu0 0.0
    %780 = vmatprep.subr.mxu0 0.0
    %781 = vmatpush1.msra.mxu0 0.0
    %782 = vmatprep.subr.mxu0 0.0
    %783 = vmatpush1.msra.mxu0 0.0
    %784 = vmatprep.subr.mxu0 0.0
    %785 = vmatpush1.msra.mxu0 0.0
    %786 = vmatprep.subr.mxu0 0.0
    %787 = vmatpush1.msra.mxu0 0.0
    %788 = vmatprep.subr.mxu0 0.0
    %789 = vmatpush1.msra.mxu0 0.0
    %790 = vmatprep.subr.mxu0 0.0
    %791 = vmatpush1.msra.mxu0 0.0
    %792 = vmatprep.subr.mxu0 0.0
    %793 = vmatpush1.msra.mxu0 0.0
    %794 = vmatprep.subr.mxu0 0.0
    %795 = vmatpush1.msra.mxu0 0.0
    %796 = vmatprep.subr.mxu0 0.0
    %797 = vmatpush1.msra.mxu0 0.0
    %798 = vmatprep.subr.mxu0 0.0
    %799 = vmatpush1.msra.mxu0 0.0
    %800 = vmatprep.subr.mxu0 0.0
    %801 = vmatpush1.msra.mxu0 0.0
    %802 = vmatprep.subr.mxu0 0.0
    %803 = vmatpush1.msra.mxu0 0.0
    %804 = vmatprep.subr.mxu0 0.0
    %805 = vmatpush1.msra.mxu0 0.0
    %806 = vmatprep.subr.mxu0 0.0
    %807 = vmatpush1.msra.mxu0 0.0
    %808 = vmatprep.subr.mxu0 0.0
    %809 = vmatpush1.msra.mxu0 0.0
    %810 = vmatprep.subr.mxu0 0.0
    %811 = vmatpush1.msra.mxu0 0.0
    %812 = vmatprep.subr.mxu0 0.0
    %813 = vmatpush1.msra.mxu0 0.0
    %814 = vmatprep.subr.mxu0 0.0
    %815 = vmatpush1.msra.mxu0 0.0
    %816 = vmatprep.subr.mxu0 0.0
    %817 = vmatpush1.msra.mxu0 0.0
    %818 = vmatprep.subr.mxu0 0.0
    %819 = vmatpush1.msra.mxu0 0.0
    %820 = vmatprep.mubr.f32.mxu0 0.0
    %821 = vmatmul.mubr.f32.gmra.mrb[0].mxu0 %v751
    %v822 = vpop.f32.mrb[0].mxu0
    %v823 = vadd.f32 %v742, %v822
    %v824 = vpop.f32.mrb[0].mxu0
    %825 = vmatprep.mubr.f32.mxu0 0.0
    %826 = vmatmul.mubr.f32.gmra.mrb[0].mxu0 %v754
    %v827 = vpop.f32.mrb[0].mxu0
    %v828 = vadd.f32 %v747, %v827
    %v829 = vpop.f32.mrb[0].mxu0
    %830 = vdwg.mxu0
    %v831 = vld [vmem:[%s2 + $0xf8] sm:$0xff]
    %v832 = vld [vmem:[%s2 + $0x100] sm:$0xff]
    %v833 = vld [vmem:[%s2 + $0x108] sm:$0xff]
    %v834 = vld [vmem:[%s2 + $0x110] sm:$0xff]
    %v835 = vld [vmem:[%s2 + $0x17b] sm:$0x1]
    %v836 = vlaneseq
    %v837 = vshrl.u32 %v836, 7
    %v838 = vsub.s32 0, %v837
    %v839 = vrot.slane %v835, %v838
    %v841 = vsel %vm126, %v823, 0
    %v844 = vsel %vm126, %v828, 0
    %846 = vmatprep.subr.mxu0 0.0
    %847 = vmatpush1.msra.mxu0 %v831
    %848 = vmatprep.subr.mxu0 0.0
    %849 = vmatpush1.msra.mxu0 %v832
    %850 = vmatprep.subr.mxu0 0.0
    %851 = vmatpush1.msra.mxu0 %v833
    %852 = vmatprep.subr.mxu0 0.0
    %853 = vmatpush1.msra.mxu0 %v834
    %854 = vmatprep.subr.mxu0 0.0
    %855 = vmatpush1.msra.mxu0 0.0
    %856 = vmatprep.subr.mxu0 0.0
    %857 = vmatpush1.msra.mxu0 0.0
    %858 = vmatprep.subr.mxu0 0.0
    %859 = vmatpush1.msra.mxu0 0.0
    %860 = vmatprep.subr.mxu0 0.0
    %861 = vmatpush1.msra.mxu0 0.0
    %862 = vmatprep.subr.mxu0 0.0
    %863 = vmatpush1.msra.mxu0 0.0
    %864 = vmatprep.subr.mxu0 0.0
    %865 = vmatpush1.msra.mxu0 0.0
    %866 = vmatprep.subr.mxu0 0.0
    %867 = vmatpush1.msra.mxu0 0.0
    %868 = vmatprep.subr.mxu0 0.0
    %869 = vmatpush1.msra.mxu0 0.0
    %870 = vmatprep.subr.mxu0 0.0
    %871 = vmatpush1.msra.mxu0 0.0
    %872 = vmatprep.subr.mxu0 0.0
    %873 = vmatpush1.msra.mxu0 0.0
    %874 = vmatprep.subr.mxu0 0.0
    %875 = vmatpush1.msra.mxu0 0.0
    %876 = vmatprep.subr.mxu0 0.0
    %877 = vmatpush1.msra.mxu0 0.0
    %878 = vmatprep.subr.mxu0 0.0
    %879 = vmatpush1.msra.mxu0 0.0
    %880 = vmatprep.subr.mxu0 0.0
    %881 = vmatpush1.msra.mxu0 0.0
    %882 = vmatprep.subr.mxu0 0.0
    %883 = vmatpush1.msra.mxu0 0.0
    %884 = vmatprep.subr.mxu0 0.0
    %885 = vmatpush1.msra.mxu0 0.0
    %886 = vmatprep.subr.mxu0 0.0
    %887 = vmatpush1.msra.mxu0 0.0
    %888 = vmatprep.subr.mxu0 0.0
    %889 = vmatpush1.msra.mxu0 0.0
    %890 = vmatprep.subr.mxu0 0.0
    %891 = vmatpush1.msra.mxu0 0.0
    %892 = vmatprep.subr.mxu0 0.0
    %893 = vmatpush1.msra.mxu0 0.0
    %894 = vmatprep.subr.mxu0 0.0
    %895 = vmatpush1.msra.mxu0 0.0
    %896 = vmatprep.subr.mxu0 0.0
    %897 = vmatpush1.msra.mxu0 0.0
    %898 = vmatprep.subr.mxu0 0.0
    %899 = vmatpush1.msra.mxu0 0.0
    %900 = vmatprep.subr.mxu0 0.0
    %901 = vmatpush1.msra.mxu0 0.0
    %902 = vmatprep.subr.mxu0 0.0
    %903 = vmatpush1.msra.mxu0 0.0
    %904 = vmatprep.subr.mxu0 0.0
    %905 = vmatpush1.msra.mxu0 0.0
    %906 = vmatprep.subr.mxu0 0.0
    %907 = vmatpush1.msra.mxu0 0.0
    %908 = vmatprep.subr.mxu0 0.0
    %909 = vmatpush1.msra.mxu0 0.0
    %910 = vmatprep.mubr.f32.mxu0 0.0
    %911 = vmatmul.mubr.f32.gmra.mrb[0].mxu0 %v841
    %v912 = vpop.f32.mrb[0].mxu0
    %v913 = vadd.f32 %v839, %v912
    %v914 = vpop.f32.mrb[0].mxu0
    %915 = vmatprep.mubr.f32.mxu0 0.0
    %916 = vmatmul.mubr.f32.gmra.mrb[0].mxu0 %v844
    %v917 = vpop.f32.mrb[0].mxu0
    %v918 = vadd.f32 %v839, %v917
    %v919 = vpop.f32.mrb[0].mxu0
    %920 = vdwg.mxu0
    %v921 = vadd.f32 %v913, %v168
    %v922 = vadd.f32 %v918, %v169
    %v923 = vld [vmem:[%s2 + $0x17c] sm:$0x1]
    %v924 = vld [vmem:[%s2 + $0x17d] sm:$0x1]
    %v925 = vsel %vm126, %v921, 0.0
    %926 = vadd.xlane.f32.xlu0 %v925
    %v927 = vpop.xlane.xlu0 %926
    %v928 = vsel %vm126, %v922, 0.0
    %929 = vadd.xlane.f32.xlu0 %v928
    %v930 = vpop.xlane.xlu0 %929
    %v931 = vmul.f32 %v927, %v133
    %v932 = vmul.f32 %v930, %v133
    %v933 = vmul.f32 %v921, %v921
    %v934 = vmul.f32 %v922, %v922
    %v935 = vsel %vm126, %v933, 0.0
    %936 = vadd.xlane.f32.xlu0 %v935
    %v937 = vpop.xlane.xlu0 %936
    %v938 = vsel %vm126, %v934, 0.0
    %939 = vadd.xlane.f32.xlu0 %v938
    %v940 = vpop.xlane.xlu0 %939
    %v941 = vmul.f32 %v937, %v133
    %v942 = vmul.f32 %v940, %v133
    %v943 = vmul.f32 %v931, %v931
    %v944 = vmul.f32 %v932, %v932
    %v945 = vsub.f32 %v941, %v943
    %v946 = vsub.f32 %v942, %v944
    %v947 = vsub.f32 %v921, %v931
    %v948 = vsub.f32 %v922, %v932
    %v949 = vadd.f32 %v945, 1e-12
    %v950 = vadd.f32 %v946, 1e-12
    %v951 = vrsqrt.pop %v949
    %v952 = vrsqrt.pop %v950
    %v953 = vmul.f32 %v947, %v951
    %v954 = vmul.f32 %v948, %v952
    %v955 = vlaneseq
    %v956 = vshrl.u32 %v955, 7
    %v957 = vsub.s32 0, %v956
    %v958 = vrot.slane %v923, %v957
    %v959 = vmul.f32 %v953, %v958
    %v960 = vmul.f32 %v954, %v958
    %v961 = vlaneseq
    %v962 = vshrl.u32 %v961, 7
    %v963 = vsub.s32 0, %v962
    %v964 = vrot.slane %v924, %v963
    %v965 = vadd.f32 %v959, %v964
    %v966 = vadd.f32 %v960, %v964
    %v967 = vld [vmem:[%s2 + $0x118] sm:$0xff]
    %v968 = vld [vmem:[%s2 + $0x120] sm:$0xff]
    %v969 = vld [vmem:[%s2 + $0x128] sm:$0xff]
    %v970 = vld [vmem:[%s2 + $0x130] sm:$0xff]
    %v971 = vld [vmem:[%s2 + $0x17e] sm:$0x1]
    %v972 = vlaneseq
    %v973 = vshrl.u32 %v972, 7
    %v974 = vsub.s32 0, %v973
    %v975 = vrot.slane %v971, %v974
    %v977 = vsel %vm126, %v965, 0
    %v980 = vsel %vm126, %v966, 0
    %982 = vmatprep.subr.mxu0 0.0
    %983 = vmatpush1.msra.mxu0 %v967
    %984 = vmatprep.subr.mxu0 0.0
    %985 = vmatpush1.msra.mxu0 %v968
    %986 = vmatprep.subr.mxu0 0.0
    %987 = vmatpush1.msra.mxu0 %v969
    %988 = vmatprep.subr.mxu0 0.0
    %989 = vmatpush1.msra.mxu0 %v970
    %990 = vmatprep.subr.mxu0 0.0
    %991 = vmatpush1.msra.mxu0 0.0
    %992 = vmatprep.subr.mxu0 0.0
    %993 = vmatpush1.msra.mxu0 0.0
    %994 = vmatprep.subr.mxu0 0.0
    %995 = vmatpush1.msra.mxu0 0.0
    %996 = vmatprep.subr.mxu0 0.0
    %997 = vmatpush1.msra.mxu0 0.0
    %998 = vmatprep.subr.mxu0 0.0
    %999 = vmatpush1.msra.mxu0 0.0
    %1000 = vmatprep.subr.mxu0 0.0
    %1001 = vmatpush1.msra.mxu0 0.0
    %1002 = vmatprep.subr.mxu0 0.0
    %1003 = vmatpush1.msra.mxu0 0.0
    %1004 = vmatprep.subr.mxu0 0.0
    %1005 = vmatpush1.msra.mxu0 0.0
    %1006 = vmatprep.subr.mxu0 0.0
    %1007 = vmatpush1.msra.mxu0 0.0
    %1008 = vmatprep.subr.mxu0 0.0
    %1009 = vmatpush1.msra.mxu0 0.0
    %1010 = vmatprep.subr.mxu0 0.0
    %1011 = vmatpush1.msra.mxu0 0.0
    %1012 = vmatprep.subr.mxu0 0.0
    %1013 = vmatpush1.msra.mxu0 0.0
    %1014 = vmatprep.subr.mxu0 0.0
    %1015 = vmatpush1.msra.mxu0 0.0
    %1016 = vmatprep.subr.mxu0 0.0
    %1017 = vmatpush1.msra.mxu0 0.0
    %1018 = vmatprep.subr.mxu0 0.0
    %1019 = vmatpush1.msra.mxu0 0.0
    %1020 = vmatprep.subr.mxu0 0.0
    %1021 = vmatpush1.msra.mxu0 0.0
    %1022 = vmatprep.subr.mxu0 0.0
    %1023 = vmatpush1.msra.mxu0 0.0
    %1024 = vmatprep.subr.mxu0 0.0
    %1025 = vmatpush1.msra.mxu0 0.0
    %1026 = vmatprep.subr.mxu0 0.0
    %1027 = vmatpush1.msra.mxu0 0.0
    %1028 = vmatprep.subr.mxu0 0.0
    %1029 = vmatpush1.msra.mxu0 0.0
    %1030 = vmatprep.subr.mxu0 0.0
    %1031 = vmatpush1.msra.mxu0 0.0
    %1032 = vmatprep.subr.mxu0 0.0
    %1033 = vmatpush1.msra.mxu0 0.0
    %1034 = vmatprep.subr.mxu0 0.0
    %1035 = vmatpush1.msra.mxu0 0.0
    %1036 = vmatprep.subr.mxu0 0.0
    %1037 = vmatpush1.msra.mxu0 0.0
    %1038 = vmatprep.subr.mxu0 0.0
    %1039 = vmatpush1.msra.mxu0 0.0
    %1040 = vmatprep.subr.mxu0 0.0
    %1041 = vmatpush1.msra.mxu0 0.0
    %1042 = vmatprep.subr.mxu0 0.0
    %1043 = vmatpush1.msra.mxu0 0.0
    %1044 = vmatprep.subr.mxu0 0.0
    %1045 = vmatpush1.msra.mxu0 0.0
    %1046 = vmatprep.mubr.f32.mxu0 0.0
    %1047 = vmatmul.mubr.f32.gmra.mrb[0].mxu0 %v977
    %v1048 = vpop.f32.mrb[0].mxu0
    %v1049 = vadd.f32 %v975, %v1048
    %v1050 = vpop.f32.mrb[0].mxu0
    %1051 = vmatprep.mubr.f32.mxu0 0.0
    %1052 = vmatmul.mubr.f32.gmra.mrb[0].mxu0 %v980
    %v1053 = vpop.f32.mrb[0].mxu0
    %v1054 = vadd.f32 %v975, %v1053
    %v1055 = vpop.f32.mrb[0].mxu0
    %1056 = vdwg.mxu0
    %v1057 = vmul.f32 %v1049, 0.5
    %v1058 = vmul.f32 %v1054, 0.5
    %v1059 = vmul.f32 %v1049, 0.044715
    %v1060 = vmul.f32 %v1054, 0.044715
    %v1061 = vmul.f32 %v1059, %v1049
    %v1062 = vmul.f32 %v1060, %v1054
    %v1063 = vmul.f32 %v1061, %v1049
    %v1064 = vmul.f32 %v1062, %v1054
    %v1065 = vadd.f32 %v1049, %v1063
    %v1066 = vadd.f32 %v1054, %v1064
    %v1067 = vmul.f32 %v1065, 0.7978846
    %v1068 = vmul.f32 %v1066, 0.7978846
    %v1069 = vtanh.pop %v1067
    %v1070 = vtanh.pop %v1068
    %v1071 = vadd.f32 %v1069, 1.0
    %v1072 = vadd.f32 %v1070, 1.0
    %v1073 = vmul.f32 %v1057, %v1071
    %v1074 = vmul.f32 %v1058, %v1072
    %v1075 = vld [vmem:[%s2 + $0x138] sm:$0xff]
    %v1076 = vld [vmem:[%s2 + $0x140] sm:$0xff]
    %v1077 = vld [vmem:[%s2 + $0x148] sm:$0xff]
    %v1078 = vld [vmem:[%s2 + $0x150] sm:$0xff]
    %v1079 = vld [vmem:[%s2 + $0x158] sm:$0xff]
    %v1080 = vld [vmem:[%s2 + $0x160] sm:$0xff]
    %v1081 = vld [vmem:[%s2 + $0x168] sm:$0xff]
    %v1082 = vld [vmem:[%s2 + $0x170] sm:$0xff]
    %v1083 = vld [vmem:[%s2 + $0x17f] sm:$0x1]
    %v1084 = vlaneseq
    %v1085 = vshrl.u32 %v1084, 7
    %v1086 = vsub.s32 0, %v1085
    %v1087 = vrot.slane %v1083, %v1086
    %vm1088 = vcmask 523264
    %v1090 = vsel %vm1088, %v1073, 0
    %v1093 = vsel %vm1088, %v1074, 0
    %1095 = vmatprep.subr.mxu0 0.0
    %1096 = vmatpush1.msra.mxu0 %v1075
    %1097 = vmatprep.subr.mxu0 0.0
    %1098 = vmatpush1.msra.mxu0 %v1076
    %1099 = vmatprep.subr.mxu0 0.0
    %1100 = vmatpush1.msra.mxu0 %v1077
    %1101 = vmatprep.subr.mxu0 0.0
    %1102 = vmatpush1.msra.mxu0 %v1078
    %1103 = vmatprep.subr.mxu0 0.0
    %1104 = vmatpush1.msra.mxu0 %v1079
    %1105 = vmatprep.subr.mxu0 0.0
    %1106 = vmatpush1.msra.mxu0 %v1080
    %1107 = vmatprep.subr.mxu0 0.0
    %1108 = vmatpush1.msra.mxu0 %v1081
    %1109 = vmatprep.subr.mxu0 0.0
    %1110 = vmatpush1.msra.mxu0 %v1082
    %1111 = vmatprep.subr.mxu0 0.0
    %1112 = vmatpush1.msra.mxu0 0.0
    %1113 = vmatprep.subr.mxu0 0.0
    %1114 = vmatpush1.msra.mxu0 0.0
    %1115 = vmatprep.subr.mxu0 0.0
    %1116 = vmatpush1.msra.mxu0 0.0
    %1117 = vmatprep.subr.mxu0 0.0
    %1118 = vmatpush1.msra.mxu0 0.0
    %1119 = vmatprep.subr.mxu0 0.0
    %1120 = vmatpush1.msra.mxu0 0.0
    %1121 = vmatprep.subr.mxu0 0.0
    %1122 = vmatpush1.msra.mxu0 0.0
    %1123 = vmatprep.subr.mxu0 0.0
    %1124 = vmatpush1.msra.mxu0 0.0
    %1125 = vmatprep.subr.mxu0 0.0
    %1126 = vmatpush1.msra.mxu0 0.0
    %1127 = vmatprep.subr.mxu0 0.0
    %1128 = vmatpush1.msra.mxu0 0.0
    %1129 = vmatprep.subr.mxu0 0.0
    %1130 = vmatpush1.msra.mxu0 0.0
    %1131 = vmatprep.subr.mxu0 0.0
    %1132 = vmatpush1.msra.mxu0 0.0
    %1133 = vmatprep.subr.mxu0 0.0
    %1134 = vmatpush1.msra.mxu0 0.0
    %1135 = vmatprep.subr.mxu0 0.0
    %1136 = vmatpush1.msra.mxu0 0.0
    %1137 = vmatprep.subr.mxu0 0.0
    %1138 = vmatpush1.msra.mxu0 0.0
    %1139 = vmatprep.subr.mxu0 0.0
    %1140 = vmatpush1.msra.mxu0 0.0
    %1141 = vmatprep.subr.mxu0 0.0
    %1142 = vmatpush1.msra.mxu0 0.0
    %1143 = vmatprep.subr.mxu0 0.0
    %1144 = vmatpush1.msra.mxu0 0.0
    %1145 = vmatprep.subr.mxu0 0.0
    %1146 = vmatpush1.msra.mxu0 0.0
    %1147 = vmatprep.subr.mxu0 0.0
    %1148 = vmatpush1.msra.mxu0 0.0
    %1149 = vmatprep.subr.mxu0 0.0
    %1150 = vmatpush1.msra.mxu0 0.0
    %1151 = vmatprep.subr.mxu0 0.0
    %1152 = vmatpush1.msra.mxu0 0.0
    %1153 = vmatprep.subr.mxu0 0.0
    %1154 = vmatpush1.msra.mxu0 0.0
    %1155 = vmatprep.subr.mxu0 0.0
    %1156 = vmatpush1.msra.mxu0 0.0
    %1157 = vmatprep.subr.mxu0 0.0
    %1158 = vmatpush1.msra.mxu0 0.0
    %1159 = vmatprep.mubr.f32.mxu0 0.0
    %1160 = vmatmul.mubr.f32.gmra.mrb[0].mxu0 %v1090
    %v1161 = vpop.f32.mrb[0].mxu0
    %v1162 = vadd.f32 %v1087, %v1161
    %v1163 = vpop.f32.mrb[0].mxu0
    %1164 = vmatprep.mubr.f32.mxu0 0.0
    %1165 = vmatmul.mubr.f32.gmra.mrb[0].mxu0 %v1093
    %v1166 = vpop.f32.mrb[0].mxu0
    %v1167 = vadd.f32 %v1087, %v1166
    %v1168 = vpop.f32.mrb[0].mxu0
    %1169 = vdwg.mxu0
    %v1170 = vadd.f32 %v1162, %v965
    %v1171 = vadd.f32 %v1167, %v966
    %v1172 = vld [vmem:[%s2 + $0x180] sm:$0x1]
    %v1173 = vld [vmem:[%s2 + $0x181] sm:$0x1]
    %v1174 = vsel %vm126, %v1170, 0.0
    %1175 = vadd.xlane.f32.xlu0 %v1174
    %v1176 = vpop.xlane.xlu0 %1175
    %v1177 = vsel %vm126, %v1171, 0.0
    %1178 = vadd.xlane.f32.xlu0 %v1177
    %v1179 = vpop.xlane.xlu0 %1178
    %v1180 = vmul.f32 %v1176, %v133
    %v1181 = vmul.f32 %v1179, %v133
    %v1182 = vmul.f32 %v1170, %v1170
    %v1183 = vmul.f32 %v1171, %v1171
    %v1184 = vsel %vm126, %v1182, 0.0
    %1185 = vadd.xlane.f32.xlu0 %v1184
    %v1186 = vpop.xlane.xlu0 %1185
    %v1187 = vsel %vm126, %v1183, 0.0
    %1188 = vadd.xlane.f32.xlu0 %v1187
    %v1189 = vpop.xlane.xlu0 %1188
    %v1190 = vmul.f32 %v1186, %v133
    %v1191 = vmul.f32 %v1189, %v133
    %v1192 = vmul.f32 %v1180, %v1180
    %v1193 = vmul.f32 %v1181, %v1181
    %v1194 = vsub.f32 %v1190, %v1192
    %v1195 = vsub.f32 %v1191, %v1193
    %v1196 = vsub.f32 %v1170, %v1180
    %v1197 = vsub.f32 %v1171, %v1181
    %v1198 = vadd.f32 %v1194, 1e-12
    %v1199 = vadd.f32 %v1195, 1e-12
    %v1200 = vrsqrt.pop %v1198
    %v1201 = vrsqrt.pop %v1199
    %v1202 = vmul.f32 %v1196, %v1200
    %v1203 = vmul.f32 %v1197, %v1201
    %v1204 = vlaneseq
    %v1205 = vshrl.u32 %v1204, 7
    %v1206 = vsub.s32 0, %v1205
    %v1207 = vrot.slane %v1172, %v1206
    %v1208 = vmul.f32 %v1202, %v1207
    %v1209 = vmul.f32 %v1203, %v1207
    %v1210 = vlaneseq
    %v1211 = vshrl.u32 %v1210, 7
    %v1212 = vsub.s32 0, %v1211
    %v1213 = vrot.slane %v1173, %v1212
    %v1214 = vadd.f32 %v1208, %v1213
    %v1215 = vadd.f32 %v1209, %v1213
    %v1216 = vld [vmem:[%s2 + $0x188] sm:$0xff]
    %v1217 = vld [vmem:[%s2 + $0x190] sm:$0xff]
    %v1218 = vld [vmem:[%s2 + $0x198] sm:$0xff]
    %v1219 = vld [vmem:[%s2 + $0x1a0] sm:$0xff]
    %v1220 = vld [vmem:[%s2 + $0x268] sm:$0x1]
    %v1221 = vlaneseq
    %v1222 = vshrl.u32 %v1221, 7
    %v1223 = vsub.s32 0, %v1222
    %v1224 = vrot.slane %v1220, %v1223
    %v1226 = vsel %vm126, %v1214, 0
    %v1229 = vsel %vm126, %v1215, 0
    %1231 = vmatprep.subr.mxu0 0.0
    %1232 = vmatpush1.msra.mxu0 %v1216
    %1233 = vmatprep.subr.mxu0 0.0
    %1234 = vmatpush1.msra.mxu0 %v1217
    %1235 = vmatprep.subr.mxu0 0.0
    %1236 = vmatpush1.msra.mxu0 %v1218
    %1237 = vmatprep.subr.mxu0 0.0
    %1238 = vmatpush1.msra.mxu0 %v1219
    %1239 = vmatprep.subr.mxu0 0.0
    %1240 = vmatpush1.msra.mxu0 0.0
    %1241 = vmatprep.subr.mxu0 0.0
    %1242 = vmatpush1.msra.mxu0 0.0
    %1243 = vmatprep.subr.mxu0 0.0
    %1244 = vmatpush1.msra.mxu0 0.0
    %1245 = vmatprep.subr.mxu0 0.0
    %1246 = vmatpush1.msra.mxu0 0.0
    %1247 = vmatprep.subr.mxu0 0.0
    %1248 = vmatpush1.msra.mxu0 0.0
    %1249 = vmatprep.subr.mxu0 0.0
    %1250 = vmatpush1.msra.mxu0 0.0
    %1251 = vmatprep.subr.mxu0 0.0
    %1252 = vmatpush1.msra.mxu0 0.0
    %1253 = vmatprep.subr.mxu0 0.0
    %1254 = vmatpush1.msra.mxu0 0.0
    %1255 = vmatprep.subr.mxu0 0.0
    %1256 = vmatpush1.msra.mxu0 0.0
    %1257 = vmatprep.subr.mxu0 0.0
    %1258 = vmatpush1.msra.mxu0 0.0
    %1259 = vmatprep.subr.mxu0 0.0
    %1260 = vmatpush1.msra.mxu0 0.0
    %1261 = vmatprep.subr.mxu0 0.0
    %1262 = vmatpush1.msra.mxu0 0.0
    %1263 = vmatprep.subr.mxu0 0.0
    %1264 = vmatpush1.msra.mxu0 0.0
    %1265 = vmatprep.subr.mxu0 0.0
    %1266 = vmatpush1.msra.mxu0 0.0
    %1267 = vmatprep.subr.mxu0 0.0
    %1268 = vmatpush1.msra.mxu0 0.0
    %1269 = vmatprep.subr.mxu0 0.0
    %1270 = vmatpush1.msra.mxu0 0.0
    %1271 = vmatprep.subr.mxu0 0.0
    %1272 = vmatpush1.msra.mxu0 0.0
    %1273 = vmatprep.subr.mxu0 0.0
    %1274 = vmatpush1.msra.mxu0 0.0
    %1275 = vmatprep.subr.mxu0 0.0
    %1276 = vmatpush1.msra.mxu0 0.0
    %1277 = vmatprep.subr.mxu0 0.0
    %1278 = vmatpush1.msra.mxu0 0.0
    %1279 = vmatprep.subr.mxu0 0.0
    %1280 = vmatpush1.msra.mxu0 0.0
    %1281 = vmatprep.subr.mxu0 0.0
    %1282 = vmatpush1.msra.mxu0 0.0
    %1283 = vmatprep.subr.mxu0 0.0
    %1284 = vmatpush1.msra.mxu0 0.0
    %1285 = vmatprep.subr.mxu0 0.0
    %1286 = vmatpush1.msra.mxu0 0.0
    %1287 = vmatprep.subr.mxu0 0.0
    %1288 = vmatpush1.msra.mxu0 0.0
    %1289 = vmatprep.subr.mxu0 0.0
    %1290 = vmatpush1.msra.mxu0 0.0
    %1291 = vmatprep.subr.mxu0 0.0
    %1292 = vmatpush1.msra.mxu0 0.0
    %1293 = vmatprep.subr.mxu0 0.0
    %1294 = vmatpush1.msra.mxu0 0.0
    %1295 = vmatprep.mubr.f32.mxu0 0.0
    %1296 = vmatmul.mubr.f32.gmra.mrb[0].mxu0 %v1226
    %v1297 = vpop.f32.mrb[0].mxu0
    %v1298 = vadd.f32 %v1224, %v1297
    %v1299 = vpop.f32.mrb[0].mxu0
    %1300 = vmatprep.mubr.f32.mxu0 0.0
    %1301 = vmatmul.mubr.f32.gmra.mrb[0].mxu0 %v1229
    %v1302 = vpop.f32.mrb[0].mxu0
    %v1303 = vadd.f32 %v1224, %v1302
    %v1304 = vpop.f32.mrb[0].mxu0
    %1305 = vdwg.mxu0
    %v1306 = vld [vmem:[%s2 + $0x1a8] sm:$0xff]
    %v1307 = vld [vmem:[%s2 + $0x1b0] sm:$0xff]
    %v1308 = vld [vmem:[%s2 + $0x1b8] sm:$0xff]
    %v1309 = vld [vmem:[%s2 + $0x1c0] sm:$0xff]
    %v1310 = vld [vmem:[%s2 + $0x269] sm:$0x1]
    %v1311 = vlaneseq
    %v1312 = vshrl.u32 %v1311, 7
    %v1313 = vsub.s32 0, %v1312
    %v1314 = vrot.slane %v1310, %v1313
    %1315 = vmatprep.subr.mxu0 0.0
    %1316 = vmatpush1.msra.mxu0 %v1306
    %1317 = vmatprep.subr.mxu0 0.0
    %1318 = vmatpush1.msra.mxu0 %v1307
    %1319 = vmatprep.subr.mxu0 0.0
    %1320 = vmatpush1.msra.mxu0 %v1308
    %1321 = vmatprep.subr.mxu0 0.0
    %1322 = vmatpush1.msra.mxu0 %v1309
    %1323 = vmatprep.subr.mxu0 0.0
    %1324 = vmatpush1.msra.mxu0 0.0
    %1325 = vmatprep.subr.mxu0 0.0
    %1326 = vmatpush1.msra.mxu0 0.0
    %1327 = vmatprep.subr.mxu0 0.0
    %1328 = vmatpush1.msra.mxu0 0.0
    %1329 = vmatprep.subr.mxu0 0.0
    %1330 = vmatpush1.msra.mxu0 0.0
    %1331 = vmatprep.subr.mxu0 0.0
    %1332 = vmatpush1.msra.mxu0 0.0
    %1333 = vmatprep.subr.mxu0 0.0
    %1334 = vmatpush1.msra.mxu0 0.0
    %1335 = vmatprep.subr.mxu0 0.0
    %1336 = vmatpush1.msra.mxu0 0.0
    %1337 = vmatprep.subr.mxu0 0.0
    %1338 = vmatpush1.msra.mxu0 0.0
    %1339 = vmatprep.subr.mxu0 0.0
    %1340 = vmatpush1.msra.mxu0 0.0
    %1341 = vmatprep.subr.mxu0 0.0
    %1342 = vmatpush1.msra.mxu0 0.0
    %1343 = vmatprep.subr.mxu0 0.0
    %1344 = vmatpush1.msra.mxu0 0.0
    %1345 = vmatprep.subr.mxu0 0.0
    %1346 = vmatpush1.msra.mxu0 0.0
    %1347 = vmatprep.subr.mxu0 0.0
    %1348 = vmatpush1.msra.mxu0 0.0
    %1349 = vmatprep.subr.mxu0 0.0
    %1350 = vmatpush1.msra.mxu0 0.0
    %1351 = vmatprep.subr.mxu0 0.0
    %1352 = vmatpush1.msra.mxu0 0.0
    %1353 = vmatprep.subr.mxu0 0.0
    %1354 = vmatpush1.msra.mxu0 0.0
    %1355 = vmatprep.subr.mxu0 0.0
    %1356 = vmatpush1.msra.mxu0 0.0
    %1357 = vmatprep.subr.mxu0 0.0
    %1358 = vmatpush1.msra.mxu0 0.0
    %1359 = vmatprep.subr.mxu0 0.0
    %1360 = vmatpush1.msra.mxu0 0.0
    %1361 = vmatprep.subr.mxu0 0.0
    %1362 = vmatpush1.msra.mxu0 0.0
    %1363 = vmatprep.subr.mxu0 0.0
    %1364 = vmatpush1.msra.mxu0 0.0
    %1365 = vmatprep.subr.mxu0 0.0
    %1366 = vmatpush1.msra.mxu0 0.0
    %1367 = vmatprep.subr.mxu0 0.0
    %1368 = vmatpush1.msra.mxu0 0.0
    %1369 = vmatprep.subr.mxu0 0.0
    %1370 = vmatpush1.msra.mxu0 0.0
    %1371 = vmatprep.subr.mxu0 0.0
    %1372 = vmatpush1.msra.mxu0 0.0
    %1373 = vmatprep.subr.mxu0 0.0
    %1374 = vmatpush1.msra.mxu0 0.0
    %1375 = vmatprep.subr.mxu0 0.0
    %1376 = vmatpush1.msra.mxu0 0.0
    %1377 = vmatprep.subr.mxu0 0.0
    %1378 = vmatpush1.msra.mxu0 0.0
    %1379 = vmatprep.mubr.f32.mxu0 0.0
    %1380 = vmatmul.mubr.f32.gmra.mrb[0].mxu0 %v1226
    %v1381 = vpop.f32.mrb[0].mxu0
    %v1382 = vadd.f32 %v1314, %v1381
    %v1383 = vpop.f32.mrb[0].mxu0
    %1384 = vmatprep.mubr.f32.mxu0 0.0
    %1385 = vmatmul.mubr.f32.gmra.mrb[0].mxu0 %v1229
    %v1386 = vpop.f32.mrb[0].mxu0
    %v1387 = vadd.f32 %v1314, %v1386
    %v1388 = vpop.f32.mrb[0].mxu0
    %1389 = vdwg.mxu0
    %v1390 = vld [vmem:[%s2 + $0x1c8] sm:$0xff]
    %v1391 = vld [vmem:[%s2 + $0x1d0] sm:$0xff]
    %v1392 = vld [vmem:[%s2 + $0x1d8] sm:$0xff]
    %v1393 = vld [vmem:[%s2 + $0x1e0] sm:$0xff]
    %v1394 = vld [vmem:[%s2 + $0x26a] sm:$0x1]
    %v1395 = vlaneseq
    %v1396 = vshrl.u32 %v1395, 7
    %v1397 = vsub.s32 0, %v1396
    %v1398 = vrot.slane %v1394, %v1397
    %1399 = vmatprep.subr.mxu0 0.0
    %1400 = vmatpush1.msra.mxu0 %v1390
    %1401 = vmatprep.subr.mxu0 0.0
    %1402 = vmatpush1.msra.mxu0 %v1391
    %1403 = vmatprep.subr.mxu0 0.0
    %1404 = vmatpush1.msra.mxu0 %v1392
    %1405 = vmatprep.subr.mxu0 0.0
    %1406 = vmatpush1.msra.mxu0 %v1393
    %1407 = vmatprep.subr.mxu0 0.0
    %1408 = vmatpush1.msra.mxu0 0.0
    %1409 = vmatprep.subr.mxu0 0.0
    %1410 = vmatpush1.msra.mxu0 0.0
    %1411 = vmatprep.subr.mxu0 0.0
    %1412 = vmatpush1.msra.mxu0 0.0
    %1413 = vmatprep.subr.mxu0 0.0
    %1414 = vmatpush1.msra.mxu0 0.0
    %1415 = vmatprep.subr.mxu0 0.0
    %1416 = vmatpush1.msra.mxu0 0.0
    %1417 = vmatprep.subr.mxu0 0.0
    %1418 = vmatpush1.msra.mxu0 0.0
    %1419 = vmatprep.subr.mxu0 0.0
    %1420 = vmatpush1.msra.mxu0 0.0
    %1421 = vmatprep.subr.mxu0 0.0
    %1422 = vmatpush1.msra.mxu0 0.0
    %1423 = vmatprep.subr.mxu0 0.0
    %1424 = vmatpush1.msra.mxu0 0.0
    %1425 = vmatprep.subr.mxu0 0.0
    %1426 = vmatpush1.msra.mxu0 0.0
    %1427 = vmatprep.subr.mxu0 0.0
    %1428 = vmatpush1.msra.mxu0 0.0
    %1429 = vmatprep.subr.mxu0 0.0
    %1430 = vmatpush1.msra.mxu0 0.0
    %1431 = vmatprep.subr.mxu0 0.0
    %1432 = vmatpush1.msra.mxu0 0.0
    %1433 = vmatprep.subr.mxu0 0.0
    %1434 = vmatpush1.msra.mxu0 0.0
    %1435 = vmatprep.subr.mxu0 0.0
    %1436 = vmatpush1.msra.mxu0 0.0
    %1437 = vmatprep.subr.mxu0 0.0
    %1438 = vmatpush1.msra.mxu0 0.0
    %1439 = vmatprep.subr.mxu0 0.0
    %1440 = vmatpush1.msra.mxu0 0.0
    %1441 = vmatprep.subr.mxu0 0.0
    %1442 = vmatpush1.msra.mxu0 0.0
    %1443 = vmatprep.subr.mxu0 0.0
    %1444 = vmatpush1.msra.mxu0 0.0
    %1445 = vmatprep.subr.mxu0 0.0
    %1446 = vmatpush1.msra.mxu0 0.0
    %1447 = vmatprep.subr.mxu0 0.0
    %1448 = vmatpush1.msra.mxu0 0.0
    %1449 = vmatprep.subr.mxu0 0.0
    %1450 = vmatpush1.msra.mxu0 0.0
    %1451 = vmatprep.subr.mxu0 0.0
    %1452 = vmatpush1.msra.mxu0 0.0
    %1453 = vmatprep.subr.mxu0 0.0
    %1454 = vmatpush1.msra.mxu0 0.0
    %1455 = vmatprep.subr.mxu0 0.0
    %1456 = vmatpush1.msra.mxu0 0.0
    %1457 = vmatprep.subr.mxu0 0.0
    %1458 = vmatpush1.msra.mxu0 0.0
    %1459 = vmatprep.subr.mxu0 0.0
    %1460 = vmatpush1.msra.mxu0 0.0
    %1461 = vmatprep.subr.mxu0 0.0
    %1462 = vmatpush1.msra.mxu0 0.0
    %1463 = vmatprep.mubr.f32.mxu0 0.0
    %1464 = vmatmul.mubr.f32.gmra.mrb[0].mxu0 %v1226
    %v1465 = vpop.f32.mrb[0].mxu0
    %v1466 = vadd.f32 %v1398, %v1465
    %v1467 = vpop.f32.mrb[0].mxu0
    %1468 = vmatprep.mubr.f32.mxu0 0.0
    %1469 = vmatmul.mubr.f32.gmra.mrb[0].mxu0 %v1229
    %v1470 = vpop.f32.mrb[0].mxu0
    %v1471 = vadd.f32 %v1398, %v1470
    %v1472 = vpop.f32.mrb[0].mxu0
    %1473 = vdwg.mxu0
    %v1474 = vmul.f32 %v1298, %v174
    %v1475 = vmul.f32 %v1303, %v174
    %v1477 = vsel %vm126, %v1474, 0
    %v1480 = vsel %vm126, %v1475, 0
    %v1483 = vsel %vm126, %v1382, 0
    %v1486 = vsel %vm126, %v1387, 0
    %1488 = vmatprep.subr.mxu0 0.0
    %1489 = vmatpush1.xpose.msra.mxu0 %v1483
    %1490 = vmatprep.subr.mxu0 0.0
    %1491 = vmatpush1.xpose.msra.mxu0 %v1486
    %1492 = vmatprep.subr.mxu0 0.0
    %1493 = vmatpush1.xpose.msra.mxu0 0.0
    %1494 = vmatprep.subr.mxu0 0.0
    %1495 = vmatpush1.xpose.msra.mxu0 0.0
    %1496 = vmatprep.subr.mxu0 0.0
    %1497 = vmatpush1.xpose.msra.mxu0 0.0
    %1498 = vmatprep.subr.mxu0 0.0
    %1499 = vmatpush1.xpose.msra.mxu0 0.0
    %1500 = vmatprep.subr.mxu0 0.0
    %1501 = vmatpush1.xpose.msra.mxu0 0.0
    %1502 = vmatprep.subr.mxu0 0.0
    %1503 = vmatpush1.xpose.msra.mxu0 0.0
    %1504 = vmatprep.subr.mxu0 0.0
    %1505 = vmatpush1.xpose.msra.mxu0 0.0
    %1506 = vmatprep.subr.mxu0 0.0
    %1507 = vmatpush1.xpose.msra.mxu0 0.0
    %1508 = vmatprep.subr.mxu0 0.0
    %1509 = vmatpush1.xpose.msra.mxu0 0.0
    %1510 = vmatprep.subr.mxu0 0.0
    %1511 = vmatpush1.xpose.msra.mxu0 0.0
    %1512 = vmatprep.subr.mxu0 0.0
    %1513 = vmatpush1.xpose.msra.mxu0 0.0
    %1514 = vmatprep.subr.mxu0 0.0
    %1515 = vmatpush1.xpose.msra.mxu0 0.0
    %1516 = vmatprep.subr.mxu0 0.0
    %1517 = vmatpush1.xpose.msra.mxu0 0.0
    %1518 = vmatprep.subr.mxu0 0.0
    %1519 = vmatpush1.xpose.msra.mxu0 0.0
    %1520 = vmatprep.subr.mxu0 0.0
    %1521 = vmatpush1.xpose.msra.mxu0 0.0
    %1522 = vmatprep.subr.mxu0 0.0
    %1523 = vmatpush1.xpose.msra.mxu0 0.0
    %1524 = vmatprep.subr.mxu0 0.0
    %1525 = vmatpush1.xpose.msra.mxu0 0.0
    %1526 = vmatprep.subr.mxu0 0.0
    %1527 = vmatpush1.xpose.msra.mxu0 0.0
    %1528 = vmatprep.subr.mxu0 0.0
    %1529 = vmatpush1.xpose.msra.mxu0 0.0
    %1530 = vmatprep.subr.mxu0 0.0
    %1531 = vmatpush1.xpose.msra.mxu0 0.0
    %1532 = vmatprep.subr.mxu0 0.0
    %1533 = vmatpush1.xpose.msra.mxu0 0.0
    %1534 = vmatprep.subr.mxu0 0.0
    %1535 = vmatpush1.xpose.msra.mxu0 0.0
    %1536 = vmatprep.subr.mxu0 0.0
    %1537 = vmatpush1.xpose.msra.mxu0 0.0
    %1538 = vmatprep.subr.mxu0 0.0
    %1539 = vmatpush1.xpose.msra.mxu0 0.0
    %1540 = vmatprep.subr.mxu0 0.0
    %1541 = vmatpush1.xpose.msra.mxu0 0.0
    %1542 = vmatprep.subr.mxu0 0.0
    %1543 = vmatpush1.xpose.msra.mxu0 0.0
    %1544 = vmatprep.subr.mxu0 0.0
    %1545 = vmatpush1.xpose.msra.mxu0 0.0
    %1546 = vmatprep.subr.mxu0 0.0
    %1547 = vmatpush1.xpose.msra.mxu0 0.0
    %1548 = vmatprep.subr.mxu0 0.0
    %1549 = vmatpush1.xpose.msra.mxu0 0.0
    %1550 = vmatprep.subr.mxu0 0.0
    %1551 = vmatpush1.xpose.msra.mxu0 0.0
    %1552 = vmatprep.mubr.f32.mxu0 0.0
    %1553 = vmatmul.mubr.f32.gmra.mrb[0].mxu0 %v1477
    %v1554 = vpop.f32.mrb[0].mxu0
    %v1555 = vadd.f32 0.0, %v1554
    %v1556 = vpop.f32.mrb[0].mxu0
    %1557 = vmatprep.mubr.f32.mxu0 0.0
    %1558 = vmatmul.mubr.f32.gmra.mrb[0].mxu0 %v1480
    %v1559 = vpop.f32.mrb[0].mxu0
    %v1560 = vadd.f32 0.0, %v1559
    %v1561 = vpop.f32.mrb[0].mxu0
    %1562 = vdwg.mxu0
    %v1563 = vmul.f32 %v1555, 0.25
    %v1564 = vmul.f32 %v1560, 0.25
    %v1565 = vadd.f32 %v1563, %v180
    %v1566 = vadd.f32 %v1564, %v181
    %v1567 = vsel %vm533, %v1565, -inf
    %1568 = vmax.xlane.f32.xlu0 %v1567
    %v1569 = vpop.xlane.xlu0 %1568
    %v1570 = vsel %vm533, %v1566, -inf
    %1571 = vmax.xlane.f32.xlu0 %v1570
    %v1572 = vpop.xlane.xlu0 %1571
    %v1573 = vsub.f32 %v1565, %v1569
    %v1574 = vsub.f32 %v1566, %v1572
    %v1575 = vmul.f32 %v1573, 1.442695
    %v1576 = vpow.pop %v1575
    %v1577 = vmul.f32 %v1574, 1.442695
    %v1578 = vpow.pop %v1577
    %v1579 = vsel %vm533, %v1576, 0.0
    %1580 = vadd.xlane.f32.xlu0 %v1579
    %v1581 = vpop.xlane.xlu0 %1580
    %v1582 = vsel %vm533, %v1578, 0.0
    %1583 = vadd.xlane.f32.xlu0 %v1582
    %v1584 = vpop.xlane.xlu0 %1583
    %v1585 = vrcp.pop %v1581
    %v1586 = vrcp.pop %v1584
    %v1587 = vmul.f32 %v1576, %v1585
    %v1588 = vmul.f32 %v1578, %v1586
    %v1589 = vmul.f32 %v1466, %v174
    %v1590 = vmul.f32 %v1471, %v174
    %v1591 = vmul.f32 %v1298, %v179
    %v1592 = vmul.f32 %v1303, %v179
    %v1594 = vsel %vm126, %v1591, 0
    %v1597 = vsel %vm126, %v1592, 0
    %1599 = vmatprep.subr.mxu0 0.0
    %1600 = vmatpush1.xpose.msra.mxu0 %v1483
    %1601 = vmatprep.subr.mxu0 0.0
    %1602 = vmatpush1.xpose.msra.mxu0 %v1486
    %1603 = vmatprep.subr.mxu0 0.0
    %1604 = vmatpush1.xpose.msra.mxu0 0.0
    %1605 = vmatprep.subr.mxu0 0.0
    %1606 = vmatpush1.xpose.msra.mxu0 0.0
    %1607 = vmatprep.subr.mxu0 0.0
    %1608 = vmatpush1.xpose.msra.mxu0 0.0
    %1609 = vmatprep.subr.mxu0 0.0
    %1610 = vmatpush1.xpose.msra.mxu0 0.0
    %1611 = vmatprep.subr.mxu0 0.0
    %1612 = vmatpush1.xpose.msra.mxu0 0.0
    %1613 = vmatprep.subr.mxu0 0.0
    %1614 = vmatpush1.xpose.msra.mxu0 0.0
    %1615 = vmatprep.subr.mxu0 0.0
    %1616 = vmatpush1.xpose.msra.mxu0 0.0
    %1617 = vmatprep.subr.mxu0 0.0
    %1618 = vmatpush1.xpose.msra.mxu0 0.0
    %1619 = vmatprep.subr.mxu0 0.0
    %1620 = vmatpush1.xpose.msra.mxu0 0.0
    %1621 = vmatprep.subr.mxu0 0.0
    %1622 = vmatpush1.xpose.msra.mxu0 0.0
    %1623 = vmatprep.subr.mxu0 0.0
    %1624 = vmatpush1.xpose.msra.mxu0 0.0
    %1625 = vmatprep.subr.mxu0 0.0
    %1626 = vmatpush1.xpose.msra.mxu0 0.0
    %1627 = vmatprep.subr.mxu0 0.0
    %1628 = vmatpush1.xpose.msra.mxu0 0.0
    %1629 = vmatprep.subr.mxu0 0.0
    %1630 = vmatpush1.xpose.msra.mxu0 0.0
    %1631 = vmatprep.subr.mxu0 0.0
    %1632 = vmatpush1.xpose.msra.mxu0 0.0
    %1633 = vmatprep.subr.mxu0 0.0
    %1634 = vmatpush1.xpose.msra.mxu0 0.0
    %1635 = vmatprep.subr.mxu0 0.0
    %1636 = vmatpush1.xpose.msra.mxu0 0.0
    %1637 = vmatprep.subr.mxu0 0.0
    %1638 = vmatpush1.xpose.msra.mxu0 0.0
    %1639 = vmatprep.subr.mxu0 0.0
    %1640 = vmatpush1.xpose.msra.mxu0 0.0
    %1641 = vmatprep.subr.mxu0 0.0
    %1642 = vmatpush1.xpose.msra.mxu0 0.0
    %1643 = vmatprep.subr.mxu0 0.0
    %1644 = vmatpush1.xpose.msra.mxu0 0.0
    %1645 = vmatprep.subr.mxu0 0.0
    %1646 = vmatpush1.xpose.msra.mxu0 0.0
    %1647 = vmatprep.subr.mxu0 0.0
    %1648 = vmatpush1.xpose.msra.mxu0 0.0
    %1649 = vmatprep.subr.mxu0 0.0
    %1650 = vmatpush1.xpose.msra.mxu0 0.0
    %1651 = vmatprep.subr.mxu0 0.0
    %1652 = vmatpush1.xpose.msra.mxu0 0.0
    %1653 = vmatprep.subr.mxu0 0.0
    %1654 = vmatpush1.xpose.msra.mxu0 0.0
    %1655 = vmatprep.subr.mxu0 0.0
    %1656 = vmatpush1.xpose.msra.mxu0 0.0
    %1657 = vmatprep.subr.mxu0 0.0
    %1658 = vmatpush1.xpose.msra.mxu0 0.0
    %1659 = vmatprep.subr.mxu0 0.0
    %1660 = vmatpush1.xpose.msra.mxu0 0.0
    %1661 = vmatprep.subr.mxu0 0.0
    %1662 = vmatpush1.xpose.msra.mxu0 0.0
    %1663 = vmatprep.mubr.f32.mxu0 0.0
    %1664 = vmatmul.mubr.f32.gmra.mrb[0].mxu0 %v1594
    %v1665 = vpop.f32.mrb[0].mxu0
    %v1666 = vadd.f32 0.0, %v1665
    %v1667 = vpop.f32.mrb[0].mxu0
    %1668 = vmatprep.mubr.f32.mxu0 0.0
    %1669 = vmatmul.mubr.f32.gmra.mrb[0].mxu0 %v1597
    %v1670 = vpop.f32.mrb[0].mxu0
    %v1671 = vadd.f32 0.0, %v1670
    %v1672 = vpop.f32.mrb[0].mxu0
    %1673 = vdwg.mxu0
    %v1674 = vmul.f32 %v1666, 0.25
    %v1675 = vmul.f32 %v1671, 0.25
    %v1676 = vadd.f32 %v1674, %v180
    %v1677 = vadd.f32 %v1675, %v181
    %v1678 = vsel %vm533, %v1676, -inf
    %1679 = vmax.xlane.f32.xlu0 %v1678
    %v1680 = vpop.xlane.xlu0 %1679
    %v1681 = vsel %vm533, %v1677, -inf
    %1682 = vmax.xlane.f32.xlu0 %v1681
    %v1683 = vpop.xlane.xlu0 %1682
    %v1684 = vsub.f32 %v1676, %v1680
    %v1685 = vsub.f32 %v1677, %v1683
    %v1686 = vmul.f32 %v1684, 1.442695
    %v1687 = vpow.pop %v1686
    %v1688 = vmul.f32 %v1685, 1.442695
    %v1689 = vpow.pop %v1688
    %v1690 = vsel %vm533, %v1687, 0.0
    %1691 = vadd.xlane.f32.xlu0 %v1690
    %v1692 = vpop.xlane.xlu0 %1691
    %v1693 = vsel %vm533, %v1689, 0.0
    %1694 = vadd.xlane.f32.xlu0 %v1693
    %v1695 = vpop.xlane.xlu0 %1694
    %v1696 = vrcp.pop %v1692
    %v1697 = vrcp.pop %v1695
    %v1698 = vmul.f32 %v1687, %v1696
    %v1699 = vmul.f32 %v1689, %v1697
    %v1700 = vmul.f32 %v1466, %v179
    %v1701 = vmul.f32 %v1471, %v179
    %v1703 = vsel %vm533, %v1698, 0
    %v1706 = vsel %vm533, %v1699, 0
    %1708 = vmatprep.subr.mxu0 0.0
    %1709 = vmatpush1.msra.mxu0 %v1700
    %1710 = vmatprep.subr.mxu0 0.0
    %1711 = vmatpush1.msra.mxu0 %v1701
    %1712 = vmatprep.subr.mxu0 0.0
    %1713 = vmatpush1.msra.mxu0 0.0
    %1714 = vmatprep.subr.mxu0 0.0
    %1715 = vmatpush1.msra.mxu0 0.0
    %1716 = vmatprep.subr.mxu0 0.0
    %1717 = vmatpush1.msra.mxu0 0.0
    %1718 = vmatprep.subr.mxu0 0.0
    %1719 = vmatpush1.msra.mxu0 0.0
    %1720 = vmatprep.subr.mxu0 0.0
    %1721 = vmatpush1.msra.mxu0 0.0
    %1722 = vmatprep.subr.mxu0 0.0
    %1723 = vmatpush1.msra.mxu0 0.0
    %1724 = vmatprep.subr.mxu0 0.0
    %1725 = vmatpush1.msra.mxu0 0.0
    %1726 = vmatprep.subr.mxu0 0.0
    %1727 = vmatpush1.msra.mxu0 0.0
    %1728 = vmatprep.subr.mxu0 0.0
    %1729 = vmatpush1.msra.mxu0 0.0
    %1730 = vmatprep.subr.mxu0 0.0
    %1731 = vmatpush1.msra.mxu0 0.0
    %1732 = vmatprep.subr.mxu0 0.0
    %1733 = vmatpush1.msra.mxu0 0.0
    %1734 = vmatprep.subr.mxu0 0.0
    %1735 = vmatpush1.msra.mxu0 0.0
    %1736 = vmatprep.subr.mxu0 0.0
    %1737 = vmatpush1.msra.mxu0 0.0
    %1738 = vmatprep.subr.mxu0 0.0
    %1739 = vmatpush1.msra.mxu0 0.0
    %1740 = vmatprep.subr.mxu0 0.0
    %1741 = vmatpush1.msra.mxu0 0.0
    %1742 = vmatprep.subr.mxu0 0.0
    %1743 = vmatpush1.msra.mxu0 0.0
    %1744 = vmatprep.subr.mxu0 0.0
    %1745 = vmatpush1.msra.mxu0 0.0
    %1746 = vmatprep.subr.mxu0 0.0
    %1747 = vmatpush1.msra.mxu0 0.0
    %1748 = vmatprep.subr.mxu0 0.0
    %1749 = vmatpush1.msra.mxu0 0.0
    %1750 = vmatprep.subr.mxu0 0.0
    %1751 = vmatpush1.msra.mxu0 0.0
    %1752 = vmatprep.subr.mxu0 0.0
    %1753 = vmatpush1.msra.mxu0 0.0
    %1754 = vmatprep.subr.mxu0 0.0
    %1755 = vmatpush1.msra.mxu0 0.0
    %1756 = vmatprep.subr.mxu0 0.0
    %1757 = vmatpush1.msra.mxu0 0.0
    %1758 = vmatprep.subr.mxu0 0.0
    %1759 = vmatpush1.msra.mxu0 0.0
    %1760 = vmatprep.subr.mxu0 0.0
    %1761 = vmatpush1.msra.mxu0 0.0
    %1762 = vmatprep.subr.mxu0 0.0
    %1763 = vmatpush1.msra.mxu0 0.0
    %1764 = vmatprep.subr.mxu0 0.0
    %1765 = vmatpush1.msra.mxu0 0.0
    %1766 = vmatprep.subr.mxu0 0.0
    %1767 = vmatpush1.msra.mxu0 0.0
    %1768 = vmatprep.subr.mxu0 0.0
    %1769 = vmatpush1.msra.mxu0 0.0
    %1770 = vmatprep.subr.mxu0 0.0
    %1771 = vmatpush1.msra.mxu0 0.0
    %1772 = vmatprep.mubr.f32.mxu0 0.0
    %1773 = vmatmul.mubr.f32.gmra.mrb[0].mxu0 %v1703
    %v1774 = vpop.f32.mrb[0].mxu0
    %v1775 = vadd.f32 0.0, %v1774
    %v1776 = vpop.f32.mrb[0].mxu0
    %1777 = vmatprep.mubr.f32.mxu0 0.0
    %1778 = vmatmul.mubr.f32.gmra.mrb[0].mxu0 %v1706
    %v1779 = vpop.f32.mrb[0].mxu0
    %v1780 = vadd.f32 0.0, %v1779
    %v1781 = vpop.f32.mrb[0].mxu0
    %1782 = vdwg.mxu0
    %v1784 = vsel %vm533, %v1587, 0
    %v1787 = vsel %vm533, %v1588, 0
    %1789 = vmatprep.subr.mxu0 0.0
    %1790 = vmatpush1.msra.mxu0 %v1589
    %1791 = vmatprep.subr.mxu0 0.0
    %1792 = vmatpush1.msra.mxu0 %v1590
    %1793 = vmatprep.subr.mxu0 0.0
    %1794 = vmatpush1.msra.mxu0 0.0
    %1795 = vmatprep.subr.mxu0 0.0
    %1796 = vmatpush1.msra.mxu0 0.0
    %1797 = vmatprep.subr.mxu0 0.0
    %1798 = vmatpush1.msra.mxu0 0.0
    %1799 = vmatprep.subr.mxu0 0.0
    %1800 = vmatpush1.msra.mxu0 0.0
    %1801 = vmatprep.subr.mxu0 0.0
    %1802 = vmatpush1.msra.mxu0 0.0
    %1803 = vmatprep.subr.mxu0 0.0
    %1804 = vmatpush1.msra.mxu0 0.0
    %1805 = vmatprep.subr.mxu0 0.0
    %1806 = vmatpush1.msra.mxu0 0.0
    %1807 = vmatprep.subr.mxu0 0.0
    %1808 = vmatpush1.msra.mxu0 0.0
    %1809 = vmatprep.subr.mxu0 0.0
    %1810 = vmatpush1.msra.mxu0 0.0
    %1811 = vmatprep.subr.mxu0 0.0
    %1812 = vmatpush1.msra.mxu0 0.0
    %1813 = vmatprep.subr.mxu0 0.0
    %1814 = vmatpush1.msra.mxu0 0.0
    %1815 = vmatprep.subr.mxu0 0.0
    %1816 = vmatpush1.msra.mxu0 0.0
    %1817 = vmatprep.subr.mxu0 0.0
    %1818 = vmatpush1.msra.mxu0 0.0
    %1819 = vmatprep.subr.mxu0 0.0
    %1820 = vmatpush1.msra.mxu0 0.0
    %1821 = vmatprep.subr.mxu0 0.0
    %1822 = vmatpush1.msra.mxu0 0.0
    %1823 = vmatprep.subr.mxu0 0.0
    %1824 = vmatpush1.msra.mxu0 0.0
    %1825 = vmatprep.subr.mxu0 0.0
    %1826 = vmatpush1.msra.mxu0 0.0
    %1827 = vmatprep.subr.mxu0 0.0
    %1828 = vmatpush1.msra.mxu0 0.0
    %1829 = vmatprep.subr.mxu0 0.0
    %1830 = vmatpush1.msra.mxu0 0.0
    %1831 = vmatprep.subr.mxu0 0.0
    %1832 = vmatpush1.msra.mxu0 0.0
    %1833 = vmatprep.subr.mxu0 0.0
    %1834 = vmatpush1.msra.mxu0 0.0
    %1835 = vmatprep.subr.mxu0 0.0
    %1836 = vmatpush1.msra.mxu0 0.0
    %1837 = vmatprep.subr.mxu0 0.0
    %1838 = vmatpush1.msra.mxu0 0.0
    %1839 = vmatprep.subr.mxu0 0.0
    %1840 = vmatpush1.msra.mxu0 0.0
    %1841 = vmatprep.subr.mxu0 0.0
    %1842 = vmatpush1.msra.mxu0 0.0
    %1843 = vmatprep.subr.mxu0 0.0
    %1844 = vmatpush1.msra.mxu0 0.0
    %1845 = vmatprep.subr.mxu0 0.0
    %1846 = vmatpush1.msra.mxu0 0.0
    %1847 = vmatprep.subr.mxu0 0.0
    %1848 = vmatpush1.msra.mxu0 0.0
    %1849 = vmatprep.subr.mxu0 0.0
    %1850 = vmatpush1.msra.mxu0 0.0
    %1851 = vmatprep.subr.mxu0 0.0
    %1852 = vmatpush1.msra.mxu0 0.0
    %1853 = vmatprep.mubr.f32.mxu0 0.0
    %1854 = vmatmul.mubr.f32.gmra.mrb[0].mxu0 %v1784
    %v1855 = vpop.f32.mrb[0].mxu0
    %v1856 = vadd.f32 %v1775, %v1855
    %v1857 = vpop.f32.mrb[0].mxu0
    %1858 = vmatprep.mubr.f32.mxu0 0.0
    %1859 = vmatmul.mubr.f32.gmra.mrb[0].mxu0 %v1787
    %v1860 = vpop.f32.mrb[0].mxu0
    %v1861 = vadd.f32 %v1780, %v1860
    %v1862 = vpop.f32.mrb[0].mxu0
    %1863 = vdwg.mxu0
    %v1864 = vld [vmem:[%s2 + $0x1e8] sm:$0xff]
    %v1865 = vld [vmem:[%s2 + $0x1f0] sm:$0xff]
    %v1866 = vld [vmem:[%s2 + $0x1f8] sm:$0xff]
    %v1867 = vld [vmem:[%s2 + $0x200] sm:$0xff]
    %v1868 = vld [vmem:[%s2 + $0x26b] sm:$0x1]
    %v1869 = vlaneseq
    %v1870 = vshrl.u32 %v1869, 7
    %v1871 = vsub.s32 0, %v1870
    %v1872 = vrot.slane %v1868, %v1871
    %v1874 = vsel %vm126, %v1856, 0
    %v1877 = vsel %vm126, %v1861, 0
    %1879 = vmatprep.subr.mxu0 0.0
    %1880 = vmatpush1.msra.mxu0 %v1864
    %1881 = vmatprep.subr.mxu0 0.0
    %1882 = vmatpush1.msra.mxu0 %v1865
    %1883 = vmatprep.subr.mxu0 0.0
    %1884 = vmatpush1.msra.mxu0 %v1866
    %1885 = vmatprep.subr.mxu0 0.0
    %1886 = vmatpush1.msra.mxu0 %v1867
    %1887 = vmatprep.subr.mxu0 0.0
    %1888 = vmatpush1.msra.mxu0 0.0
    %1889 = vmatprep.subr.mxu0 0.0
    %1890 = vmatpush1.msra.mxu0 0.0
    %1891 = vmatprep.subr.mxu0 0.0
    %1892 = vmatpush1.msra.mxu0 0.0
    %1893 = vmatprep.subr.mxu0 0.0
    %1894 = vmatpush1.msra.mxu0 0.0
    %1895 = vmatprep.subr.mxu0 0.0
    %1896 = vmatpush1.msra.mxu0 0.0
    %1897 = vmatprep.subr.mxu0 0.0
    %1898 = vmatpush1.msra.mxu0 0.0
    %1899 = vmatprep.subr.mxu0 0.0
    %1900 = vmatpush1.msra.mxu0 0.0
    %1901 = vmatprep.subr.mxu0 0.0
    %1902 = vmatpush1.msra.mxu0 0.0
    %1903 = vmatprep.subr.mxu0 0.0
    %1904 = vmatpush1.msra.mxu0 0.0
    %1905 = vmatprep.subr.mxu0 0.0
    %1906 = vmatpush1.msra.mxu0 0.0
    %1907 = vmatprep.subr.mxu0 0.0
    %1908 = vmatpush1.msra.mxu0 0.0
    %1909 = vmatprep.subr.mxu0 0.0
    %1910 = vmatpush1.msra.mxu0 0.0
    %1911 = vmatprep.subr.mxu0 0.0
    %1912 = vmatpush1.msra.mxu0 0.0
    %1913 = vmatprep.subr.mxu0 0.0
    %1914 = vmatpush1.msra.mxu0 0.0
    %1915 = vmatprep.subr.mxu0 0.0
    %1916 = vmatpush1.msra.mxu0 0.0
    %1917 = vmatprep.subr.mxu0 0.0
    %1918 = vmatpush1.msra.mxu0 0.0
    %1919 = vmatprep.subr.mxu0 0.0
    %1920 = vmatpush1.msra.mxu0 0.0
    %1921 = vmatprep.subr.mxu0 0.0
    %1922 = vmatpush1.msra.mxu0 0.0
    %1923 = vmatprep.subr.mxu0 0.0
    %1924 = vmatpush1.msra.mxu0 0.0
    %1925 = vmatprep.subr.mxu0 0.0
    %1926 = vmatpush1.msra.mxu0 0.0
    %1927 = vmatprep.subr.mxu0 0.0
    %1928 = vmatpush1.msra.mxu0 0.0
    %1929 = vmatprep.subr.mxu0 0.0
    %1930 = vmatpush1.msra.mxu0 0.0
    %1931 = vmatprep.subr.mxu0 0.0
    %1932 = vmatpush1.msra.mxu0 0.0
    %1933 = vmatprep.subr.mxu0 0.0
    %1934 = vmatpush1.msra.mxu0 0.0
    %1935 = vmatprep.subr.mxu0 0.0
    %1936 = vmatpush1.msra.mxu0 0.0
    %1937 = vmatprep.subr.mxu0 0.0
    %1938 = vmatpush1.msra.mxu0 0.0
    %1939 = vmatprep.subr.mxu0 0.0
    %1940 = vmatpush1.msra.mxu0 0.0
    %1941 = vmatprep.subr.mxu0 0.0
    %1942 = vmatpush1.msra.mxu0 0.0
    %1943 = vmatprep.mubr.f32.mxu0 0.0
    %1944 = vmatmul.mubr.f32.gmra.mrb[0].mxu0 %v1874
    %v1945 = vpop.f32.mrb[0].mxu0
    %v1946 = vadd.f32 %v1872, %v1945
    %v1947 = vpop.f32.mrb[0].mxu0
    %1948 = vmatprep.mubr.f32.mxu0 0.0
    %1949 = vmatmul.mubr.f32.gmra.mrb[0].mxu0 %v1877
    %v1950 = vpop.f32.mrb[0].mxu0
    %v1951 = vadd.f32 %v1872, %v1950
    %v1952 = vpop.f32.mrb[0].mxu0
    %1953 = vdwg.mxu0
    %v1954 = vadd.f32 %v1946, %v1214
    %v1955 = vadd.f32 %v1951, %v1215
    %v1956 = vld [vmem:[%s2 + $0x26c] sm:$0x1]
    %v1957 = vld [vmem:[%s2 + $0x26d] sm:$0x1]
    %v1958 = vsel %vm126, %v1954, 0.0
    %1959 = vadd.xlane.f32.xlu0 %v1958
    %v1960 = vpop.xlane.xlu0 %1959
    %v1961 = vsel %vm126, %v1955, 0.0
    %1962 = vadd.xlane.f32.xlu0 %v1961
    %v1963 = vpop.xlane.xlu0 %1962
    %v1964 = vmul.f32 %v1960, %v133
    %v1965 = vmul.f32 %v1963, %v133
    %v1966 = vmul.f32 %v1954, %v1954
    %v1967 = vmul.f32 %v1955, %v1955
    %v1968 = vsel %vm126, %v1966, 0.0
    %1969 = vadd.xlane.f32.xlu0 %v1968
    %v1970 = vpop.xlane.xlu0 %1969
    %v1971 = vsel %vm126, %v1967, 0.0
    %1972 = vadd.xlane.f32.xlu0 %v1971
    %v1973 = vpop.xlane.xlu0 %1972
    %v1974 = vmul.f32 %v1970, %v133
    %v1975 = vmul.f32 %v1973, %v133
    %v1976 = vmul.f32 %v1964, %v1964
    %v1977 = vmul.f32 %v1965, %v1965
    %v1978 = vsub.f32 %v1974, %v1976
    %v1979 = vsub.f32 %v1975, %v1977
    %v1980 = vsub.f32 %v1954, %v1964
    %v1981 = vsub.f32 %v1955, %v1965
    %v1982 = vadd.f32 %v1978, 1e-12
    %v1983 = vadd.f32 %v1979, 1e-12
    %v1984 = vrsqrt.pop %v1982
    %v1985 = vrsqrt.pop %v1983
    %v1986 = vmul.f32 %v1980, %v1984
    %v1987 = vmul.f32 %v1981, %v1985
    %v1988 = vlaneseq
    %v1989 = vshrl.u32 %v1988, 7
    %v1990 = vsub.s32 0, %v1989
    %v1991 = vrot.slane %v1956, %v1990
    %v1992 = vmul.f32 %v1986, %v1991
    %v1993 = vmul.f32 %v1987, %v1991
    %v1994 = vlaneseq
    %v1995 = vshrl.u32 %v1994, 7
    %v1996 = vsub.s32 0, %v1995
    %v1997 = vrot.slane %v1957, %v1996
    %v1998 = vadd.f32 %v1992, %v1997
    %v1999 = vadd.f32 %v1993, %v1997
    %v2000 = vld [vmem:[%s2 + $0x208] sm:$0xff]
    %v2001 = vld [vmem:[%s2 + $0x210] sm:$0xff]
    %v2002 = vld [vmem:[%s2 + $0x218] sm:$0xff]
    %v2003 = vld [vmem:[%s2 + $0x220] sm:$0xff]
    %v2004 = vld [vmem:[%s2 + $0x26e] sm:$0x1]
    %v2005 = vlaneseq
    %v2006 = vshrl.u32 %v2005, 7
    %v2007 = vsub.s32 0, %v2006
    %v2008 = vrot.slane %v2004, %v2007
    %v2010 = vsel %vm126, %v1998, 0
    %v2013 = vsel %vm126, %v1999, 0
    %2015 = vmatprep.subr.mxu0 0.0
    %2016 = vmatpush1.msra.mxu0 %v2000
    %2017 = vmatprep.subr.mxu0 0.0
    %2018 = vmatpush1.msra.mxu0 %v2001
    %2019 = vmatprep.subr.mxu0 0.0
    %2020 = vmatpush1.msra.mxu0 %v2002
    %2021 = vmatprep.subr.mxu0 0.0
    %2022 = vmatpush1.msra.mxu0 %v2003
    %2023 = vmatprep.subr.mxu0 0.0
    %2024 = vmatpush1.msra.mxu0 0.0
    %2025 = vmatprep.subr.mxu0 0.0
    %2026 = vmatpush1.msra.mxu0 0.0
    %2027 = vmatprep.subr.mxu0 0.0
    %2028 = vmatpush1.msra.mxu0 0.0
    %2029 = vmatprep.subr.mxu0 0.0
    %2030 = vmatpush1.msra.mxu0 0.0
    %2031 = vmatprep.subr.mxu0 0.0
    %2032 = vmatpush1.msra.mxu0 0.0
    %2033 = vmatprep.subr.mxu0 0.0
    %2034 = vmatpush1.msra.mxu0 0.0
    %2035 = vmatprep.subr.mxu0 0.0
    %2036 = vmatpush1.msra.mxu0 0.0
    %2037 = vmatprep.subr.mxu0 0.0
    %2038 = vmatpush1.msra.mxu0 0.0
    %2039 = vmatprep.subr.mxu0 0.0
    %2040 = vmatpush1.msra.mxu0 0.0
    %2041 = vmatprep.subr.mxu0 0.0
    %2042 = vmatpush1.msra.mxu0 0.0
    %2043 = vmatprep.subr.mxu0 0.0
    %2044 = vmatpush1.msra.mxu0 0.0
    %2045 = vmatprep.subr.mxu0 0.0
    %2046 = vmatpush1.msra.mxu0 0.0
    %2047 = vmatprep.subr.mxu0 0.0
    %2048 = vmatpush1.msra.mxu0 0.0
    %2049 = vmatprep.subr.mxu0 0.0
    %2050 = vmatpush1.msra.mxu0 0.0
    %2051 = vmatprep.subr.mxu0 0.0
    %2052 = vmatpush1.msra.mxu0 0.0
    %2053 = vmatprep.subr.mxu0 0.0
    %2054 = vmatpush1.msra.mxu0 0.0
    %2055 = vmatprep.subr.mxu0 0.0
    %2056 = vmatpush1.msra.mxu0 0.0
    %2057 = vmatprep.subr.mxu0 0.0
    %2058 = vmatpush1.msra.mxu0 0.0
    %2059 = vmatprep.subr.mxu0 0.0
    %2060 = vmatpush1.msra.mxu0 0.0
    %2061 = vmatprep.subr.mxu0 0.0
    %2062 = vmatpush1.msra.mxu0 0.0
    %2063 = vmatprep.subr.mxu0 0.0
    %2064 = vmatpush1.msra.mxu0 0.0
    %2065 = vmatprep.subr.mxu0 0.0
    %2066 = vmatpush1.msra.mxu0 0.0
    %2067 = vmatprep.subr.mxu0 0.0
    %2068 = vmatpush1.msra.mxu0 0.0
    %2069 = vmatprep.subr.mxu0 0.0
    %2070 = vmatpush1.msra.mxu0 0.0
    %2071 = vmatprep.subr.mxu0 0.0
    %2072 = vmatpush1.msra.mxu0 0.0
    %2073 = vmatprep.subr.mxu0 0.0
    %2074 = vmatpush1.msra.mxu0 0.0
    %2075 = vmatprep.subr.mxu0 0.0
    %2076 = vmatpush1.msra.mxu0 0.0
    %2077 = vmatprep.subr.mxu0 0.0
    %2078 = vmatpush1.msra.mxu0 0.0
    %2079 = vmatprep.mubr.f32.mxu0 0.0
    %2080 = vmatmul.mubr.f32.gmra.mrb[0].mxu0 %v2010
    %v2081 = vpop.f32.mrb[0].mxu0
    %v2082 = vadd.f32 %v2008, %v2081
    %v2083 = vpop.f32.mrb[0].mxu0
    %2084 = vmatprep.mubr.f32.mxu0 0.0
    %2085 = vmatmul.mubr.f32.gmra.mrb[0].mxu0 %v2013
    %v2086 = vpop.f32.mrb[0].mxu0
    %v2087 = vadd.f32 %v2008, %v2086
    %v2088 = vpop.f32.mrb[0].mxu0
    %2089 = vdwg.mxu0
    %v2090 = vmul.f32 %v2082, 0.5
    %v2091 = vmul.f32 %v2087, 0.5
    %v2092 = vmul.f32 %v2082, 0.044715
    %v2093 = vmul.f32 %v2087, 0.044715
    %v2094 = vmul.f32 %v2092, %v2082
    %v2095 = vmul.f32 %v2093, %v2087
    %v2096 = vmul.f32 %v2094, %v2082
    %v2097 = vmul.f32 %v2095, %v2087
    %v2098 = vadd.f32 %v2082, %v2096
    %v2099 = vadd.f32 %v2087, %v2097
    %v2100 = vmul.f32 %v2098, 0.7978846
    %v2101 = vmul.f32 %v2099, 0.7978846
    %v2102 = vtanh.pop %v2100
    %v2103 = vtanh.pop %v2101
    %v2104 = vadd.f32 %v2102, 1.0
    %v2105 = vadd.f32 %v2103, 1.0
    %v2106 = vmul.f32 %v2090, %v2104
    %v2107 = vmul.f32 %v2091, %v2105
    %v2108 = vld [vmem:[%s2 + $0x228] sm:$0xff]
    %v2109 = vld [vmem:[%s2 + $0x230] sm:$0xff]
    %v2110 = vld [vmem:[%s2 + $0x238] sm:$0xff]
    %v2111 = vld [vmem:[%s2 + $0x240] sm:$0xff]
    %v2112 = vld [vmem:[%s2 + $0x248] sm:$0xff]
    %v2113 = vld [vmem:[%s2 + $0x250] sm:$0xff]
    %v2114 = vld [vmem:[%s2 + $0x258] sm:$0xff]
    %v2115 = vld [vmem:[%s2 + $0x260] sm:$0xff]
    %v2116 = vld [vmem:[%s2 + $0x26f] sm:$0x1]
    %v2117 = vlaneseq
    %v2118 = vshrl.u32 %v2117, 7
    %v2119 = vsub.s32 0, %v2118
    %v2120 = vrot.slane %v2116, %v2119
    %v2122 = vsel %vm1088, %v2106, 0
    %v2125 = vsel %vm1088, %v2107, 0
    %2127 = vmatprep.subr.mxu0 0.0
    %2128 = vmatpush1.msra.mxu0 %v2108
    %2129 = vmatprep.subr.mxu0 0.0
    %2130 = vmatpush1.msra.mxu0 %v2109
    %2131 = vmatprep.subr.mxu0 0.0
    %2132 = vmatpush1.msra.mxu0 %v2110
    %2133 = vmatprep.subr.mxu0 0.0
    %2134 = vmatpush1.msra.mxu0 %v2111
    %2135 = vmatprep.subr.mxu0 0.0
    %2136 = vmatpush1.msra.mxu0 %v2112
    %2137 = vmatprep.subr.mxu0 0.0
    %2138 = vmatpush1.msra.mxu0 %v2113
    %2139 = vmatprep.subr.mxu0 0.0
    %2140 = vmatpush1.msra.mxu0 %v2114
    %2141 = vmatprep.subr.mxu0 0.0
    %2142 = vmatpush1.msra.mxu0 %v2115
    %2143 = vmatprep.subr.mxu0 0.0
    %2144 = vmatpush1.msra.mxu0 0.0
    %2145 = vmatprep.subr.mxu0 0.0
    %2146 = vmatpush1.msra.mxu0 0.0
    %2147 = vmatprep.subr.mxu0 0.0
    %2148 = vmatpush1.msra.mxu0 0.0
    %2149 = vmatprep.subr.mxu0 0.0
    %2150 = vmatpush1.msra.mxu0 0.0
    %2151 = vmatprep.subr.mxu0 0.0
    %2152 = vmatpush1.msra.mxu0 0.0
    %2153 = vmatprep.subr.mxu0 0.0
    %2154 = vmatpush1.msra.mxu0 0.0
    %2155 = vmatprep.subr.mxu0 0.0
    %2156 = vmatpush1.msra.mxu0 0.0
    %2157 = vmatprep.subr.mxu0 0.0
    %2158 = vmatpush1.msra.mxu0 0.0
    %2159 = vmatprep.subr.mxu0 0.0
    %2160 = vmatpush1.msra.mxu0 0.0
    %2161 = vmatprep.subr.mxu0 0.0
    %2162 = vmatpush1.msra.mxu0 0.0
    %2163 = vmatprep.subr.mxu0 0.0
    %2164 = vmatpush1.msra.mxu0 0.0
    %2165 = vmatprep.subr.mxu0 0.0
    %2166 = vmatpush1.msra.mxu0 0.0
    %2167 = vmatprep.subr.mxu0 0.0
    %2168 = vmatpush1.msra.mxu0 0.0
    %2169 = vmatprep.subr.mxu0 0.0
    %2170 = vmatpush1.msra.mxu0 0.0
    %2171 = vmatprep.subr.mxu0 0.0
    %2172 = vmatpush1.msra.mxu0 0.0
    %2173 = vmatprep.subr.mxu0 0.0
    %2174 = vmatpush1.msra.mxu0 0.0
    %2175 = vmatprep.subr.mxu0 0.0
    %2176 = vmatpush1.msra.mxu0 0.0
    %2177 = vmatprep.subr.mxu0 0.0
    %2178 = vmatpush1.msra.mxu0 0.0
    %2179 = vmatprep.subr.mxu0 0.0
    %2180 = vmatpush1.msra.mxu0 0.0
    %2181 = vmatprep.subr.mxu0 0.0
    %2182 = vmatpush1.msra.mxu0 0.0
    %2183 = vmatprep.subr.mxu0 0.0
    %2184 = vmatpush1.msra.mxu0 0.0
    %2185 = vmatprep.subr.mxu0 0.0
    %2186 = vmatpush1.msra.mxu0 0.0
    %2187 = vmatprep.subr.mxu0 0.0
    %2188 = vmatpush1.msra.mxu0 0.0
    %2189 = vmatprep.subr.mxu0 0.0
    %2190 = vmatpush1.msra.mxu0 0.0
    %2191 = vmatprep.mubr.f32.mxu0 0.0
    %2192 = vmatmul.mubr.f32.gmra.mrb[0].mxu0 %v2122
    %v2193 = vpop.f32.mrb[0].mxu0
    %v2194 = vadd.f32 %v2120, %v2193
    %v2195 = vpop.f32.mrb[0].mxu0
    %2196 = vmatprep.mubr.f32.mxu0 0.0
    %2197 = vmatmul.mubr.f32.gmra.mrb[0].mxu0 %v2125
    %v2198 = vpop.f32.mrb[0].mxu0
    %v2199 = vadd.f32 %v2120, %v2198
    %v2200 = vpop.f32.mrb[0].mxu0
    %2201 = vdwg.mxu0
    %v2202 = vadd.f32 %v2194, %v1998
    %v2203 = vadd.f32 %v2199, %v1999
    %v2204 = vld [vmem:[%s2 + $0x270] sm:$0x1]
    %v2205 = vld [vmem:[%s2 + $0x271] sm:$0x1]
    %v2206 = vsel %vm126, %v2202, 0.0
    %2207 = vadd.xlane.f32.xlu0 %v2206
    %v2208 = vpop.xlane.xlu0 %2207
    %v2209 = vsel %vm126, %v2203, 0.0
    %2210 = vadd.xlane.f32.xlu0 %v2209
    %v2211 = vpop.xlane.xlu0 %2210
    %v2212 = vmul.f32 %v2208, %v133
    %v2213 = vmul.f32 %v2211, %v133
    %v2214 = vmul.f32 %v2202, %v2202
    %v2215 = vmul.f32 %v2203, %v2203
    %v2216 = vsel %vm126, %v2214, 0.0
    %2217 = vadd.xlane.f32.xlu0 %v2216
    %v2218 = vpop.xlane.xlu0 %2217
    %v2219 = vsel %vm126, %v2215, 0.0
    %2220 = vadd.xlane.f32.xlu0 %v2219
    %v2221 = vpop.xlane.xlu0 %2220
    %v2222 = vmul.f32 %v2218, %v133
    %v2223 = vmul.f32 %v2221, %v133
    %v2224 = vmul.f32 %v2212, %v2212
    %v2225 = vmul.f32 %v2213, %v2213
    %v2226 = vsub.f32 %v2222, %v2224
    %v2227 = vsub.f32 %v2223, %v2225
    %v2228 = vsub.f32 %v2202, %v2212
    %v2229 = vsub.f32 %v2203, %v2213
    %v2230 = vadd.f32 %v2226, 1e-12
    %v2231 = vadd.f32 %v2227, 1e-12
    %v2232 = vrsqrt.pop %v2230
    %v2233 = vrsqrt.pop %v2231
    %v2234 = vmul.f32 %v2228, %v2232
    %v2235 = vmul.f32 %v2229, %v2233
    %v2236 = vlaneseq
    %v2237 = vshrl.u32 %v2236, 7
    %v2238 = vsub.s32 0, %v2237
    %v2239 = vrot.slane %v2204, %v2238
    %v2240 = vmul.f32 %v2234, %v2239
    %v2241 = vmul.f32 %v2235, %v2239
    %v2242 = vlaneseq
    %v2243 = vshrl.u32 %v2242, 7
    %v2244 = vsub.s32 0, %v2243
    %v2245 = vrot.slane %v2205, %v2244
    %v2246 = vadd.f32 %v2240, %v2245
    %v2247 = vadd.f32 %v2241, %v2245
    %v2248 = vlaneseq
    %v2249 = vshrl.u32 %v2248, 7
    %v2250 = vmul.u32 %v2249, 8
    %vm2251 = vcmp.eq.s32.totalorder %v18, %v2250
    %v2252 = vsel %vm2251, 1, 0
    %v2253 = vcvt.s32.f32 %v2252
    %v2255 = vsel %vm533, %v2253, 0
    %2257 = vmatprep.subr.mxu0 0.0
    %2258 = vmatpush1.msra.mxu0 %v2246
    %2259 = vmatprep.subr.mxu0 0.0
    %2260 = vmatpush1.msra.mxu0 %v2247
    %2261 = vmatprep.subr.mxu0 0.0
    %2262 = vmatpush1.msra.mxu0 0.0
    %2263 = vmatprep.subr.mxu0 0.0
    %2264 = vmatpush1.msra.mxu0 0.0
    %2265 = vmatprep.subr.mxu0 0.0
    %2266 = vmatpush1.msra.mxu0 0.0
    %2267 = vmatprep.subr.mxu0 0.0
    %2268 = vmatpush1.msra.mxu0 0.0
    %2269 = vmatprep.subr.mxu0 0.0
    %2270 = vmatpush1.msra.mxu0 0.0
    %2271 = vmatprep.subr.mxu0 0.0
    %2272 = vmatpush1.msra.mxu0 0.0
    %2273 = vmatprep.subr.mxu0 0.0
    %2274 = vmatpush1.msra.mxu0 0.0
    %2275 = vmatprep.subr.mxu0 0.0
    %2276 = vmatpush1.msra.mxu0 0.0
    %2277 = vmatprep.subr.mxu0 0.0
    %2278 = vmatpush1.msra.mxu0 0.0
    %2279 = vmatprep.subr.mxu0 0.0
    %2280 = vmatpush1.msra.mxu0 0.0
    %2281 = vmatprep.subr.mxu0 0.0
    %2282 = vmatpush1.msra.mxu0 0.0
    %2283 = vmatprep.subr.mxu0 0.0
    %2284 = vmatpush1.msra.mxu0 0.0
    %2285 = vmatprep.subr.mxu0 0.0
    %2286 = vmatpush1.msra.mxu0 0.0
    %2287 = vmatprep.subr.mxu0 0.0
    %2288 = vmatpush1.msra.mxu0 0.0
    %2289 = vmatprep.subr.mxu0 0.0
    %2290 = vmatpush1.msra.mxu0 0.0
    %2291 = vmatprep.subr.mxu0 0.0
    %2292 = vmatpush1.msra.mxu0 0.0
    %2293 = vmatprep.subr.mxu0 0.0
    %2294 = vmatpush1.msra.mxu0 0.0
    %2295 = vmatprep.subr.mxu0 0.0
    %2296 = vmatpush1.msra.mxu0 0.0
    %2297 = vmatprep.subr.mxu0 0.0
    %2298 = vmatpush1.msra.mxu0 0.0
    %2299 = vmatprep.subr.mxu0 0.0
    %2300 = vmatpush1.msra.mxu0 0.0
    %2301 = vmatprep.subr.mxu0 0.0
    %2302 = vmatpush1.msra.mxu0 0.0
    %2303 = vmatprep.subr.mxu0 0.0
    %2304 = vmatpush1.msra.mxu0 0.0
    %2305 = vmatprep.subr.mxu0 0.0
    %2306 = vmatpush1.msra.mxu0 0.0
    %2307 = vmatprep.subr.mxu0 0.0
    %2308 = vmatpush1.msra.mxu0 0.0
    %2309 = vmatprep.subr.mxu0 0.0
    %2310 = vmatpush1.msra.mxu0 0.0
    %2311 = vmatprep.subr.mxu0 0.0
    %2312 = vmatpush1.msra.mxu0 0.0
    %2313 = vmatprep.subr.mxu0 0.0
    %2314 = vmatpush1.msra.mxu0 0.0
    %2315 = vmatprep.subr.mxu0 0.0
    %2316 = vmatpush1.msra.mxu0 0.0
    %2317 = vmatprep.subr.mxu0 0.0
    %2318 = vmatpush1.msra.mxu0 0.0
    %2319 = vmatprep.subr.mxu0 0.0
    %2320 = vmatpush1.msra.mxu0 0.0
    %2321 = vmatprep.mubr.f32.mxu0 0.0
    %2322 = vmatmul.mubr.f32.gmra.mrb[0].mxu0 %v2255
    %v2323 = vpop.f32.mrb[0].mxu0
    %v2324 = vadd.f32 0.0, %v2323
    %v2325 = vpop.f32.mrb[0].mxu0
    %2326 = vdwg.mxu0
    %v2327 = vld [vmem:[%s2 + $0x278] sm:$0xff]
    %v2328 = vld [vmem:[%s2 + $0x280] sm:$0xff]
    %v2329 = vld [vmem:[%s2 + $0x288] sm:$0xff]
    %v2330 = vld [vmem:[%s2 + $0x290] sm:$0xff]
    %v2331 = vld [vmem:[%s2 + $0x2b8] sm:$0x1]
    %v2332 = vlaneseq
    %v2333 = vshrl.u32 %v2332, 7
    %v2334 = vsub.s32 0, %v2333
    %v2335 = vrot.slane %v2331, %v2334
    %v2337 = vsel %vm126, %v2324, 0
    %2339 = vmatprep.subr.mxu0 0.0
    %2340 = vmatpush1.msra.mxu0 %v2327
    %2341 = vmatprep.subr.mxu0 0.0
    %2342 = vmatpush1.msra.mxu0 %v2328
    %2343 = vmatprep.subr.mxu0 0.0
    %2344 = vmatpush1.msra.mxu0 %v2329
    %2345 = vmatprep.subr.mxu0 0.0
    %2346 = vmatpush1.msra.mxu0 %v2330
    %2347 = vmatprep.subr.mxu0 0.0
    %2348 = vmatpush1.msra.mxu0 0.0
    %2349 = vmatprep.subr.mxu0 0.0
    %2350 = vmatpush1.msra.mxu0 0.0
    %2351 = vmatprep.subr.mxu0 0.0
    %2352 = vmatpush1.msra.mxu0 0.0
    %2353 = vmatprep.subr.mxu0 0.0
    %2354 = vmatpush1.msra.mxu0 0.0
    %2355 = vmatprep.subr.mxu0 0.0
    %2356 = vmatpush1.msra.mxu0 0.0
    %2357 = vmatprep.subr.mxu0 0.0
    %2358 = vmatpush1.msra.mxu0 0.0
    %2359 = vmatprep.subr.mxu0 0.0
    %2360 = vmatpush1.msra.mxu0 0.0
    %2361 = vmatprep.subr.mxu0 0.0
    %2362 = vmatpush1.msra.mxu0 0.0
    %2363 = vmatprep.subr.mxu0 0.0
    %2364 = vmatpush1.msra.mxu0 0.0
    %2365 = vmatprep.subr.mxu0 0.0
    %2366 = vmatpush1.msra.mxu0 0.0
    %2367 = vmatprep.subr.mxu0 0.0
    %2368 = vmatpush1.msra.mxu0 0.0
    %2369 = vmatprep.subr.mxu0 0.0
    %2370 = vmatpush1.msra.mxu0 0.0
    %2371 = vmatprep.subr.mxu0 0.0
    %2372 = vmatpush1.msra.mxu0 0.0
    %2373 = vmatprep.subr.mxu0 0.0
    %2374 = vmatpush1.msra.mxu0 0.0
    %2375 = vmatprep.subr.mxu0 0.0
    %2376 = vmatpush1.msra.mxu0 0.0
    %2377 = vmatprep.subr.mxu0 0.0
    %2378 = vmatpush1.msra.mxu0 0.0
    %2379 = vmatprep.subr.mxu0 0.0
    %2380 = vmatpush1.msra.mxu0 0.0
    %2381 = vmatprep.subr.mxu0 0.0
    %2382 = vmatpush1.msra.mxu0 0.0
    %2383 = vmatprep.subr.mxu0 0.0
    %2384 = vmatpush1.msra.mxu0 0.0
    %2385 = vmatprep.subr.mxu0 0.0
    %2386 = vmatpush1.msra.mxu0 0.0
    %2387 = vmatprep.subr.mxu0 0.0
    %2388 = vmatpush1.msra.mxu0 0.0
    %2389 = vmatprep.subr.mxu0 0.0
    %2390 = vmatpush1.msra.mxu0 0.0
    %2391 = vmatprep.subr.mxu0 0.0
    %2392 = vmatpush1.msra.mxu0 0.0
    %2393 = vmatprep.subr.mxu0 0.0
    %2394 = vmatpush1.msra.mxu0 0.0
    %2395 = vmatprep.subr.mxu0 0.0
    %2396 = vmatpush1.msra.mxu0 0.0
    %2397 = vmatprep.subr.mxu0 0.0
    %2398 = vmatpush1.msra.mxu0 0.0
    %2399 = vmatprep.subr.mxu0 0.0
    %2400 = vmatpush1.msra.mxu0 0.0
    %2401 = vmatprep.subr.mxu0 0.0
    %2402 = vmatpush1.msra.mxu0 0.0
    %2403 = vmatprep.mubr.f32.mxu0 0.0
    %2404 = vmatmul.mubr.f32.gmra.mrb[0].mxu0 %v2337
    %v2405 = vpop.f32.mrb[0].mxu0
    %v2406 = vadd.f32 %v2335, %v2405
    %v2407 = vpop.f32.mrb[0].mxu0
    %2408 = vdwg.mxu0
    %v2409 = vtanh.pop %v2406
    %v2410 = vld [vmem:[%s2 + $0x298] sm:$0xff]
    %v2411 = vld [vmem:[%s2 + $0x2a0] sm:$0xff]
    %v2412 = vld [vmem:[%s2 + $0x2a8] sm:$0xff]
    %v2413 = vld [vmem:[%s2 + $0x2b0] sm:$0xff]
    %v2415 = vsel %vm126, %v2409, 0
    %2417 = vmatprep.subr.mxu0 0.0
    %2418 = vmatpush1.msra.mxu0 %v2410
    %2419 = vmatprep.subr.mxu0 0.0
    %2420 = vmatpush1.msra.mxu0 %v2411
    %2421 = vmatprep.subr.mxu0 0.0
    %2422 = vmatpush1.msra.mxu0 %v2412
    %2423 = vmatprep.subr.mxu0 0.0
    %2424 = vmatpush1.msra.mxu0 %v2413
    %2425 = vmatprep.subr.mxu0 0.0
    %2426 = vmatpush1.msra.mxu0 0.0
    %2427 = vmatprep.subr.mxu0 0.0
    %2428 = vmatpush1.msra.mxu0 0.0
    %2429 = vmatprep.subr.mxu0 0.0
    %2430 = vmatpush1.msra.mxu0 0.0
    %2431 = vmatprep.subr.mxu0 0.0
    %2432 = vmatpush1.msra.mxu0 0.0
    %2433 = vmatprep.subr.mxu0 0.0
    %2434 = vmatpush1.msra.mxu0 0.0
    %2435 = vmatprep.subr.mxu0 0.0
    %2436 = vmatpush1.msra.mxu0 0.0
    %2437 = vmatprep.subr.mxu0 0.0
    %2438 = vmatpush1.msra.mxu0 0.0
    %2439 = vmatprep.subr.mxu0 0.0
    %2440 = vmatpush1.msra.mxu0 0.0
    %2441 = vmatprep.subr.mxu0 0.0
    %2442 = vmatpush1.msra.mxu0 0.0
    %2443 = vmatprep.subr.mxu0 0.0
    %2444 = vmatpush1.msra.mxu0 0.0
    %2445 = vmatprep.subr.mxu0 0.0
    %2446 = vmatpush1.msra.mxu0 0.0
    %2447 = vmatprep.subr.mxu0 0.0
    %2448 = vmatpush1.msra.mxu0 0.0
    %2449 = vmatprep.subr.mxu0 0.0
    %2450 = vmatpush1.msra.mxu0 0.0
    %2451 = vmatprep.subr.mxu0 0.0
    %2452 = vmatpush1.msra.mxu0 0.0
    %2453 = vmatprep.subr.mxu0 0.0
    %2454 = vmatpush1.msra.mxu0 0.0
    %2455 = vmatprep.subr.mxu0 0.0
    %2456 = vmatpush1.msra.mxu0 0.0
    %2457 = vmatprep.subr.mxu0 0.0
    %2458 = vmatpush1.msra.mxu0 0.0
    %2459 = vmatprep.subr.mxu0 0.0
    %2460 = vmatpush1.msra.mxu0 0.0
    %2461 = vmatprep.subr.mxu0 0.0
    %2462 = vmatpush1.msra.mxu0 0.0
    %2463 = vmatprep.subr.mxu0 0.0
    %2464 = vmatpush1.msra.mxu0 0.0
    %2465 = vmatprep.subr.mxu0 0.0
    %2466 = vmatpush1.msra.mxu0 0.0
    %2467 = vmatprep.subr.mxu0 0.0
    %2468 = vmatpush1.msra.mxu0 0.0
    %2469 = vmatprep.subr.mxu0 0.0
    %2470 = vmatpush1.msra.mxu0 0.0
    %2471 = vmatprep.subr.mxu0 0.0
    %2472 = vmatpush1.msra.mxu0 0.0
    %2473 = vmatprep.subr.mxu0 0.0
    %2474 = vmatpush1.msra.mxu0 0.0
    %2475 = vmatprep.subr.mxu0 0.0
    %2476 = vmatpush1.msra.mxu0 0.0
    %2477 = vmatprep.subr.mxu0 0.0
    %2478 = vmatpush1.msra.mxu0 0.0
    %2479 = vmatprep.subr.mxu0 0.0
    %2480 = vmatpush1.msra.mxu0 0.0
    %2481 = vmatprep.mubr.f32.mxu0 0.0
    %2482 = vmatmul.mubr.f32.gmra.mrb[0].mxu0 %v2415
    %v2483 = vpop.f32.mrb[0].mxu0
    %v2484 = vadd.f32 0.0, %v2483
    %v2485 = vpop.f32.mrb[0].mxu0
    %2486 = vdwg.mxu0
    %v2487 = vld [vmem:[%s2 + $0x2b9] sm:$0x1]
    %v2488 = vlaneseq
    %v2489 = vshrl.u32 %v2488, 7
    %v2490 = vsub.s32 0, %v2489
    %v2491 = vrot.slane %v2487, %v2490
    %v2492 = vadd.f32 %v2484, %v2491
    %vm2493 = vcmask 9216
    %2494 = vst.msk [vmem:[#allocation2] sm:$0x3] %vm2493, %v2492
    // Predicated region
    $region14: #{transformer_classifier_forward.1} parent=1 // pred_check
      _
    $region15: #{transformer_classifier_forward.1} parent=1 // pred_check_branch
      %2496 = sbr.rel (0) target = $region17
    $region16: #{transformer_classifier_forward.1} parent=1 // pred_region
      %s2498 = ssub.s32 32, 32
      %2499 = vsyncadd [#allocation3], %s2498
      %s2501 = sshll.u32 [#allocation2], 4
      %s2502 = int_to_ptr.vmem [resolvable:$true] %s2501
      %2504 = dma.vmem_to_hbm [thread:$0]  %s2502, 32, %s3, [#allocation3]
    $region17: #{transformer_classifier_forward.1} parent=1 // pred_fallthru
      _
    // Predicated region
    $region18: #{transformer_classifier_forward.1} parent=1 // pred_check
      _
    $region19: #{transformer_classifier_forward.1} parent=1 // pred_check_branch
      %2506 = sbr.rel (0) target = $region21
    $region20: #{transformer_classifier_forward.1} parent=1 // pred_region
      %2507 = dma.done [#allocation3], 32
    $region21: #{transformer_classifier_forward.1} parent=1 // pred_fallthru
      _
    %2508 = vsyncpa [#allocation3], 1

</llo_original>
